<compile_context>
chip_gen: v5e
topology: v5e:2x2
jax: 0.10.0
libtpu: 0.0.40
codegen_flags: <defaults>
</compile_context>

<pallas_src>
import math
import functools

import jax
import jax.numpy as jnp
from jax import lax
from jax.experimental import pallas as pl
from jax.experimental.pallas import tpu as pltpu

EPS = 1e-5
_VMEM_LIMIT = 32 * 1024 * 1024


# ----------------------------------------------------------------------------
# small helpers
# ----------------------------------------------------------------------------
def _round_up(x, m):
    return ((x + m - 1) // m) * m


def _cdiv(a, b):
    return -(-a // b)


def _pick_row_tile(R, max_tile, sub=16):
    """Row tile: multiple of `sub`, <= max_tile, and (when R is big enough)
    gives at least 2 grid tiles so both v7x TensorCores get work."""
    if R <= 2 * sub:
        return R
    half = _round_up(_cdiv(R, 2), sub)
    rt = max(sub, min(max_tile, half) // sub * sub)
    return rt


# ----------------------------------------------------------------------------
# Pallas kernels
# ----------------------------------------------------------------------------
def _linear_kernel(x_ref, w_ref, b_ref, o_ref):
    # [Rt, K](bf16) @ [K, Mp](bf16) + b   (f32 accumulate)
    y = jnp.dot(x_ref[...], w_ref[...], preferred_element_type=jnp.float32)
    o_ref[...] = (y + b_ref[...]).astype(o_ref.dtype)


def _linear_prelu_kernel(x_ref, w_ref, b_ref, a_ref, o_ref):
    y = jnp.dot(x_ref[...], w_ref[...], preferred_element_type=jnp.float32)
    y = y + b_ref[...]
    o_ref[...] = jnp.where(y >= 0.0, y, a_ref[...] * y).astype(o_ref.dtype)


def linear(x, w, b, alpha=None, *, row_tile=1024, out_dtype=jnp.float32):
    """y = [PReLU](x @ w + b), row-tiled; output columns lane-padded to 128."""
    R, K = x.shape
    M = w.shape[1]
    Mp = _round_up(M, 128)
    xb = x.astype(jnp.bfloat16)
    wb = jnp.pad(w.astype(jnp.bfloat16), ((0, 0), (0, Mp - M)))
    b2 = jnp.pad(b.reshape(1, M).astype(jnp.float32), ((0, 0), (0, Mp - M)))
    Rt = _pick_row_tile(R, row_tile)
    grid = (_cdiv(R, Rt),)
    in_specs = [pl.BlockSpec((Rt, K), lambda i: (i, 0)),
                pl.BlockSpec((K, Mp), lambda i: (0, 0)),
                pl.BlockSpec((1, Mp), lambda i: (0, 0))]
    out_spec = pl.BlockSpec((Rt, Mp), lambda i: (i, 0))
    cp = pltpu.CompilerParams(dimension_semantics=("parallel",),
                              vmem_limit_bytes=_VMEM_LIMIT)
    if alpha is None:
        y = pl.pallas_call(
            _linear_kernel, grid=grid, in_specs=in_specs, out_specs=out_spec,
            out_shape=jax.ShapeDtypeStruct((R, Mp), out_dtype),
            compiler_params=cp)(xb, wb, b2)
    else:
        a2 = jnp.pad(alpha.reshape(1, M).astype(jnp.float32),
                     ((0, 0), (0, Mp - M)))
        y = pl.pallas_call(
            _linear_prelu_kernel, grid=grid,
            in_specs=in_specs + [pl.BlockSpec((1, Mp), lambda i: (0, 0))],
            out_specs=out_spec,
            out_shape=jax.ShapeDtypeStruct((R, Mp), out_dtype),
            compiler_params=cp)(xb, wb, b2, a2)
    return y if Mp == M else y[:, :M]


def _ln_linear_kernel(x_ref, pm_ref, pb_ref, g_ref, bta_ref, w_ref, b_ref,
                      o_ref, *, inv_c):
    # Fused LayerNormalization4D (over channels, strided across the unfolded
    # feature axis) + input-projection GEMM.  Stats in f32, matmul in bf16.
    x = x_ref[...].astype(jnp.float32)                  # [Rt, C*ks]
    pm = pm_ref[...]                                    # [C*ks, ks]  (1's)
    pb = pb_ref[...]                                    # [ks, C*ks]  (1's)
    mu = jnp.dot(x, pm, preferred_element_type=jnp.float32) * inv_c
    ex2 = jnp.dot(x * x, pm, preferred_element_type=jnp.float32) * inv_c
    inv = lax.rsqrt(ex2 - mu * mu + EPS)                # [Rt, ks]
    mu_f = jnp.dot(mu, pb, preferred_element_type=jnp.float32)
    inv_f = jnp.dot(inv, pb, preferred_element_type=jnp.float32)
    xh = (x - mu_f) * inv_f * g_ref[...] + bta_ref[...]
    y = jnp.dot(xh.astype(jnp.bfloat16), w_ref[...],
                preferred_element_type=jnp.float32) + b_ref[...]
    o_ref[...] = y.astype(o_ref.dtype)


def ln_linear(x, gamma, beta, w, b, *, C, ks, row_tile=1024,
              out_dtype=jnp.bfloat16):
    """Channel-LN (per position, over C) fused with x @ w + b on unfolded rows."""
    R, CK = x.shape
    assert CK == C * ks
    M = w.shape[1]
    Mp = _round_up(M, 128)
    xb = x.astype(jnp.bfloat16)
    wb = jnp.pad(w.astype(jnp.bfloat16), ((0, 0), (0, Mp - M)))
    b2 = jnp.pad(b.reshape(1, M).astype(jnp.float32), ((0, 0), (0, Mp - M)))
    pm = jnp.tile(jnp.eye(ks, dtype=jnp.float32), (C, 1))           # [CK, ks]
    pb = jnp.transpose(pm)                                          # [ks, CK]
    gf = jnp.repeat(gamma.astype(jnp.float32), ks).reshape(1, CK)
    bf = jnp.repeat(beta.astype(jnp.float32), ks).reshape(1, CK)
    Rt = _pick_row_tile(R, row_tile)
    grid = (_cdiv(R, Rt),)
    kern = functools.partial(_ln_linear_kernel, inv_c=1.0 / C)
    y = pl.pallas_call(
        kern, grid=grid,
        in_specs=[pl.BlockSpec((Rt, CK), lambda i: (i, 0)),
                  pl.BlockSpec((CK, ks), lambda i: (0, 0)),
                  pl.BlockSpec((ks, CK), lambda i: (0, 0)),
                  pl.BlockSpec((1, CK), lambda i: (0, 0)),
                  pl.BlockSpec((1, CK), lambda i: (0, 0)),
                  pl.BlockSpec((CK, Mp), lambda i: (0, 0)),
                  pl.BlockSpec((1, Mp), lambda i: (0, 0))],
        out_specs=pl.BlockSpec((Rt, Mp), lambda i: (i, 0)),
        out_shape=jax.ShapeDtypeStruct((R, Mp), out_dtype),
        compiler_params=pltpu.CompilerParams(
            dimension_semantics=("parallel",), vmem_limit_bytes=_VMEM_LIMIT),
    )(xb, pm, pb, gf, bf, wb, b2)
    return y if Mp == M else y[:, :M]


def _ln_group_kernel(x_ref, g_ref, b_ref, o_ref):
    # LayerNormalization4DCF: normalize over the last (lane) axis, per group.
    x = x_ref[0].astype(jnp.float32)
    mu = jnp.mean(x, axis=-1, keepdims=True)
    var = jnp.mean((x - mu) * (x - mu), axis=-1, keepdims=True)
    inv = lax.rsqrt(var + EPS)
    o_ref[0] = ((x - mu) * inv * g_ref[0] + b_ref[0]).astype(o_ref.dtype)


def layernorm_groups(x, gamma, beta, *, row_tile=512, out_dtype=None):
    # x: [G, R, D]; gamma/beta: [G, 1, D]; LN over last axis per (g, r)
    G, R, D = x.shape
    if out_dtype is None:
        out_dtype = x.dtype
    per_row = D * (jnp.dtype(x.dtype).itemsize + jnp.dtype(out_dtype).itemsize) * 2
    cap = max(16, (4 * 1024 * 1024 // max(per_row, 1)) // 16 * 16)
    Rt = _pick_row_tile(R, min(row_tile, cap))
    return pl.pallas_call(
        _ln_group_kernel,
        grid=(G, _cdiv(R, Rt)),
        in_specs=[pl.BlockSpec((1, Rt, D), lambda g, i: (g, i, 0)),
                  pl.BlockSpec((1, 1, D), lambda g, i: (g, 0, 0)),
                  pl.BlockSpec((1, 1, D), lambda g, i: (g, 0, 0))],
        out_specs=pl.BlockSpec((1, Rt, D), lambda g, i: (g, i, 0)),
        out_shape=jax.ShapeDtypeStruct((G, R, D), out_dtype),
        compiler_params=pltpu.CompilerParams(
            dimension_semantics=("parallel", "parallel"),
            vmem_limit_bytes=_VMEM_LIMIT),
    )(x, gamma.astype(jnp.float32), beta.astype(jnp.float32))


def _bilstm_rec_kernel(gxf_ref, gxb_ref, whf_ref, whb_ref, of_ref, ob_ref,
                       hf, cf, hb, cb):
    # Recurrence only: input projection + biases are precomputed in gx (bf16).
    # Gate slabs are lane-padded to Hp (multiple of 128), so every slice and
    # store below is 128-lane aligned.  State stays f32, matmul is bf16.
    L = gxf_ref.shape[0]
    Hp = hf.shape[1]
    hf[...] = jnp.zeros_like(hf)
    cf[...] = jnp.zeros_like(cf)
    hb[...] = jnp.zeros_like(hb)
    cb[...] = jnp.zeros_like(cb)

    def cell(gx, h, c, wh_ref):
        gates = gx.astype(jnp.float32) + jnp.dot(
            h.astype(jnp.bfloat16), wh_ref[...],
            preferred_element_type=jnp.float32)
        i = jax.nn.sigmoid(gates[:, 0:Hp])
        f = jax.nn.sigmoid(gates[:, Hp:2 * Hp])
        g = jnp.tanh(gates[:, 2 * Hp:3 * Hp])
        o = jax.nn.sigmoid(gates[:, 3 * Hp:4 * Hp])
        c_new = f * c + i * g
        h_new = o * jnp.tanh(c_new)
        return h_new, c_new

    @pl.loop(0, L)
    def _(t):
        tb = L - 1 - t
        hf_new, cf_new = cell(gxf_ref[t], hf[...], cf[...], whf_ref)
        hb_new, cb_new = cell(gxb_ref[tb], hb[...], cb[...], whb_ref)
        hf[...] = hf_new
        cf[...] = cf_new
        hb[...] = hb_new
        cb[...] = cb_new
        of_ref[t] = hf_new.astype(of_ref.dtype)
        ob_ref[tb] = hb_new.astype(ob_ref.dtype)


def bilstm_recurrence(gxf, gxb, whf, whb):
    # gxf/gxb: [L, N, 4Hp] bf16 precomputed gates (+bias); whf/whb: [Hp, 4Hp] bf16
    L, N, G4 = gxf.shape
    Hp = whf.shape[0]
    # VMEM budget: double-buffered bf16 inputs & outputs + f32 state scratch
    per_n = L * (2 * G4 * 2 * 2 + 2 * Hp * 2 * 2) + 4 * Hp * 4
    budget = int(3.5 * 1024 * 1024)
    Nt = max(16, (budget // max(per_n, 1)) // 16 * 16)
    if N >= 32:
        Nt = min(Nt, _round_up(_cdiv(N, 2), 16))   # >=2 tiles -> both v7x TCs
    if Nt >= N or N < 16:
        Nt = N
    grid = (_cdiv(N, Nt),)
    out_f, out_b = pl.pallas_call(
        _bilstm_rec_kernel,
        grid=grid,
        in_specs=[pl.BlockSpec((L, Nt, G4), lambda i: (0, i, 0)),
                  pl.BlockSpec((L, Nt, G4), lambda i: (0, i, 0)),
                  pl.BlockSpec((Hp, G4), lambda i: (0, 0)),
                  pl.BlockSpec((Hp, G4), lambda i: (0, 0))],
        out_specs=(pl.BlockSpec((L, Nt, Hp), lambda i: (0, i, 0)),
                   pl.BlockSpec((L, Nt, Hp), lambda i: (0, i, 0))),
        out_shape=(jax.ShapeDtypeStruct((L, N, Hp), jnp.bfloat16),
                   jax.ShapeDtypeStruct((L, N, Hp), jnp.bfloat16)),
        scratch_shapes=[pltpu.VMEM((Nt, Hp), jnp.float32)] * 4,
        compiler_params=pltpu.CompilerParams(
            dimension_semantics=("parallel",), vmem_limit_bytes=_VMEM_LIMIT),
    )(gxf.astype(jnp.bfloat16), gxb.astype(jnp.bfloat16),
      whf.astype(jnp.bfloat16), whb.astype(jnp.bfloat16))
    return out_f, out_b


def _attn_kernel(q_ref, k_ref, v_ref, o_ref, *, scale):
    # a block of Gb (head, batch) slices per grid step; softmax kept in f32
    q = q_ref[...]
    k = k_ref[...]
    v = v_ref[...]
    s = jnp.einsum('gqd,gkd->gqk', q, k,
                   preferred_element_type=jnp.float32) * scale
    s = s - jnp.max(s, axis=-1, keepdims=True)
    p = jnp.exp(s)
    denom = jnp.sum(p, axis=-1, keepdims=True)
    p = p * pl.reciprocal(denom, approx=True)
    o = jnp.einsum('gqk,gkd->gqd', p.astype(jnp.bfloat16), v,
                   preferred_element_type=jnp.float32)
    o_ref[...] = o.astype(o_ref.dtype)


def attention(q, k, v):
    # q/k: [Bh, T, Dq], v: [Bh, T, Dv];  scale = 1/sqrt(Dq)  (un-padded Dq,
    # matches torch attn_mat = Q @ K^T / Q.shape[-1] ** 0.5)
    Bh, T, Dq = q.shape
    Dv = v.shape[-1]
    scale = 1.0 / math.sqrt(Dq)
    Dqp = _round_up(Dq, 128)
    Dvp = _round_up(Dv, 128)
    qp = jnp.pad(q.astype(jnp.bfloat16), ((0, 0), (0, 0), (0, Dqp - Dq)))
    kp = jnp.pad(k.astype(jnp.bfloat16), ((0, 0), (0, 0), (0, Dqp - Dq)))
    vp = jnp.pad(v.astype(jnp.bfloat16), ((0, 0), (0, 0), (0, Dvp - Dv)))
    Gb = 1
    for cand in (4, 2):
        if Bh % cand == 0 and Bh // cand >= 2:
            Gb = cand
            break
    # TODO(synk): flash-style kv tiling (online softmax) for long T.
    kern = functools.partial(_attn_kernel, scale=scale)
    out = pl.pallas_call(
        kern,
        grid=(Bh // Gb,),
        in_specs=[pl.BlockSpec((Gb, T, Dqp), lambda b: (b, 0, 0)),
                  pl.BlockSpec((Gb, T, Dqp), lambda b: (b, 0, 0)),
                  pl.BlockSpec((Gb, T, Dvp), lambda b: (b, 0, 0))],
        out_specs=pl.BlockSpec((Gb, T, Dvp), lambda b: (b, 0, 0)),
        out_shape=jax.ShapeDtypeStruct((Bh, T, Dvp), jnp.bfloat16),
        compiler_params=pltpu.CompilerParams(
            dimension_semantics=("parallel",), vmem_limit_bytes=_VMEM_LIMIT),
    )(qp, kp, vp)
    return out if Dvp == Dv else out[..., :Dv]


# ----------------------------------------------------------------------------
# Glue (pure data movement)
# ----------------------------------------------------------------------------
def unfold1d(x, ksz, hsz):
    # x: [N, C, Q] -> [N, L, C*ksz]; feature index = c*ksz + k (matches F.unfold)
    N, C, Qd = x.shape
    L = (Qd - ksz) // hsz + 1
    frames = [x[:, :, k:k + (L - 1) * hsz + 1:hsz] for k in range(ksz)]
    xu = jnp.stack(frames, axis=2).reshape(N, C * ksz, L)
    return jnp.transpose(xu, (0, 2, 1))


def _pad_gates(w, H, Hp):
    # [..., 4H] -> [..., 4Hp]; gate g occupies lanes [g*Hp : g*Hp + H], rest 0
    parts = []
    for g in range(4):
        wg = w[..., g * H:(g + 1) * H]
        pad_width = [(0, 0)] * (w.ndim - 1) + [(0, Hp - H)]
        parts.append(jnp.pad(wg, pad_width))
    return jnp.concatenate(parts, axis=-1)


def bilstm_convt(xu, norm_g, norm_b, lp, w_ct, b_ct, C, ksz, hsz):
    """Fused channel-LN + BiLSTM (batch_first) + ConvTranspose1d on unfolded rows.

    xu: [N, L, C*ks] raw (un-normalized) unfolded input.
    Returns [N, Qout, C] with Qout = (L-1)*hs + ks.
    """
    N, L, CK = xu.shape
    H = lp['whf'].shape[0]
    Hp = _round_up(H, 128)

    # (1) channel-LN fused with the input projection (both directions, gate
    #     slabs lane-padded to Hp): one wide GEMM, bf16 output.
    w_in = jnp.concatenate([_pad_gates(lp['wif'], H, Hp),
                            _pad_gates(lp['wib'], H, Hp)], axis=1)       # [CK, 8Hp]
    b_in = jnp.concatenate(
        [_pad_gates(lp['bf'].reshape(1, -1), H, Hp).reshape(-1),
         _pad_gates(lp['bb'].reshape(1, -1), H, Hp).reshape(-1)])        # [8Hp]
    gx = ln_linear(xu.reshape(N * L, CK), norm_g, norm_b, w_in, b_in,
                   C=C, ks=ksz, out_dtype=jnp.bfloat16)                  # [N*L, 8Hp]
    gx = gx.reshape(N, L, 2, 4 * Hp)
    gxf = jnp.transpose(gx[:, :, 0, :], (1, 0, 2))                       # [L, N, 4Hp]
    gxb = jnp.transpose(gx[:, :, 1, :], (1, 0, 2))

    # (2) sequential recurrence (only h @ W_hh on the serial critical path)
    whf_p = jnp.pad(_pad_gates(lp['whf'], H, Hp), ((0, Hp - H), (0, 0)))
    whb_p = jnp.pad(_pad_gates(lp['whb'], H, Hp), ((0, Hp - H), (0, 0)))
    out_f, out_b = bilstm_recurrence(gxf, gxb, whf_p, whb_p)             # [L, N, Hp]

    # (3) ConvTranspose1d: all taps as ONE matmul (zero-padded rows keep the
    #     Hp-padded h columns harmless), then overlap-add + bias
    rnn = jnp.concatenate([out_f, out_b], axis=-1)                       # [L, N, 2Hp]
    rnn = jnp.transpose(rnn, (1, 0, 2)).reshape(N * L, 2 * Hp)
    w2 = w_ct.reshape(2 * H, C * ksz)                                    # col = c*ks + k
    w2p = jnp.concatenate([jnp.pad(w2[:H], ((0, Hp - H), (0, 0))),
                           jnp.pad(w2[H:], ((0, Hp - H), (0, 0)))], axis=0)
    y = linear(rnn, w2p, jnp.zeros((C * ksz,), jnp.float32))             # [N*L, C*ks] f32
    y = y.reshape(N, L, C, ksz)
    Qout = (L - 1) * hsz + ksz
    out = jnp.zeros((N, Qout, C), jnp.float32)
    for k in range(ksz):
        out = out.at[:, k:k + (L - 1) * hsz + 1:hsz, :].add(y[:, :, :, k])
    return out + b_ct.reshape(1, 1, C)


# ----------------------------------------------------------------------------
# GridNetBlock forward
# ----------------------------------------------------------------------------
def gridnet_block_forward(x, p, *, emb_ks, emb_hs, n_head):
    B, C, old_T, old_Q = x.shape
    Tp = math.ceil((old_T - emb_ks) / emb_hs) * emb_hs + emb_ks
    Qp = math.ceil((old_Q - emb_ks) / emb_hs) * emb_hs + emb_ks
    x = jnp.pad(x, ((0, 0), (0, 0), (0, Tp - old_T), (0, Qp - old_Q)))
    input_ = x

    # ---------------- intra (BiLSTM over frequency axis) ----------------
    xr = jnp.transpose(input_, (0, 2, 1, 3)).reshape(B * Tp, C, Qp)
    xu = unfold1d(xr.astype(jnp.bfloat16), emb_ks, emb_hs)               # [B*T, L, C*ks]
    y = bilstm_convt(xu, p['intra_norm_g'], p['intra_norm_b'], p['intra_lstm'],
                     p['intra_lin_w'], p['intra_lin_b'], C, emb_ks, emb_hs)
    intra = jnp.transpose(y.reshape(B, Tp, Qp, C), (0, 3, 1, 2)) + input_

    # ---------------- inter (BiLSTM over time axis) ----------------
    xr = jnp.transpose(intra, (0, 3, 1, 2)).reshape(B * Qp, C, Tp)
    xu = unfold1d(xr.astype(jnp.bfloat16), emb_ks, emb_hs)
    y = bilstm_convt(xu, p['inter_norm_g'], p['inter_norm_b'], p['inter_lstm'],
                     p['inter_lin_w'], p['inter_lin_b'], C, emb_ks, emb_hs)
    inter = jnp.transpose(y.reshape(B, Qp, Tp, C), (0, 3, 2, 1)) + intra
    inter = inter[:, :, :old_T, :old_Q]

    # ---------------- multi-head full-band self-attention ----------------
    Tc, Fc = old_T, old_Q
    E = p['q_w'][0].shape[1]
    Cv = C // n_head
    feat = jnp.transpose(inter, (0, 2, 3, 1)).reshape(B * Tc * Fc, C)

    # fused Q/K/V 1x1 convs (+ per-column PReLU) for all heads in ONE GEMM
    w_qkv = jnp.concatenate(list(p['q_w']) + list(p['k_w']) + list(p['v_w']), axis=1)
    b_qkv = jnp.concatenate([b.reshape(-1)
                             for b in (list(p['q_b']) + list(p['k_b']) + list(p['v_b']))])
    a_qkv = jnp.concatenate(
        [jnp.full((E,), p['q_alpha'][i], jnp.float32) for i in range(n_head)]
        + [jnp.full((E,), p['k_alpha'][i], jnp.float32) for i in range(n_head)]
        + [jnp.full((Cv,), p['v_alpha'][i], jnp.float32) for i in range(n_head)])
    z = linear(feat, w_qkv, b_qkv, alpha=a_qkv, out_dtype=jnp.bfloat16)  # [B*T*F, nh*(2E+Cv)]
    z = z.reshape(B, Tc, Fc, -1)
    nQ = n_head * E
    zq, zk, zv = z[..., :nQ], z[..., nQ:2 * nQ], z[..., 2 * nQ:]

    def ln_heads(zh, gammas, betas, width):
        # zh: [B, T, F, nh*width] -> LN4DCF per head (stats over (width, F));
        # activations stay in (F, width) order; gamma/beta are transposed instead.
        t = zh.reshape(B, Tc, Fc, n_head, width)
        t = jnp.transpose(t, (3, 0, 1, 2, 4)).reshape(n_head, B * Tc, Fc * width)
        g = jnp.stack([jnp.transpose(gm).reshape(1, Fc * width) for gm in gammas], 0)
        bt = jnp.stack([jnp.transpose(bb).reshape(1, Fc * width) for bb in betas], 0)
        return layernorm_groups(t, g, bt, out_dtype=jnp.bfloat16)        # [nh, B*T, F*width]

    lnq = ln_heads(zq, p['q_g'], p['q_beta'], E).reshape(n_head * B, Tc, Fc * E)
    lnk = ln_heads(zk, p['k_g'], p['k_beta'], E).reshape(n_head * B, Tc, Fc * E)
    lnv = ln_heads(zv, p['v_g'], p['v_beta'], Cv).reshape(n_head * B, Tc, Fc * Cv)

    att = attention(lnq, lnk, lnv)                                       # [nh*B, T, F*Cv] bf16
    att = att.reshape(n_head, B, Tc, Fc, Cv)
    att = jnp.transpose(att, (1, 2, 3, 0, 4)).reshape(B * Tc * Fc, C)    # chan = head*Cv+cv

    # concat projection: 1x1 conv + PReLU + LN4DCF over (C, F)
    a_proj = jnp.full((C,), p['proj_alpha'], jnp.float32)
    zp = linear(att, p['proj_w'], p['proj_b'], alpha=a_proj,
                out_dtype=jnp.float32)                                   # [B*T*F, C]
    g = jnp.transpose(p['proj_g']).reshape(1, 1, Fc * C)
    bb = jnp.transpose(p['proj_beta']).reshape(1, 1, Fc * C)
    zp = layernorm_groups(zp.reshape(1, B * Tc, Fc * C), g, bb,
                          out_dtype=jnp.float32)
    proj = jnp.transpose(zp.reshape(B, Tc, Fc, C), (0, 3, 1, 2))
    return proj + inter


# ----------------------------------------------------------------------------
# Deterministic parameter init (shapes from GridNetBlock.__init__)
# ----------------------------------------------------------------------------
def init_params(key, C, emb_ks, emb_hs, n_freqs, H, n_head, approx_qk_dim):
    E = math.ceil(approx_qk_dim * 1.0 / n_freqs)
    Cv = C // n_head
    I = C * emb_ks
    keys = iter(jax.random.split(key, 128))

    def nrm(shape, scale=0.1):
        return scale * jax.random.normal(next(keys), shape, jnp.float32)

    def lstm_params():
        # stored pre-transposed: x @ wif, h @ whf; bias = b_ih + b_hh (combined)
        return dict(wif=nrm((I, 4 * H)), whf=nrm((H, 4 * H)), bf=nrm((1, 4 * H)),
                    wib=nrm((I, 4 * H)), whb=nrm((H, 4 * H)), bb=nrm((1, 4 * H)))

    alpha = jnp.float32(0.25)   # nn.PReLU() default (single learnable alpha)
    p = dict(
        intra_norm_g=jnp.ones((C,), jnp.float32),
        intra_norm_b=jnp.zeros((C,), jnp.float32),
        intra_lstm=lstm_params(),
        intra_lin_w=nrm((2 * H, C, emb_ks)),
        intra_lin_b=nrm((C,)),
        inter_norm_g=jnp.ones((C,), jnp.float32),
        inter_norm_b=jnp.zeros((C,), jnp.float32),
        inter_lstm=lstm_params(),
        inter_lin_w=nrm((2 * H, C, emb_ks)),
        inter_lin_b=nrm((C,)),
        q_w=[nrm((C, E)) for _ in range(n_head)],
        q_b=[nrm((E,)) for _ in range(n_head)],
        q_alpha=[alpha for _ in range(n_head)],
        q_g=[jnp.ones((E, n_freqs), jnp.float32) for _ in range(n_head)],
        q_beta=[jnp.zeros((E, n_freqs), jnp.float32) for _ in range(n_head)],
        k_w=[nrm((C, E)) for _ in range(n_head)],
        k_b=[nrm((E,)) for _ in range(n_head)],
        k_alpha=[alpha for _ in range(n_head)],
        k_g=[jnp.ones((E, n_freqs), jnp.float32) for _ in range(n_head)],
        k_beta=[jnp.zeros((E, n_freqs), jnp.float32) for _ in range(n_head)],
        v_w=[nrm((C, Cv)) for _ in range(n_head)],
        v_b=[nrm((Cv,)) for _ in range(n_head)],
        v_alpha=[alpha for _ in range(n_head)],
        v_g=[jnp.ones((Cv, n_freqs), jnp.float32) for _ in range(n_head)],
        v_beta=[jnp.zeros((Cv, n_freqs), jnp.float32) for _ in range(n_head)],
        proj_w=nrm((C, C)),
        proj_b=nrm((C,)),
        proj_alpha=alpha,
        proj_g=jnp.ones((C, n_freqs), jnp.float32),
        proj_beta=jnp.zeros((C, n_freqs), jnp.float32),
    )
    return p


if __name__ == "__main__":
    # small config consistent with the module's constraints
    B = 2
    emb_dim = 8         # C, divisible by n_head
    emb_ks = 2
    emb_hs = 1
    old_T = 8
    n_freqs = 8         # == old_Q (required for LayerNormalization4DCF broadcast)
    hidden = 16
    n_head = 4
    approx_qk_dim = 32

    key = jax.random.PRNGKey(0)
    kx, kp = jax.random.split(key)
    x = jax.random.normal(kx, (B, emb_dim, old_T, n_freqs), jnp.float32)
    params = init_params(kp, emb_dim, emb_ks, emb_hs, n_freqs, hidden,
                         n_head, approx_qk_dim)

    fwd = jax.jit(functools.partial(gridnet_block_forward,
                                    emb_ks=emb_ks, emb_hs=emb_hs, n_head=n_head))
    out = fwd(x, params)
    jax.block_until_ready(out)
    assert out.shape == (B, emb_dim, old_T, n_freqs)
    assert bool(jnp.all(jnp.isfinite(out)))
    print("KERNEL_OK")
</pallas_src>

<mosaic_0001>
module attributes {stable_mosaic.version = 11 : i64} {
  func.func @_ln_linear_kernel(%arg0: i32, %arg1: memref<64x16xbf16, #tpu.memory_space<vmem>>, %arg2: memref<16x2xf32, #tpu.memory_space<vmem>>, %arg3: memref<2x16xf32, #tpu.memory_space<vmem>>, %arg4: memref<1x16xf32, #tpu.memory_space<vmem>>, %arg5: memref<1x16xf32, #tpu.memory_space<vmem>>, %arg6: memref<16x1024xbf16, #tpu.memory_space<vmem>>, %arg7: memref<1x1024xf32, #tpu.memory_space<vmem>>, %arg8: memref<64x1024xbf16, #tpu.memory_space<vmem>>) attributes {dimension_semantics = [#tpu.dimension_semantics<parallel>], iteration_bounds = array<i64: 2>, scalar_prefetch = 0 : i64, scratch_operands = 0 : i64, tpu.core_type = #tpu.core_type<tc>, window_params = [{transform_indices = @transform_0, window_bounds = array<i64: 64, 16>}, {pipeline_mode = #tpu.pipeline_mode<synchronous>, transform_indices = @transform_1, window_bounds = array<i64: 16, 2>}, {pipeline_mode = #tpu.pipeline_mode<synchronous>, transform_indices = @transform_2, window_bounds = array<i64: 2, 16>}, {pipeline_mode = #tpu.pipeline_mode<synchronous>, transform_indices = @transform_3, window_bounds = array<i64: 1, 16>}, {pipeline_mode = #tpu.pipeline_mode<synchronous>, transform_indices = @transform_4, window_bounds = array<i64: 1, 16>}, {pipeline_mode = #tpu.pipeline_mode<synchronous>, transform_indices = @transform_5, window_bounds = array<i64: 16, 1024>}, {pipeline_mode = #tpu.pipeline_mode<synchronous>, transform_indices = @transform_6, window_bounds = array<i64: 1, 1024>}, {transform_indices = @transform_7, window_bounds = array<i64: 64, 1024>}]} {
    %c0 = arith.constant 0 : index
    %c0_0 = arith.constant 0 : index
    %0 = vector.load %arg1[%c0, %c0_0] : memref<64x16xbf16, #tpu.memory_space<vmem>>, vector<64x16xbf16>
    %1 = arith.extf %0 : vector<64x16xbf16> to vector<64x16xf32>
    %c0_1 = arith.constant 0 : index
    %c0_2 = arith.constant 0 : index
    %2 = vector.load %arg2[%c0_1, %c0_2] : memref<16x2xf32, #tpu.memory_space<vmem>>, vector<16x2xf32>
    %c0_3 = arith.constant 0 : index
    %c0_4 = arith.constant 0 : index
    %3 = vector.load %arg3[%c0_3, %c0_4] : memref<2x16xf32, #tpu.memory_space<vmem>>, vector<2x16xf32>
    %cst = arith.constant dense<0.000000e+00> : vector<64x2xf32>
    %4 = tpu.matmul %1, %2, %cst {dimension_numbers = #tpu.dot_dimension_numbers<[1], [0], [0], [1], [0, 0, 1, 1], [], []>} : vector<64x16xf32>, vector<16x2xf32>, vector<64x2xf32> -> vector<64x2xf32>
    %cst_5 = arith.constant 1.250000e-01 : f32
    %5 = vector.broadcast %cst_5 : f32 to vector<64x2xf32>
    %6 = arith.mulf %4, %5 : vector<64x2xf32>
    %7 = arith.mulf %1, %1 : vector<64x16xf32>
    %cst_6 = arith.constant dense<0.000000e+00> : vector<64x2xf32>
    %8 = tpu.matmul %7, %2, %cst_6 {dimension_numbers = #tpu.dot_dimension_numbers<[1], [0], [0], [1], [0, 0, 1, 1], [], []>} : vector<64x16xf32>, vector<16x2xf32>, vector<64x2xf32> -> vector<64x2xf32>
    %cst_7 = arith.constant 1.250000e-01 : f32
    %9 = vector.broadcast %cst_7 : f32 to vector<64x2xf32>
    %10 = arith.mulf %8, %9 : vector<64x2xf32>
    %11 = arith.mulf %6, %6 : vector<64x2xf32>
    %12 = arith.subf %10, %11 : vector<64x2xf32>
    %cst_8 = arith.constant 9.99999974E-6 : f32
    %13 = vector.broadcast %cst_8 : f32 to vector<64x2xf32>
    %14 = arith.addf %12, %13 : vector<64x2xf32>
    %15 = math.rsqrt %14 : vector<64x2xf32>
    %cst_9 = arith.constant dense<0.000000e+00> : vector<64x16xf32>
    %16 = tpu.matmul %6, %3, %cst_9 {dimension_numbers = #tpu.dot_dimension_numbers<[1], [0], [0], [1], [0, 0, 1, 1], [], []>} : vector<64x2xf32>, vector<2x16xf32>, vector<64x16xf32> -> vector<64x16xf32>
    %cst_10 = arith.constant dense<0.000000e+00> : vector<64x16xf32>
    %17 = tpu.matmul %15, %3, %cst_10 {dimension_numbers = #tpu.dot_dimension_numbers<[1], [0], [0], [1], [0, 0, 1, 1], [], []>} : vector<64x2xf32>, vector<2x16xf32>, vector<64x16xf32> -> vector<64x16xf32>
    %18 = arith.subf %1, %16 : vector<64x16xf32>
    %19 = arith.mulf %18, %17 : vector<64x16xf32>
    %c0_11 = arith.constant 0 : index
    %c0_12 = arith.constant 0 : index
    %20 = vector.load %arg4[%c0_11, %c0_12] : memref<1x16xf32, #tpu.memory_space<vmem>>, vector<1x16xf32>
    %21 = vector.broadcast %20 : vector<1x16xf32> to vector<64x16xf32>
    %22 = arith.mulf %19, %21 : vector<64x16xf32>
    %c0_13 = arith.constant 0 : index
    %c0_14 = arith.constant 0 : index
    %23 = vector.load %arg5[%c0_13, %c0_14] : memref<1x16xf32, #tpu.memory_space<vmem>>, vector<1x16xf32>
    %24 = vector.broadcast %23 : vector<1x16xf32> to vector<64x16xf32>
    %25 = arith.addf %22, %24 : vector<64x16xf32>
    %26 = arith.truncf %25 : vector<64x16xf32> to vector<64x16xbf16>
    %c0_15 = arith.constant 0 : index
    %c0_16 = arith.constant 0 : index
    %27 = vector.load %arg6[%c0_15, %c0_16] : memref<16x1024xbf16, #tpu.memory_space<vmem>>, vector<16x1024xbf16>
    %cst_17 = arith.constant dense<0.000000e+00> : vector<64x1024xf32>
    %28 = tpu.matmul %26, %27, %cst_17 {dimension_numbers = #tpu.dot_dimension_numbers<[1], [0], [0], [1], [0, 0, 1, 1], [], []>} : vector<64x16xbf16>, vector<16x1024xbf16>, vector<64x1024xf32> -> vector<64x1024xf32>
    %c0_18 = arith.constant 0 : index
    %c0_19 = arith.constant 0 : index
    %29 = vector.load %arg7[%c0_18, %c0_19] : memref<1x1024xf32, #tpu.memory_space<vmem>>, vector<1x1024xf32>
    %30 = vector.broadcast %29 : vector<1x1024xf32> to vector<64x1024xf32>
    %31 = arith.addf %28, %30 : vector<64x1024xf32>
    %32 = arith.truncf %31 : vector<64x1024xf32> to vector<64x1024xbf16>
    %c0_20 = arith.constant 0 : index
    %c0_21 = arith.constant 0 : index
    %33 = vector.load %arg8[%c0_20, %c0_21] : memref<64x1024xbf16, #tpu.memory_space<vmem>>, vector<64x1024xbf16>
    tpu.vector_store %arg8[%c0_20, %c0_21], %32 {strides = array<i32>} : memref<64x1024xbf16, #tpu.memory_space<vmem>>, vector<64x1024xbf16>,
    return
  }
  func.func @transform_0(%arg0: i32) -> (i32, i32) {
    %c0_i32 = arith.constant 0 : i32
    %c0_i32_0 = arith.constant 0 : i32
    return %arg0, %c0_i32 : i32, i32
  }
  func.func @transform_1(%arg0: i32) -> (i32, i32) {
    %c0_i32 = arith.constant 0 : i32
    %c0_i32_0 = arith.constant 0 : i32
    %c0_i32_1 = arith.constant 0 : i32
    return %c0_i32, %c0_i32_0 : i32, i32
  }
  func.func @transform_2(%arg0: i32) -> (i32, i32) {
    %c0_i32 = arith.constant 0 : i32
    %c0_i32_0 = arith.constant 0 : i32
    %c0_i32_1 = arith.constant 0 : i32
    return %c0_i32, %c0_i32_0 : i32, i32
  }
  func.func @transform_3(%arg0: i32) -> (i32, i32) {
    %c0_i32 = arith.constant 0 : i32
    %c0_i32_0 = arith.constant 0 : i32
    %c0_i32_1 = arith.constant 0 : i32
    return %c0_i32, %c0_i32_0 : i32, i32
  }
  func.func @transform_4(%arg0: i32) -> (i32, i32) {
    %c0_i32 = arith.constant 0 : i32
    %c0_i32_0 = arith.constant 0 : i32
    %c0_i32_1 = arith.constant 0 : i32
    return %c0_i32, %c0_i32_0 : i32, i32
  }
  func.func @transform_5(%arg0: i32) -> (i32, i32) {
    %c0_i32 = arith.constant 0 : i32
    %c0_i32_0 = arith.constant 0 : i32
    %c0_i32_1 = arith.constant 0 : i32
    return %c0_i32, %c0_i32_0 : i32, i32
  }
  func.func @transform_6(%arg0: i32) -> (i32, i32) {
    %c0_i32 = arith.constant 0 : i32
    %c0_i32_0 = arith.constant 0 : i32
    %c0_i32_1 = arith.constant 0 : i32
    return %c0_i32, %c0_i32_0 : i32, i32
  }
  func.func @transform_7(%arg0: i32) -> (i32, i32) {
    %c0_i32 = arith.constant 0 : i32
    %c0_i32_0 = arith.constant 0 : i32
    return %arg0, %c0_i32 : i32, i32
  }
}

module attributes {stable_mosaic.version = 11 : i64} {
  func.func @_bilstm_rec_kernel(%arg0: i32, %arg1: memref<7x16x512xbf16, #tpu.memory_space<vmem>>, %arg2: memref<7x16x512xbf16, #tpu.memory_space<vmem>>, %arg3: memref<128x512xbf16, #tpu.memory_space<vmem>>, %arg4: memref<128x512xbf16, #tpu.memory_space<vmem>>, %arg5: memref<7x16x128xbf16, #tpu.memory_space<vmem>>, %arg6: memref<7x16x128xbf16, #tpu.memory_space<vmem>>, %arg7: memref<16x128xf32, #tpu.memory_space<vmem>>, %arg8: memref<16x128xf32, #tpu.memory_space<vmem>>, %arg9: memref<16x128xf32, #tpu.memory_space<vmem>>, %arg10: memref<16x128xf32, #tpu.memory_space<vmem>>) attributes {dimension_semantics = [#tpu.dimension_semantics<parallel>], iteration_bounds = array<i64: 1>, scalar_prefetch = 0 : i64, scratch_operands = 4 : i64, tpu.core_type = #tpu.core_type<tc>, window_params = [{transform_indices = @transform_0, window_bounds = array<i64: 7, 16, 512>}, {transform_indices = @transform_1, window_bounds = array<i64: 7, 16, 512>}, {pipeline_mode = #tpu.pipeline_mode<synchronous>, transform_indices = @transform_2, window_bounds = array<i64: 128, 512>}, {pipeline_mode = #tpu.pipeline_mode<synchronous>, transform_indices = @transform_3, window_bounds = array<i64: 128, 512>}, {transform_indices = @transform_4, window_bounds = array<i64: 7, 16, 128>}, {transform_indices = @transform_5, window_bounds = array<i64: 7, 16, 128>}]} {
    %cst = arith.constant 0.000000e+00 : f32
    %0 = vector.broadcast %cst : f32 to vector<16x128xf32>
    %c0 = arith.constant 0 : index
    %c0_0 = arith.constant 0 : index
    %1 = vector.load %arg7[%c0, %c0_0] : memref<16x128xf32, #tpu.memory_space<vmem>>, vector<16x128xf32>
    tpu.vector_store %arg7[%c0, %c0_0], %0 {strides = array<i32>} : memref<16x128xf32, #tpu.memory_space<vmem>>, vector<16x128xf32>,
    %cst_1 = arith.constant 0.000000e+00 : f32
    %2 = vector.broadcast %cst_1 : f32 to vector<16x128xf32>
    %c0_2 = arith.constant 0 : index
    %c0_3 = arith.constant 0 : index
    %3 = vector.load %arg8[%c0_2, %c0_3] : memref<16x128xf32, #tpu.memory_space<vmem>>, vector<16x128xf32>
    tpu.vector_store %arg8[%c0_2, %c0_3], %2 {strides = array<i32>} : memref<16x128xf32, #tpu.memory_space<vmem>>, vector<16x128xf32>,
    %cst_4 = arith.constant 0.000000e+00 : f32
    %4 = vector.broadcast %cst_4 : f32 to vector<16x128xf32>
    %c0_5 = arith.constant 0 : index
    %c0_6 = arith.constant 0 : index
    %5 = vector.load %arg9[%c0_5, %c0_6] : memref<16x128xf32, #tpu.memory_space<vmem>>, vector<16x128xf32>
    tpu.vector_store %arg9[%c0_5, %c0_6], %4 {strides = array<i32>} : memref<16x128xf32, #tpu.memory_space<vmem>>, vector<16x128xf32>,
    %cst_7 = arith.constant 0.000000e+00 : f32
    %6 = vector.broadcast %cst_7 : f32 to vector<16x128xf32>
    %c0_8 = arith.constant 0 : index
    %c0_9 = arith.constant 0 : index
    %7 = vector.load %arg10[%c0_8, %c0_9] : memref<16x128xf32, #tpu.memory_space<vmem>>, vector<16x128xf32>
    tpu.vector_store %arg10[%c0_8, %c0_9], %6 {strides = array<i32>} : memref<16x128xf32, #tpu.memory_space<vmem>>, vector<16x128xf32>,
    %c0_i32 = arith.constant 0 : i32
    %c7_i32 = arith.constant 7 : i32
    %8 = arith.addi %c0_i32, %c7_i32 : i32
    %c1_i32 = arith.constant 1 : i32
    scf.for %arg11 = %c0_i32 to %8 step %c1_i32  : i32 {
      %c1_i32_11 = arith.constant 1 : i32
      %9 = arith.muli %arg11, %c1_i32_11 : i32
      %c0_i32_12 = arith.constant 0 : i32
      %10 = arith.addi %c0_i32_12, %9 : i32
      %c6_i32 = arith.constant 6 : i32
      %11 = arith.subi %c6_i32, %10 : i32
      %12 = arith.index_cast %10 : i32 to index
      %c0_13 = arith.constant 0 : index
      %c0_14 = arith.constant 0 : index
      %13 = vector.load %arg1[%12, %c0_13, %c0_14] : memref<7x16x512xbf16, #tpu.memory_space<vmem>>, vector<1x16x512xbf16>
      %14 = vector.shape_cast %13 : vector<1x16x512xbf16> to vector<16x512xbf16>
      %c0_15 = arith.constant 0 : index
      %c0_16 = arith.constant 0 : index
      %15 = vector.load %arg7[%c0_15, %c0_16] : memref<16x128xf32, #tpu.memory_space<vmem>>, vector<16x128xf32>
      %c0_17 = arith.constant 0 : index
      %c0_18 = arith.constant 0 : index
      %16 = vector.load %arg8[%c0_17, %c0_18] : memref<16x128xf32, #tpu.memory_space<vmem>>, vector<16x128xf32>
      %17 = arith.extf %14 : vector<16x512xbf16> to vector<16x512xf32>
      %18 = arith.truncf %15 : vector<16x128xf32> to vector<16x128xbf16>
      %c0_19 = arith.constant 0 : index
      %c0_20 = arith.constant 0 : index
      %19 = vector.load %arg3[%c0_19, %c0_20] : memref<128x512xbf16, #tpu.memory_space<vmem>>, vector<128x512xbf16>
      %cst_21 = arith.constant dense<0.000000e+00> : vector<16x512xf32>
      %20 = tpu.matmul %18, %19, %cst_21 {dimension_numbers = #tpu.dot_dimension_numbers<[1], [0], [0], [1], [0, 0, 1, 1], [], []>} : vector<16x128xbf16>, vector<128x512xbf16>, vector<16x512xf32> -> vector<16x512xf32>
      %21 = arith.addf %17, %20 : vector<16x512xf32>
      %22 = vector.extract_strided_slice %21 {offsets = [0, 0], sizes = [16, 128], strides = [1, 1]} : vector<16x512xf32> to vector<16x128xf32>
      %23 = arith.negf %22 : vector<16x128xf32>
      %24 = math.exp %23 : vector<16x128xf32>
      %cst_22 = arith.constant 1.000000e+00 : f32
      %25 = vector.broadcast %cst_22 : f32 to vector<16x128xf32>
      %26 = arith.addf %25, %24 : vector<16x128xf32>
      %27 = arith.divf %25, %26 : vector<16x128xf32>
      %28 = vector.extract_strided_slice %21 {offsets = [0, 128], sizes = [16, 128], strides = [1, 1]} : vector<16x512xf32> to vector<16x128xf32>
      %29 = arith.negf %28 : vector<16x128xf32>
      %30 = math.exp %29 : vector<16x128xf32>
      %cst_23 = arith.constant 1.000000e+00 : f32
      %31 = vector.broadcast %cst_23 : f32 to vector<16x128xf32>
      %32 = arith.addf %31, %30 : vector<16x128xf32>
      %33 = arith.divf %31, %32 : vector<16x128xf32>
      %34 = vector.extract_strided_slice %21 {offsets = [0, 256], sizes = [16, 128], strides = [1, 1]} : vector<16x512xf32> to vector<16x128xf32>
      %35 = math.tanh %34 : vector<16x128xf32>
      %36 = vector.extract_strided_slice %21 {offsets = [0, 384], sizes = [16, 128], strides = [1, 1]} : vector<16x512xf32> to vector<16x128xf32>
      %37 = arith.negf %36 : vector<16x128xf32>
      %38 = math.exp %37 : vector<16x128xf32>
      %cst_24 = arith.constant 1.000000e+00 : f32
      %39 = vector.broadcast %cst_24 : f32 to vector<16x128xf32>
      %40 = arith.addf %39, %38 : vector<16x128xf32>
      %41 = arith.divf %39, %40 : vector<16x128xf32>
      %42 = arith.mulf %33, %16 : vector<16x128xf32>
      %43 = arith.mulf %27, %35 : vector<16x128xf32>
      %44 = arith.addf %42, %43 : vector<16x128xf32>
      %45 = math.tanh %44 : vector<16x128xf32>
      %46 = arith.mulf %41, %45 : vector<16x128xf32>
      %47 = arith.index_cast %11 : i32 to index
      %c0_25 = arith.constant 0 : index
      %c0_26 = arith.constant 0 : index
      %48 = vector.load %arg2[%47, %c0_25, %c0_26] : memref<7x16x512xbf16, #tpu.memory_space<vmem>>, vector<1x16x512xbf16>
      %49 = vector.shape_cast %48 : vector<1x16x512xbf16> to vector<16x512xbf16>
      %c0_27 = arith.constant 0 : index
      %c0_28 = arith.constant 0 : index
      %50 = vector.load %arg9[%c0_27, %c0_28] : memref<16x128xf32, #tpu.memory_space<vmem>>, vector<16x128xf32>
      %c0_29 = arith.constant 0 : index
      %c0_30 = arith.constant 0 : index
      %51 = vector.load %arg10[%c0_29, %c0_30] : memref<16x128xf32, #tpu.memory_space<vmem>>, vector<16x128xf32>
      %52 = arith.extf %49 : vector<16x512xbf16> to vector<16x512xf32>
      %53 = arith.truncf %50 : vector<16x128xf32> to vector<16x128xbf16>
      %c0_31 = arith.constant 0 : index
      %c0_32 = arith.constant 0 : index
      %54 = vector.load %arg4[%c0_31, %c0_32] : memref<128x512xbf16, #tpu.memory_space<vmem>>, vector<128x512xbf16>
      %cst_33 = arith.constant dense<0.000000e+00> : vector<16x512xf32>
      %55 = tpu.matmul %53, %54, %cst_33 {dimension_numbers = #tpu.dot_dimension_numbers<[1], [0], [0], [1], [0, 0, 1, 1], [], []>} : vector<16x128xbf16>, vector<128x512xbf16>, vector<16x512xf32> -> vector<16x512xf32>
      %56 = arith.addf %52, %55 : vector<16x512xf32>
      %57 = vector.extract_strided_slice %56 {offsets = [0, 0], sizes = [16, 128], strides = [1, 1]} : vector<16x512xf32> to vector<16x128xf32>
      %58 = arith.negf %57 : vector<16x128xf32>
      %59 = math.exp %58 : vector<16x128xf32>
      %cst_34 = arith.constant 1.000000e+00 : f32
      %60 = vector.broadcast %cst_34 : f32 to vector<16x128xf32>
      %61 = arith.addf %60, %59 : vector<16x128xf32>
      %62 = arith.divf %60, %61 : vector<16x128xf32>
      %63 = vector.extract_strided_slice %56 {offsets = [0, 128], sizes = [16, 128], strides = [1, 1]} : vector<16x512xf32> to vector<16x128xf32>
      %64 = arith.negf %63 : vector<16x128xf32>
      %65 = math.exp %64 : vector<16x128xf32>
      %cst_35 = arith.constant 1.000000e+00 : f32
      %66 = vector.broadcast %cst_35 : f32 to vector<16x128xf32>
      %67 = arith.addf %66, %65 : vector<16x128xf32>
      %68 = arith.divf %66, %67 : vector<16x128xf32>
      %69 = vector.extract_strided_slice %56 {offsets = [0, 256], sizes = [16, 128], strides = [1, 1]} : vector<16x512xf32> to vector<16x128xf32>
      %70 = math.tanh %69 : vector<16x128xf32>
      %71 = vector.extract_strided_slice %56 {offsets = [0, 384], sizes = [16, 128], strides = [1, 1]} : vector<16x512xf32> to vector<16x128xf32>
      %72 = arith.negf %71 : vector<16x128xf32>
      %73 = math.exp %72 : vector<16x128xf32>
      %cst_36 = arith.constant 1.000000e+00 : f32
      %74 = vector.broadcast %cst_36 : f32 to vector<16x128xf32>
      %75 = arith.addf %74, %73 : vector<16x128xf32>
      %76 = arith.divf %74, %75 : vector<16x128xf32>
      %77 = arith.mulf %68, %51 : vector<16x128xf32>
      %78 = arith.mulf %62, %70 : vector<16x128xf32>
      %79 = arith.addf %77, %78 : vector<16x128xf32>
      %80 = math.tanh %79 : vector<16x128xf32>
      %81 = arith.mulf %76, %80 : vector<16x128xf32>
      %c0_37 = arith.constant 0 : index
      %c0_38 = arith.constant 0 : index
      %82 = vector.load %arg7[%c0_37, %c0_38] : memref<16x128xf32, #tpu.memory_space<vmem>>, vector<16x128xf32>
      tpu.vector_store %arg7[%c0_37, %c0_38], %46 {strides = array<i32>} : memref<16x128xf32, #tpu.memory_space<vmem>>, vector<16x128xf32>,
      %c0_39 = arith.constant 0 : index
      %c0_40 = arith.constant 0 : index
      %83 = vector.load %arg8[%c0_39, %c0_40] : memref<16x128xf32, #tpu.memory_space<vmem>>, vector<16x128xf32>
      tpu.vector_store %arg8[%c0_39, %c0_40], %44 {strides = array<i32>} : memref<16x128xf32, #tpu.memory_space<vmem>>, vector<16x128xf32>,
      %c0_41 = arith.constant 0 : index
      %c0_42 = arith.constant 0 : index
      %84 = vector.load %arg9[%c0_41, %c0_42] : memref<16x128xf32, #tpu.memory_space<vmem>>, vector<16x128xf32>
      tpu.vector_store %arg9[%c0_41, %c0_42], %81 {strides = array<i32>} : memref<16x128xf32, #tpu.memory_space<vmem>>, vector<16x128xf32>,
      %c0_43 = arith.constant 0 : index
      %c0_44 = arith.constant 0 : index
      %85 = vector.load %arg10[%c0_43, %c0_44] : memref<16x128xf32, #tpu.memory_space<vmem>>, vector<16x128xf32>
      tpu.vector_store %arg10[%c0_43, %c0_44], %79 {strides = array<i32>} : memref<16x128xf32, #tpu.memory_space<vmem>>, vector<16x128xf32>,
      %86 = arith.truncf %46 : vector<16x128xf32> to vector<16x128xbf16>
      %87 = arith.index_cast %10 : i32 to index
      %c0_45 = arith.constant 0 : index
      %c0_46 = arith.constant 0 : index
      %88 = vector.load %arg5[%87, %c0_45, %c0_46] : memref<7x16x128xbf16, #tpu.memory_space<vmem>>, vector<1x16x128xbf16>
      %89 = vector.shape_cast %88 : vector<1x16x128xbf16> to vector<16x128xbf16>
      %90 = vector.shape_cast %86 : vector<16x128xbf16> to vector<1x16x128xbf16>
      tpu.vector_store %arg5[%87, %c0_45, %c0_46], %90 {strides = array<i32>} : memref<7x16x128xbf16, #tpu.memory_space<vmem>>, vector<1x16x128xbf16>,
      %91 = arith.truncf %81 : vector<16x128xf32> to vector<16x128xbf16>
      %92 = arith.index_cast %11 : i32 to index
      %c0_47 = arith.constant 0 : index
      %c0_48 = arith.constant 0 : index
      %93 = vector.load %arg6[%92, %c0_47, %c0_48] : memref<7x16x128xbf16, #tpu.memory_space<vmem>>, vector<1x16x128xbf16>
      %94 = vector.shape_cast %93 : vector<1x16x128xbf16> to vector<16x128xbf16>
      %95 = vector.shape_cast %91 : vector<16x128xbf16> to vector<1x16x128xbf16>
      tpu.vector_store %arg6[%92, %c0_47, %c0_48], %95 {strides = array<i32>} : memref<7x16x128xbf16, #tpu.memory_space<vmem>>, vector<1x16x128xbf16>,
    }
    %c7_i32_10 = arith.constant 7 : i32
    return
  }
  func.func @transform_0(%arg0: i32) -> (i32, i32, i32) {
    %c0_i32 = arith.constant 0 : i32
    %c0_i32_0 = arith.constant 0 : i32
    %c0_i32_1 = arith.constant 0 : i32
    return %c0_i32, %arg0, %c0_i32_0 : i32, i32, i32
  }
  func.func @transform_1(%arg0: i32) -> (i32, i32, i32) {
    %c0_i32 = arith.constant 0 : i32
    %c0_i32_0 = arith.constant 0 : i32
    %c0_i32_1 = arith.constant 0 : i32
    return %c0_i32, %arg0, %c0_i32_0 : i32, i32, i32
  }
  func.func @transform_2(%arg0: i32) -> (i32, i32) {
    %c0_i32 = arith.constant 0 : i32
    %c0_i32_0 = arith.constant 0 : i32
    %c0_i32_1 = arith.constant 0 : i32
    return %c0_i32, %c0_i32_0 : i32, i32
  }
  func.func @transform_3(%arg0: i32) -> (i32, i32) {
    %c0_i32 = arith.constant 0 : i32
    %c0_i32_0 = arith.constant 0 : i32
    %c0_i32_1 = arith.constant 0 : i32
    return %c0_i32, %c0_i32_0 : i32, i32
  }
  func.func @transform_4(%arg0: i32) -> (i32, i32, i32) {
    %c0_i32 = arith.constant 0 : i32
    %c0_i32_0 = arith.constant 0 : i32
    %c0_i32_1 = arith.constant 0 : i32
    return %c0_i32, %arg0, %c0_i32_0 : i32, i32, i32
  }
  func.func @transform_5(%arg0: i32) -> (i32, i32, i32) {
    %c0_i32 = arith.constant 0 : i32
    %c0_i32_0 = arith.constant 0 : i32
    %c0_i32_1 = arith.constant 0 : i32
    return %c0_i32, %arg0, %c0_i32_0 : i32, i32, i32
  }
}

module attributes {stable_mosaic.version = 11 : i64} {
  func.func @_linear_kernel(%arg0: i32, %arg1: memref<64x256xbf16, #tpu.memory_space<vmem>>, %arg2: memref<256x128xbf16, #tpu.memory_space<vmem>>, %arg3: memref<1x128xf32, #tpu.memory_space<vmem>>, %arg4: memref<64x128xf32, #tpu.memory_space<vmem>>) attributes {dimension_semantics = [#tpu.dimension_semantics<parallel>], iteration_bounds = array<i64: 2>, scalar_prefetch = 0 : i64, scratch_operands = 0 : i64, tpu.core_type = #tpu.core_type<tc>, window_params = [{transform_indices = @transform_0, window_bounds = array<i64: 64, 256>}, {pipeline_mode = #tpu.pipeline_mode<synchronous>, transform_indices = @transform_1, window_bounds = array<i64: 256, 128>}, {pipeline_mode = #tpu.pipeline_mode<synchronous>, transform_indices = @transform_2, window_bounds = array<i64: 1, 128>}, {transform_indices = @transform_3, window_bounds = array<i64: 64, 128>}]} {
    %c0 = arith.constant 0 : index
    %c0_0 = arith.constant 0 : index
    %0 = vector.load %arg1[%c0, %c0_0] : memref<64x256xbf16, #tpu.memory_space<vmem>>, vector<64x256xbf16>
    %c0_1 = arith.constant 0 : index
    %c0_2 = arith.constant 0 : index
    %1 = vector.load %arg2[%c0_1, %c0_2] : memref<256x128xbf16, #tpu.memory_space<vmem>>, vector<256x128xbf16>
    %cst = arith.constant dense<0.000000e+00> : vector<64x128xf32>
    %2 = tpu.matmul %0, %1, %cst {dimension_numbers = #tpu.dot_dimension_numbers<[1], [0], [0], [1], [0, 0, 1, 1], [], []>} : vector<64x256xbf16>, vector<256x128xbf16>, vector<64x128xf32> -> vector<64x128xf32>
    %c0_3 = arith.constant 0 : index
    %c0_4 = arith.constant 0 : index
    %3 = vector.load %arg3[%c0_3, %c0_4] : memref<1x128xf32, #tpu.memory_space<vmem>>, vector<1x128xf32>
    %4 = vector.broadcast %3 : vector<1x128xf32> to vector<64x128xf32>
    %5 = arith.addf %2, %4 : vector<64x128xf32>
    %c0_5 = arith.constant 0 : index
    %c0_6 = arith.constant 0 : index
    %6 = vector.load %arg4[%c0_5, %c0_6] : memref<64x128xf32, #tpu.memory_space<vmem>>, vector<64x128xf32>
    tpu.vector_store %arg4[%c0_5, %c0_6], %5 {strides = array<i32>} : memref<64x128xf32, #tpu.memory_space<vmem>>, vector<64x128xf32>,
    return
  }
  func.func @transform_0(%arg0: i32) -> (i32, i32) {
    %c0_i32 = arith.constant 0 : i32
    %c0_i32_0 = arith.constant 0 : i32
    return %arg0, %c0_i32 : i32, i32
  }
  func.func @transform_1(%arg0: i32) -> (i32, i32) {
    %c0_i32 = arith.constant 0 : i32
    %c0_i32_0 = arith.constant 0 : i32
    %c0_i32_1 = arith.constant 0 : i32
    return %c0_i32, %c0_i32_0 : i32, i32
  }
  func.func @transform_2(%arg0: i32) -> (i32, i32) {
    %c0_i32 = arith.constant 0 : i32
    %c0_i32_0 = arith.constant 0 : i32
    %c0_i32_1 = arith.constant 0 : i32
    return %c0_i32, %c0_i32_0 : i32, i32
  }
  func.func @transform_3(%arg0: i32) -> (i32, i32) {
    %c0_i32 = arith.constant 0 : i32
    %c0_i32_0 = arith.constant 0 : i32
    return %arg0, %c0_i32 : i32, i32
  }
}

module attributes {stable_mosaic.version = 11 : i64} {
  func.func @_linear_prelu_kernel(%arg0: i32, %arg1: memref<64x8xbf16, #tpu.memory_space<vmem>>, %arg2: memref<8x128xbf16, #tpu.memory_space<vmem>>, %arg3: memref<1x128xf32, #tpu.memory_space<vmem>>, %arg4: memref<1x128xf32, #tpu.memory_space<vmem>>, %arg5: memref<64x128xbf16, #tpu.memory_space<vmem>>) attributes {dimension_semantics = [#tpu.dimension_semantics<parallel>], iteration_bounds = array<i64: 2>, scalar_prefetch = 0 : i64, scratch_operands = 0 : i64, tpu.core_type = #tpu.core_type<tc>, window_params = [{transform_indices = @transform_0, window_bounds = array<i64: 64, 8>}, {pipeline_mode = #tpu.pipeline_mode<synchronous>, transform_indices = @transform_1, window_bounds = array<i64: 8, 128>}, {pipeline_mode = #tpu.pipeline_mode<synchronous>, transform_indices = @transform_2, window_bounds = array<i64: 1, 128>}, {pipeline_mode = #tpu.pipeline_mode<synchronous>, transform_indices = @transform_3, window_bounds = array<i64: 1, 128>}, {transform_indices = @transform_4, window_bounds = array<i64: 64, 128>}]} {
    %c0 = arith.constant 0 : index
    %c0_0 = arith.constant 0 : index
    %0 = vector.load %arg1[%c0, %c0_0] : memref<64x8xbf16, #tpu.memory_space<vmem>>, vector<64x8xbf16>
    %c0_1 = arith.constant 0 : index
    %c0_2 = arith.constant 0 : index
    %1 = vector.load %arg2[%c0_1, %c0_2] : memref<8x128xbf16, #tpu.memory_space<vmem>>, vector<8x128xbf16>
    %cst = arith.constant dense<0.000000e+00> : vector<64x128xf32>
    %2 = tpu.matmul %0, %1, %cst {dimension_numbers = #tpu.dot_dimension_numbers<[1], [0], [0], [1], [0, 0, 1, 1], [], []>} : vector<64x8xbf16>, vector<8x128xbf16>, vector<64x128xf32> -> vector<64x128xf32>
    %c0_3 = arith.constant 0 : index
    %c0_4 = arith.constant 0 : index
    %3 = vector.load %arg3[%c0_3, %c0_4] : memref<1x128xf32, #tpu.memory_space<vmem>>, vector<1x128xf32>
    %4 = vector.broadcast %3 : vector<1x128xf32> to vector<64x128xf32>
    %5 = arith.addf %2, %4 : vector<64x128xf32>
    %cst_5 = arith.constant 0.000000e+00 : f32
    %6 = vector.broadcast %cst_5 : f32 to vector<64x128xf32>
    %7 = arith.cmpf oge, %5, %6 : vector<64x128xf32>
    %c0_6 = arith.constant 0 : index
    %c0_7 = arith.constant 0 : index
    %8 = vector.load %arg4[%c0_6, %c0_7] : memref<1x128xf32, #tpu.memory_space<vmem>>, vector<1x128xf32>
    %9 = vector.broadcast %8 : vector<1x128xf32> to vector<64x128xf32>
    %10 = arith.mulf %9, %5 : vector<64x128xf32>
    %11 = arith.select %7, %5, %10 : vector<64x128xi1>, vector<64x128xf32>
    %12 = arith.truncf %11 : vector<64x128xf32> to vector<64x128xbf16>
    %c0_8 = arith.constant 0 : index
    %c0_9 = arith.constant 0 : index
    %13 = vector.load %arg5[%c0_8, %c0_9] : memref<64x128xbf16, #tpu.memory_space<vmem>>, vector<64x128xbf16>
    tpu.vector_store %arg5[%c0_8, %c0_9], %12 {strides = array<i32>} : memref<64x128xbf16, #tpu.memory_space<vmem>>, vector<64x128xbf16>,
    return
  }
  func.func @transform_0(%arg0: i32) -> (i32, i32) {
    %c0_i32 = arith.constant 0 : i32
    %c0_i32_0 = arith.constant 0 : i32
    return %arg0, %c0_i32 : i32, i32
  }
  func.func @transform_1(%arg0: i32) -> (i32, i32) {
    %c0_i32 = arith.constant 0 : i32
    %c0_i32_0 = arith.constant 0 : i32
    %c0_i32_1 = arith.constant 0 : i32
    return %c0_i32, %c0_i32_0 : i32, i32
  }
  func.func @transform_2(%arg0: i32) -> (i32, i32) {
    %c0_i32 = arith.constant 0 : i32
    %c0_i32_0 = arith.constant 0 : i32
    %c0_i32_1 = arith.constant 0 : i32
    return %c0_i32, %c0_i32_0 : i32, i32
  }
  func.func @transform_3(%arg0: i32) -> (i32, i32) {
    %c0_i32 = arith.constant 0 : i32
    %c0_i32_0 = arith.constant 0 : i32
    %c0_i32_1 = arith.constant 0 : i32
    return %c0_i32, %c0_i32_0 : i32, i32
  }
  func.func @transform_4(%arg0: i32) -> (i32, i32) {
    %c0_i32 = arith.constant 0 : i32
    %c0_i32_0 = arith.constant 0 : i32
    return %arg0, %c0_i32 : i32, i32
  }
}

module attributes {stable_mosaic.version = 11 : i64} {
  func.func @_ln_group_kernel(%arg0: i32, %arg1: i32, %arg2: memref<1x16x32xbf16, #tpu.memory_space<vmem>>, %arg3: memref<1x1x32xf32, #tpu.memory_space<vmem>>, %arg4: memref<1x1x32xf32, #tpu.memory_space<vmem>>, %arg5: memref<1x16x32xbf16, #tpu.memory_space<vmem>>) attributes {dimension_semantics = [#tpu.dimension_semantics<parallel>, #tpu.dimension_semantics<parallel>], iteration_bounds = array<i64: 4, 1>, scalar_prefetch = 0 : i64, scratch_operands = 0 : i64, tpu.core_type = #tpu.core_type<tc>, window_params = [{transform_indices = @transform_0, window_bounds = array<i64: 1, 16, 32>}, {transform_indices = @transform_1, window_bounds = array<i64: 1, 1, 32>}, {transform_indices = @transform_2, window_bounds = array<i64: 1, 1, 32>}, {transform_indices = @transform_3, window_bounds = array<i64: 1, 16, 32>}]} {
    %c0 = arith.constant 0 : index
    %c0_0 = arith.constant 0 : index
    %c0_1 = arith.constant 0 : index
    %0 = vector.load %arg2[%c0, %c0_0, %c0_1] : memref<1x16x32xbf16, #tpu.memory_space<vmem>>, vector<1x16x32xbf16>
    %1 = vector.shape_cast %0 : vector<1x16x32xbf16> to vector<16x32xbf16>
    %2 = arith.extf %1 : vector<16x32xbf16> to vector<16x32xf32>
    %cst = arith.constant dense<0.000000e+00> : vector<16xf32>
    %3 = vector.multi_reduction <add>, %2, %cst [1] : vector<16x32xf32> to vector<16xf32>
    %4 = vector.shape_cast %3 : vector<16xf32> to vector<16x1xf32>
    %cst_2 = arith.constant 3.200000e+01 : f32
    %5 = vector.broadcast %cst_2 : f32 to vector<16x1xf32>
    %6 = arith.divf %4, %5 : vector<16x1xf32>
    %7 = vector.broadcast %6 : vector<16x1xf32> to vector<16x32xf32>
    %8 = arith.subf %2, %7 : vector<16x32xf32>
    %9 = vector.broadcast %6 : vector<16x1xf32> to vector<16x32xf32>
    %10 = arith.subf %2, %9 : vector<16x32xf32>
    %11 = arith.mulf %8, %10 : vector<16x32xf32>
    %cst_3 = arith.constant dense<0.000000e+00> : vector<16xf32>
    %12 = vector.multi_reduction <add>, %11, %cst_3 [1] : vector<16x32xf32> to vector<16xf32>
    %13 = vector.shape_cast %12 : vector<16xf32> to vector<16x1xf32>
    %cst_4 = arith.constant 3.200000e+01 : f32
    %14 = vector.broadcast %cst_4 : f32 to vector<16x1xf32>
    %15 = arith.divf %13, %14 : vector<16x1xf32>
    %cst_5 = arith.constant 9.99999974E-6 : f32
    %16 = vector.broadcast %cst_5 : f32 to vector<16x1xf32>
    %17 = arith.addf %15, %16 : vector<16x1xf32>
    %18 = math.rsqrt %17 : vector<16x1xf32>
    %19 = vector.broadcast %6 : vector<16x1xf32> to vector<16x32xf32>
    %20 = arith.subf %2, %19 : vector<16x32xf32>
    %21 = vector.broadcast %18 : vector<16x1xf32> to vector<16x32xf32>
    %22 = arith.mulf %20, %21 : vector<16x32xf32>
    %c0_6 = arith.constant 0 : index
    %c0_7 = arith.constant 0 : index
    %c0_8 = arith.constant 0 : index
    %23 = vector.load %arg3[%c0_6, %c0_7, %c0_8] : memref<1x1x32xf32, #tpu.memory_space<vmem>>, vector<1x1x32xf32>
    %24 = vector.shape_cast %23 : vector<1x1x32xf32> to vector<1x32xf32>
    %25 = vector.broadcast %24 : vector<1x32xf32> to vector<16x32xf32>
    %26 = arith.mulf %22, %25 : vector<16x32xf32>
    %c0_9 = arith.constant 0 : index
    %c0_10 = arith.constant 0 : index
    %c0_11 = arith.constant 0 : index
    %27 = vector.load %arg4[%c0_9, %c0_10, %c0_11] : memref<1x1x32xf32, #tpu.memory_space<vmem>>, vector<1x1x32xf32>
    %28 = vector.shape_cast %27 : vector<1x1x32xf32> to vector<1x32xf32>
    %29 = vector.broadcast %28 : vector<1x32xf32> to vector<16x32xf32>
    %30 = arith.addf %26, %29 : vector<16x32xf32>
    %31 = arith.truncf %30 : vector<16x32xf32> to vector<16x32xbf16>
    %c0_12 = arith.constant 0 : index
    %c0_13 = arith.constant 0 : index
    %c0_14 = arith.constant 0 : index
    %32 = vector.load %arg5[%c0_12, %c0_13, %c0_14] : memref<1x16x32xbf16, #tpu.memory_space<vmem>>, vector<1x16x32xbf16>
    %33 = vector.shape_cast %32 : vector<1x16x32xbf16> to vector<16x32xbf16>
    %34 = vector.shape_cast %31 : vector<16x32xbf16> to vector<1x16x32xbf16>
    tpu.vector_store %arg5[%c0_12, %c0_13, %c0_14], %34 {strides = array<i32>} : memref<1x16x32xbf16, #tpu.memory_space<vmem>>, vector<1x16x32xbf16>,
    return
  }
  func.func @transform_0(%arg0: i32, %arg1: i32) -> (i32, i32, i32) {
    %c0_i32 = arith.constant 0 : i32
    %c0_i32_0 = arith.constant 0 : i32
    return %arg0, %arg1, %c0_i32 : i32, i32, i32
  }
  func.func @transform_1(%arg0: i32, %arg1: i32) -> (i32, i32, i32) {
    %c0_i32 = arith.constant 0 : i32
    %c0_i32_0 = arith.constant 0 : i32
    %c0_i32_1 = arith.constant 0 : i32
    return %arg0, %c0_i32, %c0_i32_0 : i32, i32, i32
  }
  func.func @transform_2(%arg0: i32, %arg1: i32) -> (i32, i32, i32) {
    %c0_i32 = arith.constant 0 : i32
    %c0_i32_0 = arith.constant 0 : i32
    %c0_i32_1 = arith.constant 0 : i32
    return %arg0, %c0_i32, %c0_i32_0 : i32, i32, i32
  }
  func.func @transform_3(%arg0: i32, %arg1: i32) -> (i32, i32, i32) {
    %c0_i32 = arith.constant 0 : i32
    %c0_i32_0 = arith.constant 0 : i32
    return %arg0, %arg1, %c0_i32 : i32, i32, i32
  }
}

module attributes {stable_mosaic.version = 11 : i64} {
  func.func @_ln_group_kernel(%arg0: i32, %arg1: i32, %arg2: memref<1x16x16xbf16, #tpu.memory_space<vmem>>, %arg3: memref<1x1x16xf32, #tpu.memory_space<vmem>>, %arg4: memref<1x1x16xf32, #tpu.memory_space<vmem>>, %arg5: memref<1x16x16xbf16, #tpu.memory_space<vmem>>) attributes {dimension_semantics = [#tpu.dimension_semantics<parallel>, #tpu.dimension_semantics<parallel>], iteration_bounds = array<i64: 4, 1>, scalar_prefetch = 0 : i64, scratch_operands = 0 : i64, tpu.core_type = #tpu.core_type<tc>, window_params = [{transform_indices = @transform_0, window_bounds = array<i64: 1, 16, 16>}, {transform_indices = @transform_1, window_bounds = array<i64: 1, 1, 16>}, {transform_indices = @transform_2, window_bounds = array<i64: 1, 1, 16>}, {transform_indices = @transform_3, window_bounds = array<i64: 1, 16, 16>}]} {
    %c0 = arith.constant 0 : index
    %c0_0 = arith.constant 0 : index
    %c0_1 = arith.constant 0 : index
    %0 = vector.load %arg2[%c0, %c0_0, %c0_1] : memref<1x16x16xbf16, #tpu.memory_space<vmem>>, vector<1x16x16xbf16>
    %1 = vector.shape_cast %0 : vector<1x16x16xbf16> to vector<16x16xbf16>
    %2 = arith.extf %1 : vector<16x16xbf16> to vector<16x16xf32>
    %cst = arith.constant dense<0.000000e+00> : vector<16xf32>
    %3 = vector.multi_reduction <add>, %2, %cst [1] : vector<16x16xf32> to vector<16xf32>
    %4 = vector.shape_cast %3 : vector<16xf32> to vector<16x1xf32>
    %cst_2 = arith.constant 1.600000e+01 : f32
    %5 = vector.broadcast %cst_2 : f32 to vector<16x1xf32>
    %6 = arith.divf %4, %5 : vector<16x1xf32>
    %7 = vector.broadcast %6 : vector<16x1xf32> to vector<16x16xf32>
    %8 = arith.subf %2, %7 : vector<16x16xf32>
    %9 = vector.broadcast %6 : vector<16x1xf32> to vector<16x16xf32>
    %10 = arith.subf %2, %9 : vector<16x16xf32>
    %11 = arith.mulf %8, %10 : vector<16x16xf32>
    %cst_3 = arith.constant dense<0.000000e+00> : vector<16xf32>
    %12 = vector.multi_reduction <add>, %11, %cst_3 [1] : vector<16x16xf32> to vector<16xf32>
    %13 = vector.shape_cast %12 : vector<16xf32> to vector<16x1xf32>
    %cst_4 = arith.constant 1.600000e+01 : f32
    %14 = vector.broadcast %cst_4 : f32 to vector<16x1xf32>
    %15 = arith.divf %13, %14 : vector<16x1xf32>
    %cst_5 = arith.constant 9.99999974E-6 : f32
    %16 = vector.broadcast %cst_5 : f32 to vector<16x1xf32>
    %17 = arith.addf %15, %16 : vector<16x1xf32>
    %18 = math.rsqrt %17 : vector<16x1xf32>
    %19 = vector.broadcast %6 : vector<16x1xf32> to vector<16x16xf32>
    %20 = arith.subf %2, %19 : vector<16x16xf32>
    %21 = vector.broadcast %18 : vector<16x1xf32> to vector<16x16xf32>
    %22 = arith.mulf %20, %21 : vector<16x16xf32>
    %c0_6 = arith.constant 0 : index
    %c0_7 = arith.constant 0 : index
    %c0_8 = arith.constant 0 : index
    %23 = vector.load %arg3[%c0_6, %c0_7, %c0_8] : memref<1x1x16xf32, #tpu.memory_space<vmem>>, vector<1x1x16xf32>
    %24 = vector.shape_cast %23 : vector<1x1x16xf32> to vector<1x16xf32>
    %25 = vector.broadcast %24 : vector<1x16xf32> to vector<16x16xf32>
    %26 = arith.mulf %22, %25 : vector<16x16xf32>
    %c0_9 = arith.constant 0 : index
    %c0_10 = arith.constant 0 : index
    %c0_11 = arith.constant 0 : index
    %27 = vector.load %arg4[%c0_9, %c0_10, %c0_11] : memref<1x1x16xf32, #tpu.memory_space<vmem>>, vector<1x1x16xf32>
    %28 = vector.shape_cast %27 : vector<1x1x16xf32> to vector<1x16xf32>
    %29 = vector.broadcast %28 : vector<1x16xf32> to vector<16x16xf32>
    %30 = arith.addf %26, %29 : vector<16x16xf32>
    %31 = arith.truncf %30 : vector<16x16xf32> to vector<16x16xbf16>
    %c0_12 = arith.constant 0 : index
    %c0_13 = arith.constant 0 : index
    %c0_14 = arith.constant 0 : index
    %32 = vector.load %arg5[%c0_12, %c0_13, %c0_14] : memref<1x16x16xbf16, #tpu.memory_space<vmem>>, vector<1x16x16xbf16>
    %33 = vector.shape_cast %32 : vector<1x16x16xbf16> to vector<16x16xbf16>
    %34 = vector.shape_cast %31 : vector<16x16xbf16> to vector<1x16x16xbf16>
    tpu.vector_store %arg5[%c0_12, %c0_13, %c0_14], %34 {strides = array<i32>} : memref<1x16x16xbf16, #tpu.memory_space<vmem>>, vector<1x16x16xbf16>,
    return
  }
  func.func @transform_0(%arg0: i32, %arg1: i32) -> (i32, i32, i32) {
    %c0_i32 = arith.constant 0 : i32
    %c0_i32_0 = arith.constant 0 : i32
    return %arg0, %arg1, %c0_i32 : i32, i32, i32
  }
  func.func @transform_1(%arg0: i32, %arg1: i32) -> (i32, i32, i32) {
    %c0_i32 = arith.constant 0 : i32
    %c0_i32_0 = arith.constant 0 : i32
    %c0_i32_1 = arith.constant 0 : i32
    return %arg0, %c0_i32, %c0_i32_0 : i32, i32, i32
  }
  func.func @transform_2(%arg0: i32, %arg1: i32) -> (i32, i32, i32) {
    %c0_i32 = arith.constant 0 : i32
    %c0_i32_0 = arith.constant 0 : i32
    %c0_i32_1 = arith.constant 0 : i32
    return %arg0, %c0_i32, %c0_i32_0 : i32, i32, i32
  }
  func.func @transform_3(%arg0: i32, %arg1: i32) -> (i32, i32, i32) {
    %c0_i32 = arith.constant 0 : i32
    %c0_i32_0 = arith.constant 0 : i32
    return %arg0, %arg1, %c0_i32 : i32, i32, i32
  }
}

module attributes {stable_mosaic.version = 11 : i64} {
  func.func @_attn_kernel(%arg0: i32, %arg1: memref<4x8x128xbf16, #tpu.memory_space<vmem>>, %arg2: memref<4x8x128xbf16, #tpu.memory_space<vmem>>, %arg3: memref<4x8x128xbf16, #tpu.memory_space<vmem>>, %arg4: memref<4x8x128xbf16, #tpu.memory_space<vmem>>) attributes {dimension_semantics = [#tpu.dimension_semantics<parallel>], iteration_bounds = array<i64: 2>, scalar_prefetch = 0 : i64, scratch_operands = 0 : i64, tpu.core_type = #tpu.core_type<tc>, window_params = [{transform_indices = @transform_0, window_bounds = array<i64: 4, 8, 128>}, {transform_indices = @transform_1, window_bounds = array<i64: 4, 8, 128>}, {transform_indices = @transform_2, window_bounds = array<i64: 4, 8, 128>}, {transform_indices = @transform_3, window_bounds = array<i64: 4, 8, 128>}]} {
    %c0 = arith.constant 0 : index
    %c0_0 = arith.constant 0 : index
    %c0_1 = arith.constant 0 : index
    %0 = vector.load %arg1[%c0, %c0_0, %c0_1] : memref<4x8x128xbf16, #tpu.memory_space<vmem>>, vector<4x8x128xbf16>
    %c0_2 = arith.constant 0 : index
    %c0_3 = arith.constant 0 : index
    %c0_4 = arith.constant 0 : index
    %1 = vector.load %arg2[%c0_2, %c0_3, %c0_4] : memref<4x8x128xbf16, #tpu.memory_space<vmem>>, vector<4x8x128xbf16>
    %c0_5 = arith.constant 0 : index
    %c0_6 = arith.constant 0 : index
    %c0_7 = arith.constant 0 : index
    %2 = vector.load %arg3[%c0_5, %c0_6, %c0_7] : memref<4x8x128xbf16, #tpu.memory_space<vmem>>, vector<4x8x128xbf16>
    "tpu.trace_start"() <{level = 10 : i32, message = "gqd,gkd->gqk"}> : () -> ()
    %cst = arith.constant dense<0.000000e+00> : vector<4x8x8xf32>
    %3 = tpu.matmul %0, %1, %cst {dimension_numbers = #tpu.dot_dimension_numbers<[2], [2], [1], [1], [0, 0, 0, 1, 1, 1], [0], [0]>} : vector<4x8x128xbf16>, vector<4x8x128xbf16>, vector<4x8x8xf32> -> vector<4x8x8xf32>
    "tpu.trace_stop"() : () -> ()
    %cst_8 = arith.constant 0.176776692 : f32
    %4 = vector.broadcast %cst_8 : f32 to vector<4x8x8xf32>
    %5 = arith.mulf %3, %4 : vector<4x8x8xf32>
    %cst_9 = arith.constant dense<0xFF800000> : vector<4x8xf32>
    %6 = vector.multi_reduction <maximumf>, %5, %cst_9 [2] : vector<4x8x8xf32> to vector<4x8xf32>
    %7 = vector.shape_cast %6 : vector<4x8xf32> to vector<4x8x1xf32>
    %8 = vector.broadcast %7 : vector<4x8x1xf32> to vector<4x8x8xf32>
    %9 = arith.subf %5, %8 : vector<4x8x8xf32>
    %10 = math.exp %9 : vector<4x8x8xf32>
    %cst_10 = arith.constant dense<0.000000e+00> : vector<4x8xf32>
    %11 = vector.multi_reduction <add>, %10, %cst_10 [2] : vector<4x8x8xf32> to vector<4x8xf32>
    %12 = vector.shape_cast %11 : vector<4x8xf32> to vector<4x8x1xf32>
    %13 = tpu.reciprocal %12 {approx = true} : vector<4x8x1xf32> -> vector<4x8x1xf32>
    %14 = vector.broadcast %13 : vector<4x8x1xf32> to vector<4x8x8xf32>
    %15 = arith.mulf %10, %14 : vector<4x8x8xf32>
    %16 = arith.truncf %15 : vector<4x8x8xf32> to vector<4x8x8xbf16>
    "tpu.trace_start"() <{level = 10 : i32, message = "gqk,gkd->gqd"}> : () -> ()
    %cst_11 = arith.constant dense<0.000000e+00> : vector<4x8x128xf32>
    %17 = tpu.matmul %16, %2, %cst_11 {dimension_numbers = #tpu.dot_dimension_numbers<[2], [1], [1], [2], [0, 0, 0, 1, 1, 2], [0], [0]>} : vector<4x8x8xbf16>, vector<4x8x128xbf16>, vector<4x8x128xf32> -> vector<4x8x128xf32>
    "tpu.trace_stop"() : () -> ()
    %18 = arith.truncf %17 : vector<4x8x128xf32> to vector<4x8x128xbf16>
    %c0_12 = arith.constant 0 : index
    %c0_13 = arith.constant 0 : index
    %c0_14 = arith.constant 0 : index
    %19 = vector.load %arg4[%c0_12, %c0_13, %c0_14] : memref<4x8x128xbf16, #tpu.memory_space<vmem>>, vector<4x8x128xbf16>
    tpu.vector_store %arg4[%c0_12, %c0_13, %c0_14], %18 {strides = array<i32>} : memref<4x8x128xbf16, #tpu.memory_space<vmem>>, vector<4x8x128xbf16>,
    return
  }
  func.func @transform_0(%arg0: i32) -> (i32, i32, i32) {
    %c0_i32 = arith.constant 0 : i32
    %c0_i32_0 = arith.constant 0 : i32
    %c0_i32_1 = arith.constant 0 : i32
    return %arg0, %c0_i32, %c0_i32_0 : i32, i32, i32
  }
  func.func @transform_1(%arg0: i32) -> (i32, i32, i32) {
    %c0_i32 = arith.constant 0 : i32
    %c0_i32_0 = arith.constant 0 : i32
    %c0_i32_1 = arith.constant 0 : i32
    return %arg0, %c0_i32, %c0_i32_0 : i32, i32, i32
  }
  func.func @transform_2(%arg0: i32) -> (i32, i32, i32) {
    %c0_i32 = arith.constant 0 : i32
    %c0_i32_0 = arith.constant 0 : i32
    %c0_i32_1 = arith.constant 0 : i32
    return %arg0, %c0_i32, %c0_i32_0 : i32, i32, i32
  }
  func.func @transform_3(%arg0: i32) -> (i32, i32, i32) {
    %c0_i32 = arith.constant 0 : i32
    %c0_i32_0 = arith.constant 0 : i32
    %c0_i32_1 = arith.constant 0 : i32
    return %arg0, %c0_i32, %c0_i32_0 : i32, i32, i32
  }
}

module attributes {stable_mosaic.version = 11 : i64} {
  func.func @_linear_prelu_kernel(%arg0: i32, %arg1: memref<64x8xbf16, #tpu.memory_space<vmem>>, %arg2: memref<8x128xbf16, #tpu.memory_space<vmem>>, %arg3: memref<1x128xf32, #tpu.memory_space<vmem>>, %arg4: memref<1x128xf32, #tpu.memory_space<vmem>>, %arg5: memref<64x128xf32, #tpu.memory_space<vmem>>) attributes {dimension_semantics = [#tpu.dimension_semantics<parallel>], iteration_bounds = array<i64: 2>, scalar_prefetch = 0 : i64, scratch_operands = 0 : i64, tpu.core_type = #tpu.core_type<tc>, window_params = [{transform_indices = @transform_0, window_bounds = array<i64: 64, 8>}, {pipeline_mode = #tpu.pipeline_mode<synchronous>, transform_indices = @transform_1, window_bounds = array<i64: 8, 128>}, {pipeline_mode = #tpu.pipeline_mode<synchronous>, transform_indices = @transform_2, window_bounds = array<i64: 1, 128>}, {pipeline_mode = #tpu.pipeline_mode<synchronous>, transform_indices = @transform_3, window_bounds = array<i64: 1, 128>}, {transform_indices = @transform_4, window_bounds = array<i64: 64, 128>}]} {
    %c0 = arith.constant 0 : index
    %c0_0 = arith.constant 0 : index
    %0 = vector.load %arg1[%c0, %c0_0] : memref<64x8xbf16, #tpu.memory_space<vmem>>, vector<64x8xbf16>
    %c0_1 = arith.constant 0 : index
    %c0_2 = arith.constant 0 : index
    %1 = vector.load %arg2[%c0_1, %c0_2] : memref<8x128xbf16, #tpu.memory_space<vmem>>, vector<8x128xbf16>
    %cst = arith.constant dense<0.000000e+00> : vector<64x128xf32>
    %2 = tpu.matmul %0, %1, %cst {dimension_numbers = #tpu.dot_dimension_numbers<[1], [0], [0], [1], [0, 0, 1, 1], [], []>} : vector<64x8xbf16>, vector<8x128xbf16>, vector<64x128xf32> -> vector<64x128xf32>
    %c0_3 = arith.constant 0 : index
    %c0_4 = arith.constant 0 : index
    %3 = vector.load %arg3[%c0_3, %c0_4] : memref<1x128xf32, #tpu.memory_space<vmem>>, vector<1x128xf32>
    %4 = vector.broadcast %3 : vector<1x128xf32> to vector<64x128xf32>
    %5 = arith.addf %2, %4 : vector<64x128xf32>
    %cst_5 = arith.constant 0.000000e+00 : f32
    %6 = vector.broadcast %cst_5 : f32 to vector<64x128xf32>
    %7 = arith.cmpf oge, %5, %6 : vector<64x128xf32>
    %c0_6 = arith.constant 0 : index
    %c0_7 = arith.constant 0 : index
    %8 = vector.load %arg4[%c0_6, %c0_7] : memref<1x128xf32, #tpu.memory_space<vmem>>, vector<1x128xf32>
    %9 = vector.broadcast %8 : vector<1x128xf32> to vector<64x128xf32>
    %10 = arith.mulf %9, %5 : vector<64x128xf32>
    %11 = arith.select %7, %5, %10 : vector<64x128xi1>, vector<64x128xf32>
    %c0_8 = arith.constant 0 : index
    %c0_9 = arith.constant 0 : index
    %12 = vector.load %arg5[%c0_8, %c0_9] : memref<64x128xf32, #tpu.memory_space<vmem>>, vector<64x128xf32>
    tpu.vector_store %arg5[%c0_8, %c0_9], %11 {strides = array<i32>} : memref<64x128xf32, #tpu.memory_space<vmem>>, vector<64x128xf32>,
    return
  }
  func.func @transform_0(%arg0: i32) -> (i32, i32) {
    %c0_i32 = arith.constant 0 : i32
    %c0_i32_0 = arith.constant 0 : i32
    return %arg0, %c0_i32 : i32, i32
  }
  func.func @transform_1(%arg0: i32) -> (i32, i32) {
    %c0_i32 = arith.constant 0 : i32
    %c0_i32_0 = arith.constant 0 : i32
    %c0_i32_1 = arith.constant 0 : i32
    return %c0_i32, %c0_i32_0 : i32, i32
  }
  func.func @transform_2(%arg0: i32) -> (i32, i32) {
    %c0_i32 = arith.constant 0 : i32
    %c0_i32_0 = arith.constant 0 : i32
    %c0_i32_1 = arith.constant 0 : i32
    return %c0_i32, %c0_i32_0 : i32, i32
  }
  func.func @transform_3(%arg0: i32) -> (i32, i32) {
    %c0_i32 = arith.constant 0 : i32
    %c0_i32_0 = arith.constant 0 : i32
    %c0_i32_1 = arith.constant 0 : i32
    return %c0_i32, %c0_i32_0 : i32, i32
  }
  func.func @transform_4(%arg0: i32) -> (i32, i32) {
    %c0_i32 = arith.constant 0 : i32
    %c0_i32_0 = arith.constant 0 : i32
    return %arg0, %c0_i32 : i32, i32
  }
}

module attributes {stable_mosaic.version = 11 : i64} {
  func.func @_ln_group_kernel(%arg0: i32, %arg1: i32, %arg2: memref<1x16x64xf32, #tpu.memory_space<vmem>>, %arg3: memref<1x1x64xf32, #tpu.memory_space<vmem>>, %arg4: memref<1x1x64xf32, #tpu.memory_space<vmem>>, %arg5: memref<1x16x64xf32, #tpu.memory_space<vmem>>) attributes {dimension_semantics = [#tpu.dimension_semantics<parallel>, #tpu.dimension_semantics<parallel>], iteration_bounds = array<i64: 1, 1>, scalar_prefetch = 0 : i64, scratch_operands = 0 : i64, tpu.core_type = #tpu.core_type<tc>, window_params = [{transform_indices = @transform_0, window_bounds = array<i64: 1, 16, 64>}, {transform_indices = @transform_1, window_bounds = array<i64: 1, 1, 64>}, {transform_indices = @transform_2, window_bounds = array<i64: 1, 1, 64>}, {transform_indices = @transform_3, window_bounds = array<i64: 1, 16, 64>}]} {
    %c0 = arith.constant 0 : index
    %c0_0 = arith.constant 0 : index
    %c0_1 = arith.constant 0 : index
    %0 = vector.load %arg2[%c0, %c0_0, %c0_1] : memref<1x16x64xf32, #tpu.memory_space<vmem>>, vector<1x16x64xf32>
    %1 = vector.shape_cast %0 : vector<1x16x64xf32> to vector<16x64xf32>
    %cst = arith.constant dense<0.000000e+00> : vector<16xf32>
    %2 = vector.multi_reduction <add>, %1, %cst [1] : vector<16x64xf32> to vector<16xf32>
    %3 = vector.shape_cast %2 : vector<16xf32> to vector<16x1xf32>
    %cst_2 = arith.constant 6.400000e+01 : f32
    %4 = vector.broadcast %cst_2 : f32 to vector<16x1xf32>
    %5 = arith.divf %3, %4 : vector<16x1xf32>
    %6 = vector.broadcast %5 : vector<16x1xf32> to vector<16x64xf32>
    %7 = arith.subf %1, %6 : vector<16x64xf32>
    %8 = vector.broadcast %5 : vector<16x1xf32> to vector<16x64xf32>
    %9 = arith.subf %1, %8 : vector<16x64xf32>
    %10 = arith.mulf %7, %9 : vector<16x64xf32>
    %cst_3 = arith.constant dense<0.000000e+00> : vector<16xf32>
    %11 = vector.multi_reduction <add>, %10, %cst_3 [1] : vector<16x64xf32> to vector<16xf32>
    %12 = vector.shape_cast %11 : vector<16xf32> to vector<16x1xf32>
    %cst_4 = arith.constant 6.400000e+01 : f32
    %13 = vector.broadcast %cst_4 : f32 to vector<16x1xf32>
    %14 = arith.divf %12, %13 : vector<16x1xf32>
    %cst_5 = arith.constant 9.99999974E-6 : f32
    %15 = vector.broadcast %cst_5 : f32 to vector<16x1xf32>
    %16 = arith.addf %14, %15 : vector<16x1xf32>
    %17 = math.rsqrt %16 : vector<16x1xf32>
    %18 = vector.broadcast %5 : vector<16x1xf32> to vector<16x64xf32>
    %19 = arith.subf %1, %18 : vector<16x64xf32>
    %20 = vector.broadcast %17 : vector<16x1xf32> to vector<16x64xf32>
    %21 = arith.mulf %19, %20 : vector<16x64xf32>
    %c0_6 = arith.constant 0 : index
    %c0_7 = arith.constant 0 : index
    %c0_8 = arith.constant 0 : index
    %22 = vector.load %arg3[%c0_6, %c0_7, %c0_8] : memref<1x1x64xf32, #tpu.memory_space<vmem>>, vector<1x1x64xf32>
    %23 = vector.shape_cast %22 : vector<1x1x64xf32> to vector<1x64xf32>
    %24 = vector.broadcast %23 : vector<1x64xf32> to vector<16x64xf32>
    %25 = arith.mulf %21, %24 : vector<16x64xf32>
    %c0_9 = arith.constant 0 : index
    %c0_10 = arith.constant 0 : index
    %c0_11 = arith.constant 0 : index
    %26 = vector.load %arg4[%c0_9, %c0_10, %c0_11] : memref<1x1x64xf32, #tpu.memory_space<vmem>>, vector<1x1x64xf32>
    %27 = vector.shape_cast %26 : vector<1x1x64xf32> to vector<1x64xf32>
    %28 = vector.broadcast %27 : vector<1x64xf32> to vector<16x64xf32>
    %29 = arith.addf %25, %28 : vector<16x64xf32>
    %c0_12 = arith.constant 0 : index
    %c0_13 = arith.constant 0 : index
    %c0_14 = arith.constant 0 : index
    %30 = vector.load %arg5[%c0_12, %c0_13, %c0_14] : memref<1x16x64xf32, #tpu.memory_space<vmem>>, vector<1x16x64xf32>
    %31 = vector.shape_cast %30 : vector<1x16x64xf32> to vector<16x64xf32>
    %32 = vector.shape_cast %29 : vector<16x64xf32> to vector<1x16x64xf32>
    tpu.vector_store %arg5[%c0_12, %c0_13, %c0_14], %32 {strides = array<i32>} : memref<1x16x64xf32, #tpu.memory_space<vmem>>, vector<1x16x64xf32>,
    return
  }
  func.func @transform_0(%arg0: i32, %arg1: i32) -> (i32, i32, i32) {
    %c0_i32 = arith.constant 0 : i32
    %c0_i32_0 = arith.constant 0 : i32
    return %arg0, %arg1, %c0_i32 : i32, i32, i32
  }
  func.func @transform_1(%arg0: i32, %arg1: i32) -> (i32, i32, i32) {
    %c0_i32 = arith.constant 0 : i32
    %c0_i32_0 = arith.constant 0 : i32
    %c0_i32_1 = arith.constant 0 : i32
    return %arg0, %c0_i32, %c0_i32_0 : i32, i32, i32
  }
  func.func @transform_2(%arg0: i32, %arg1: i32) -> (i32, i32, i32) {
    %c0_i32 = arith.constant 0 : i32
    %c0_i32_0 = arith.constant 0 : i32
    %c0_i32_1 = arith.constant 0 : i32
    return %arg0, %c0_i32, %c0_i32_0 : i32, i32, i32
  }
  func.func @transform_3(%arg0: i32, %arg1: i32) -> (i32, i32, i32) {
    %c0_i32 = arith.constant 0 : i32
    %c0_i32_0 = arith.constant 0 : i32
    return %arg0, %arg1, %c0_i32 : i32, i32, i32
  }
}

</mosaic_0001>

<llo_original>
// kernel: tile.14
$region0: #{tile.14}
  %s0 = inlined_call_operand.vmem [shape: f32[8,2,2], index: 0, kind: input, shape index: {}]
  %s1 = inlined_call_operand.vmem [shape: f32[16,2], index: 1, kind: output, shape index: {}]
  $region1: #{tile.14} parent=0
    #allocation0 [shape = 'u8[4096]{0}', space=vmem, size = 0x1000, scoped, tag = 'scoped mem for output reshape']
    %s2 = smov 3
    %v3 = vld [vmem:[%s0] ss:$8 sm:%s2]
    %vm4 = vcmask 15360
    %5 = vst.msk [vmem:[#allocation0] sm:$0x3] %vm4, %v3
    %s6 = scalar_lea.vmem %s0, 7
    %s7 = smov 3
    %v8 = vld [vmem:[%s6] ss:$8 sm:%s7]
    %9 = vrot.lane.b32.xlu0 %v8, 14
    %v10 = vpop.permute.xlu0 %9
    %vm11 = vcmask 130160
    %12 = vst.msk [vmem:[#allocation0] sm:$0x3] %vm11, %v10
    %s13 = scalar_lea.vmem %s0, 6
    %s14 = smov 3
    %v15 = vld [vmem:[%s13] ss:$8 sm:%s14]
    %16 = vrot.lane.b32.xlu0 %v15, 12
    %v17 = vpop.permute.xlu0 %16
    %vm18 = vcmask 113760
    %19 = vst.msk [vmem:[#allocation0] sm:$0x3] %vm18, %v17
    %s20 = scalar_lea.vmem %s0, 5
    %s21 = smov 3
    %v22 = vld [vmem:[%s20] ss:$8 sm:%s21]
    %23 = vrot.lane.b32.xlu0 %v22, 10
    %v24 = vpop.permute.xlu0 %23
    %vm25 = vcmask 97360
    %26 = vst.msk [vmem:[#allocation0] sm:$0x3] %vm25, %v24
    %s27 = scalar_lea.vmem %s0, 4
    %s28 = smov 3
    %v29 = vld [vmem:[%s27] ss:$8 sm:%s28]
    %30 = vrot.lane.b32.xlu0 %v29, 8
    %v31 = vpop.permute.xlu0 %30
    %vm32 = vcmask 80960
    %33 = vst.msk [vmem:[#allocation0] sm:$0x3] %vm32, %v31
    %s34 = scalar_lea.vmem %s0, 3
    %s35 = smov 3
    %v36 = vld [vmem:[%s34] ss:$8 sm:%s35]
    %37 = vrot.lane.b32.xlu0 %v36, 6
    %v38 = vpop.permute.xlu0 %37
    %vm39 = vcmask 64560
    %40 = vst.msk [vmem:[#allocation0] sm:$0x3] %vm39, %v38
    %s41 = scalar_lea.vmem %s0, 2
    %s42 = smov 3
    %v43 = vld [vmem:[%s41] ss:$8 sm:%s42]
    %44 = vrot.lane.b32.xlu0 %v43, 4
    %v45 = vpop.permute.xlu0 %44
    %vm46 = vcmask 48160
    %47 = vst.msk [vmem:[#allocation0] sm:$0x3] %vm46, %v45
    %s48 = scalar_lea.vmem %s0, 1
    %s49 = smov 3
    %v50 = vld [vmem:[%s48] ss:$8 sm:%s49]
    %51 = vrot.lane.b32.xlu0 %v50, 2
    %v52 = vpop.permute.xlu0 %51
    %vm53 = vcmask 31760
    %54 = vst.msk [vmem:[#allocation0] sm:$0x3] %vm53, %v52
    %s56 = ssub.s32 4, 1
    %v57 = vld [vmem:[#allocation0] sm:%s56]
    %s59 = ssub.s32 4, 1
    %60 = vst [vmem:[%s1] sm:%s59] %v57

// kernel: gridnet_block_forward.13
$region0: #{gridnet_block_forward.13}
  #allocation0 [shape = 'u32[]', space=smem, size = 0x4, offset = 0x4, fixed_abs, tag = 'smem constant byte address 0x4 - core index']
  #allocation1 [shape = 'u32[72,128]{1,0:T(1,128)}', space=vmem, size = 0x9000, scoped, tag = 'internal scratch']
  %s0 = inlined_call_operand.vmem [shape: bf16[112,16], index: 0, kind: input, shape index: {}]
  %s1 = inlined_call_operand.vmem [shape: f32[16,2], index: 1, kind: input, shape index: {}]
  %s2 = inlined_call_operand.vmem [shape: f32[2,16], index: 2, kind: input, shape index: {}]
  %s3 = inlined_call_operand.vmem [shape: f32[1,16], index: 3, kind: input, shape index: {}]
  %s4 = inlined_call_operand.vmem [shape: f32[1,16], index: 4, kind: input, shape index: {}]
  %s5 = inlined_call_operand.vmem [shape: bf16[16,1024], index: 5, kind: input, shape index: {}]
  %s6 = inlined_call_operand.vmem [shape: f32[1,1024], index: 6, kind: input, shape index: {}]
  %s7 = inlined_call_operand.vmem [shape: bf16[112,1024], index: 7, kind: output, shape index: {}]
  %s8 = sld [smem:[#allocation0]]
  $region87: #{gridnet_block_forward.13} parent=0
    _
  %s10 = ssub.s32 1, %s8
  %s11 = scalar_select 0, %s10, %s8
  $region1: #{gridnet_block_forward.13} parent=0
    #allocation2 [shape = 'u8[262144]{0}', space=vmem, size = 0x40000, scoped, tag = 'output window, operand 0']
    loop: start=0, step=1, limit=4
    $region2: #{gridnet_block_forward.13} parent=1 // loop_pre_header
      _
    $region3: #{gridnet_block_forward.13} parent=1 // loop_header
      %s13 = sphi 0, %s17
      %p14 = scmp.ge.s32.totalorder %s13, 4
      %s23 = sphi 0, %s25
      %s26 = sphi 0, %s23
      %s27 = sphi 0, %s26
      %s43 = sphi 0, %s27
      %s47 = sphi 0, %s47
      %s49 = sphi 0, %s47
      %s50 = sphi 0, %s49
      %s64 = sphi 0, %s50
      %s68 = sphi 0, %s68
      %s70 = sphi 0, %s68
      %s71 = sphi 0, %s70
      %s85 = sphi 0, %s71
      %s89 = sphi 0, %s89
      %s91 = sphi 0, %s89
      %s92 = sphi 0, %s91
      %s106 = sphi 0, %s92
      %s110 = sphi 0, %s110
      %s112 = sphi 0, %s110
      %s113 = sphi 0, %s112
      %s127 = sphi 0, %s113
      %s131 = sphi 0, %s131
      %s133 = sphi 0, %s131
      %s134 = sphi 0, %s133
      %s148 = sphi 0, %s134
      %s152 = sphi 0, %s152
      %s154 = sphi 0, %s152
      %s155 = sphi 0, %s154
      %s169 = sphi 0, %s155
      %s175 = sphi 0, %s177
      %s178 = sphi 0, %s175
      %s179 = sphi 0, %s178
      %s195 = sphi 0, %s179
    $region4: #{gridnet_block_forward.13} parent=1 // loop_header_branch
      %16 = sbr.rel (%p14) target = $region8
    $region5: #{gridnet_block_forward.13} parent=1 // loop_body
      %s18 = ssub.s32 %s13, 1
      %s19 = ssub.s32 %s13, 2
      %s20 = sadd.s32 %s13, 1
      %s21 = ssub.s32 %s13, %s20
      %p22 = scmp.eq.s32.totalorder %s21, 0
      %s24 = sadd.s32 %s23, 1
      %s25 = scalar_select %p22, %s23, %s24
      %p28 = pneg %p22
      %p29 = scmp.eq.s32.totalorder %s13, 1
      %p30 = por %p28, %p29
      %p31 = scmp.ne.s32.totalorder %s23, %s26
      %p32 = scmp.eq.s32.totalorder %s13, 0
      %p33 = por %p31, %p32
      %p34 = scmp.ne.s32.totalorder %s23, %s26
      %p35 = scmp.eq.s32.totalorder %s18, 1
      %p36 = por %p34, %p35
      %p37 = scmp.ne.s32.totalorder %s26, %s27
      %p38 = scmp.eq.s32.totalorder %s18, 0
      %p39 = por %p37, %p38
      %p40 = scmp.ne.s32.totalorder %s26, %s27
      %p41 = scmp.eq.s32.totalorder %s19, 1
      %p42 = por %p40, %p41
      %p44 = scmp.ne.s32.totalorder %s27, %s43
      %p45 = scmp.eq.s32.totalorder %s19, 0
      %p46 = por %p44, %p45
      %s48 = sadd.s32 %s47, 1
      %p51 = scmp.eq.s32.totalorder %s13, 1
      %p52 = scmp.ne.s32.totalorder %s47, %s49
      %p53 = scmp.eq.s32.totalorder %s13, 0
      %p54 = por %p52, %p53
      %p55 = scmp.ne.s32.totalorder %s47, %s49
      %p56 = scmp.eq.s32.totalorder %s18, 1
      %p57 = por %p55, %p56
      %p58 = scmp.ne.s32.totalorder %s49, %s50
      %p59 = scmp.eq.s32.totalorder %s18, 0
      %p60 = por %p58, %p59
      %p61 = scmp.ne.s32.totalorder %s49, %s50
      %p62 = scmp.eq.s32.totalorder %s19, 1
      %p63 = por %p61, %p62
      %p65 = scmp.ne.s32.totalorder %s50, %s64
      %p66 = scmp.eq.s32.totalorder %s19, 0
      %p67 = por %p65, %p66
      %s69 = sadd.s32 %s68, 1
      %p72 = scmp.eq.s32.totalorder %s13, 1
      %p73 = scmp.ne.s32.totalorder %s68, %s70
      %p74 = scmp.eq.s32.totalorder %s13, 0
      %p75 = por %p73, %p74
      %p76 = scmp.ne.s32.totalorder %s68, %s70
      %p77 = scmp.eq.s32.totalorder %s18, 1
      %p78 = por %p76, %p77
      %p79 = scmp.ne.s32.totalorder %s70, %s71
      %p80 = scmp.eq.s32.totalorder %s18, 0
      %p81 = por %p79, %p80
      %p82 = scmp.ne.s32.totalorder %s70, %s71
      %p83 = scmp.eq.s32.totalorder %s19, 1
      %p84 = por %p82, %p83
      %p86 = scmp.ne.s32.totalorder %s71, %s85
      %p87 = scmp.eq.s32.totalorder %s19, 0
      %p88 = por %p86, %p87
      %s90 = sadd.s32 %s89, 1
      %p93 = scmp.eq.s32.totalorder %s13, 1
      %p94 = scmp.ne.s32.totalorder %s89, %s91
      %p95 = scmp.eq.s32.totalorder %s13, 0
      %p96 = por %p94, %p95
      %p97 = scmp.ne.s32.totalorder %s89, %s91
      %p98 = scmp.eq.s32.totalorder %s18, 1
      %p99 = por %p97, %p98
      %p100 = scmp.ne.s32.totalorder %s91, %s92
      %p101 = scmp.eq.s32.totalorder %s18, 0
      %p102 = por %p100, %p101
      %p103 = scmp.ne.s32.totalorder %s91, %s92
      %p104 = scmp.eq.s32.totalorder %s19, 1
      %p105 = por %p103, %p104
      %p107 = scmp.ne.s32.totalorder %s92, %s106
      %p108 = scmp.eq.s32.totalorder %s19, 0
      %p109 = por %p107, %p108
      %s111 = sadd.s32 %s110, 1
      %p114 = scmp.eq.s32.totalorder %s13, 1
      %p115 = scmp.ne.s32.totalorder %s110, %s112
      %p116 = scmp.eq.s32.totalorder %s13, 0
      %p117 = por %p115, %p116
      %p118 = scmp.ne.s32.totalorder %s110, %s112
      %p119 = scmp.eq.s32.totalorder %s18, 1
      %p120 = por %p118, %p119
      %p121 = scmp.ne.s32.totalorder %s112, %s113
      %p122 = scmp.eq.s32.totalorder %s18, 0
      %p123 = por %p121, %p122
      %p124 = scmp.ne.s32.totalorder %s112, %s113
      %p125 = scmp.eq.s32.totalorder %s19, 1
      %p126 = por %p124, %p125
      %p128 = scmp.ne.s32.totalorder %s113, %s127
      %p129 = scmp.eq.s32.totalorder %s19, 0
      %p130 = por %p128, %p129
      %s132 = sadd.s32 %s131, 1
      %p135 = scmp.eq.s32.totalorder %s13, 1
      %p136 = scmp.ne.s32.totalorder %s131, %s133
      %p137 = scmp.eq.s32.totalorder %s13, 0
      %p138 = por %p136, %p137
      %p139 = scmp.ne.s32.totalorder %s131, %s133
      %p140 = scmp.eq.s32.totalorder %s18, 1
      %p141 = por %p139, %p140
      %p142 = scmp.ne.s32.totalorder %s133, %s134
      %p143 = scmp.eq.s32.totalorder %s18, 0
      %p144 = por %p142, %p143
      %p145 = scmp.ne.s32.totalorder %s133, %s134
      %p146 = scmp.eq.s32.totalorder %s19, 1
      %p147 = por %p145, %p146
      %p149 = scmp.ne.s32.totalorder %s134, %s148
      %p150 = scmp.eq.s32.totalorder %s19, 0
      %p151 = por %p149, %p150
      %s153 = sadd.s32 %s152, 1
      %p156 = scmp.eq.s32.totalorder %s13, 1
      %p157 = scmp.ne.s32.totalorder %s152, %s154
      %p158 = scmp.eq.s32.totalorder %s13, 0
      %p159 = por %p157, %p158
      %p160 = scmp.ne.s32.totalorder %s152, %s154
      %p161 = scmp.eq.s32.totalorder %s18, 1
      %p162 = por %p160, %p161
      %p163 = scmp.ne.s32.totalorder %s154, %s155
      %p164 = scmp.eq.s32.totalorder %s18, 0
      %p165 = por %p163, %p164
      %p166 = scmp.ne.s32.totalorder %s154, %s155
      %p167 = scmp.eq.s32.totalorder %s19, 1
      %p168 = por %p166, %p167
      %p170 = scmp.ne.s32.totalorder %s155, %s169
      %p171 = scmp.eq.s32.totalorder %s19, 0
      %p172 = por %p170, %p171
      %s173 = ssub.s32 %s13, %s20
      %p174 = scmp.eq.s32.totalorder %s173, 0
      %s176 = sadd.s32 %s175, 1
      %s177 = scalar_select %p174, %s175, %s176
      %p180 = pneg %p174
      %p181 = scmp.eq.s32.totalorder %s13, 1
      %p182 = por %p180, %p181
      %p183 = scmp.ne.s32.totalorder %s175, %s178
      %p184 = scmp.eq.s32.totalorder %s13, 0
      %p185 = por %p183, %p184
      %p186 = scmp.ne.s32.totalorder %s175, %s178
      %p187 = scmp.eq.s32.totalorder %s18, 1
      %p188 = por %p186, %p187
      %p189 = scmp.ne.s32.totalorder %s178, %s179
      %p190 = scmp.eq.s32.totalorder %s18, 0
      %p191 = por %p189, %p190
      %p192 = scmp.ne.s32.totalorder %s178, %s179
      %p193 = scmp.eq.s32.totalorder %s19, 1
      %p194 = por %p192, %p193
      %p196 = scmp.ne.s32.totalorder %s179, %s195
      %p197 = scmp.eq.s32.totalorder %s19, 0
      %p198 = por %p196, %p197
      %p199 = scmp.le.s32.totalorder 1, %s13
      %p200 = scmp.lt.s32.totalorder %s13, 3
      %p201 = pnand %p199, %p200
      %p202 = pneg %p201
      // Predicated region
      $region9: #{gridnet_block_forward.13} parent=5 // pred_check
        _
      $region10: #{gridnet_block_forward.13} parent=5 // pred_check_branch
        %204 = sbr.rel (%p201) target = $region12
      $region11: #{gridnet_block_forward.13} parent=5 // pred_region
        %s205 = ssub.s32 %s13, 1
        // Predicated region
        $region13: #{gridnet_block_forward.13} parent=11 // pred_check
          %p206 = pneg %p60
        $region14: #{gridnet_block_forward.13} parent=11 // pred_check_branch
          %208 = sbr.rel (%p206) target = $region16
        $region15: #{gridnet_block_forward.13} parent=11 // pred_region
          _
        $region16: #{gridnet_block_forward.13} parent=11 // pred_fallthru
          _
        // Predicated region
        $region17: #{gridnet_block_forward.13} parent=11 // pred_check
          %p209 = pneg %p81
        $region18: #{gridnet_block_forward.13} parent=11 // pred_check_branch
          %211 = sbr.rel (%p209) target = $region20
        $region19: #{gridnet_block_forward.13} parent=11 // pred_region
          _
        $region20: #{gridnet_block_forward.13} parent=11 // pred_fallthru
          _
        // Predicated region
        $region21: #{gridnet_block_forward.13} parent=11 // pred_check
          %p212 = pneg %p102
        $region22: #{gridnet_block_forward.13} parent=11 // pred_check_branch
          %214 = sbr.rel (%p212) target = $region24
        $region23: #{gridnet_block_forward.13} parent=11 // pred_region
          _
        $region24: #{gridnet_block_forward.13} parent=11 // pred_fallthru
          _
        // Predicated region
        $region25: #{gridnet_block_forward.13} parent=11 // pred_check
          %p215 = pneg %p123
        $region26: #{gridnet_block_forward.13} parent=11 // pred_check_branch
          %217 = sbr.rel (%p215) target = $region28
        $region27: #{gridnet_block_forward.13} parent=11 // pred_region
          _
        $region28: #{gridnet_block_forward.13} parent=11 // pred_fallthru
          _
        // Predicated region
        $region29: #{gridnet_block_forward.13} parent=11 // pred_check
          %p218 = pneg %p144
        $region30: #{gridnet_block_forward.13} parent=11 // pred_check_branch
          %220 = sbr.rel (%p218) target = $region32
        $region31: #{gridnet_block_forward.13} parent=11 // pred_region
          _
        $region32: #{gridnet_block_forward.13} parent=11 // pred_fallthru
          _
        // Predicated region
        $region33: #{gridnet_block_forward.13} parent=11 // pred_check
          %p221 = pneg %p165
        $region34: #{gridnet_block_forward.13} parent=11 // pred_check_branch
          %223 = sbr.rel (%p221) target = $region36
        $region35: #{gridnet_block_forward.13} parent=11 // pred_region
          _
        $region36: #{gridnet_block_forward.13} parent=11 // pred_fallthru
          _
      $region12: #{gridnet_block_forward.13} parent=5 // pred_fallthru
        _
      %p224 = scmp.lt.s32.totalorder %s13, 2
      // Predicated region
      $region37: #{gridnet_block_forward.13} parent=5 // pred_check
        %p225 = pneg %p224
      $region38: #{gridnet_block_forward.13} parent=5 // pred_check_branch
        %227 = sbr.rel (%p225) target = $region40
      $region39: #{gridnet_block_forward.13} parent=5 // pred_region
        // Predicated region
        $region41: #{gridnet_block_forward.13} parent=39 // pred_check
          %p228 = pneg %p33
        $region42: #{gridnet_block_forward.13} parent=39 // pred_check_branch
          %230 = sbr.rel (%p228) target = $region44
        $region43: #{gridnet_block_forward.13} parent=39 // pred_region
          %s231 = smul.u32 8, %s13
          %s232 = ssub.s32 14, %s231
          %p233 = scmp.lt.s32.totalorder %s232, 8
          %s234 = scalar_select %p233, %s232, 8
          %s235 = smul.u32 4, %s234
          %p236 = scmp.lt.s32.totalorder %s231, 13
          %s237 = scalar_select %p236, %s231, 13
          %s238 = smul.addr %s237, 4
          %s239 = scalar_lea.vmem %s0, %s238
          %s240 = smul.u32 8, %s13
          %s241 = ssub.s32 14, %s240
          %p242 = scmp.lt.s32.totalorder %s241, 8
          %s243 = scalar_select %p242, %s241, 8
          %s244 = smul.u32 4, %s243
        $region44: #{gridnet_block_forward.13} parent=39 // pred_fallthru
          _
      $region40: #{gridnet_block_forward.13} parent=5 // pred_fallthru
        _
      %p245 = scmp.le.s32.totalorder 1, %s13
      %p246 = scmp.lt.s32.totalorder %s13, 3
      %p247 = pnand %p245, %p246
      %p248 = pneg %p247
      // Predicated region
      $region45: #{gridnet_block_forward.13} parent=5 // pred_check
        _
      $region46: #{gridnet_block_forward.13} parent=5 // pred_check_branch
        %250 = sbr.rel (%p247) target = $region48
      $region47: #{gridnet_block_forward.13} parent=5 // pred_region
        %s251 = ssub.s32 %s13, 1
        %s252 = smul.u32 8, %s18
        %s253 = ssub.s32 14, %s252
        %p254 = scmp.lt.s32.totalorder %s253, 8
        %s255 = scalar_select %p254, %s253, 8
        %s256 = smul.u32 4, %s255
        %p257 = scmp.lt.s32.totalorder %s252, 13
        %s258 = scalar_select %p257, %s252, 13
        %s259 = smul.addr %s258, 4
        %s260 = scalar_lea.vmem %s0, %s259
        %p261 = pneg %p39
        %p262 = pneg %p36
        %p263 = pneg %p60
        %p264 = pneg %p57
        %p265 = pneg %p81
        %p266 = pneg %p78
        %p267 = pneg %p102
        %p268 = pneg %p99
        %p269 = pneg %p123
        %p270 = pneg %p120
        %p271 = pneg %p144
        %p272 = pneg %p141
        %p273 = pneg %p165
        %p274 = pneg %p162
        %p275 = pneg %p191
        %p276 = pneg %p188
        %s277 = sand.u32 %s178, 1
        %s278 = sand.u32 %s178, 1
        %s279 = smul.addr %s278, 256
        %s280 = scalar_lea.vmem [#allocation2], %s279
        %s281 = smul.u32 8, %s18
        %s282 = ssub.s32 14, %s281
        %p283 = scmp.lt.s32.totalorder %s282, 8
        %s284 = scalar_select %p283, %s282, 8
        %s285 = smul.u32 4, %s284
        %p286 = scmp.lt.s32.totalorder %s281, 13
        %s287 = scalar_select %p286, %s281, 13
        %s288 = smul.addr %s287, 4
        %s289 = scalar_lea.vmem %s0, %s288
        %s290 = smul.u32 8, %s18
        %s291 = ssub.s32 14, %s290
        %p292 = scmp.lt.s32.totalorder %s291, 8
        %s293 = scalar_select %p292, %s291, 8
        %s294 = smul.u32 4, %s293
        %s295 = smul.u32 8, %s18
        %s296 = ssub.s32 14, %s295
        %p297 = scmp.lt.s32.totalorder %s296, 8
        %s298 = scalar_select %p297, %s296, 8
        %s299 = smul.u32 4, %s298
        %s300 = smul.u32 %s299, 8
        %v302 = vld [vmem:[%s289] sm:$0xf]
        %v303 = vld [vmem:[%s289 + $0x4] sm:$0xf]
        %v304 = vld [vmem:[%s289 + $0x8] sm:$0xf]
        %v305 = vld [vmem:[%s289 + $0xc] sm:$0xf]
        %v306 = vld [vmem:[%s289 + $0x10] sm:$0xf]
        %v307 = vld [vmem:[%s289 + $0x14] sm:$0xf]
        %v308 = vld [vmem:[%s289 + $0x18] sm:$0xf]
        %v309 = vld [vmem:[%s289 + $0x1c] sm:$0xf]
        %v310 = vunpack.c.l.bf16 %v302
        %v311 = vunpack.c.l.bf16 %v303
        %v312 = vunpack.c.l.bf16 %v304
        %v313 = vunpack.c.l.bf16 %v305
        %v314 = vunpack.c.l.bf16 %v306
        %v315 = vunpack.c.l.bf16 %v307
        %v316 = vunpack.c.l.bf16 %v308
        %v317 = vunpack.c.l.bf16 %v309
        %v318 = vld [vmem:[%s1] sm:$0xff]
        %v319 = vld [vmem:[%s1 + $0x8] sm:$0xff]
        %v320 = vld [vmem:[%s2] sm:$0x3]
        %vm321 = vcmask 130048
        %v323 = vsel %vm321, %v310, 0
        %v326 = vsel %vm321, %v311, 0
        %v329 = vsel %vm321, %v312, 0
        %v332 = vsel %vm321, %v313, 0
        %v335 = vsel %vm321, %v314, 0
        %v338 = vsel %vm321, %v315, 0
        %v341 = vsel %vm321, %v316, 0
        %v344 = vsel %vm321, %v317, 0
        %346 = vmatpush.msra.mxu0 0.0
        %347 = vmatpush.msra.mxu0 0.0
        %348 = vmatpush.msra.mxu0 0.0
        %349 = vmatpush.msra.mxu0 0.0
        %350 = vmatpush.msra.mxu0 0.0
        %351 = vmatpush.msra.mxu0 0.0
        %352 = vmatpush.msra.mxu0 0.0
        %353 = vmatpush.msra.mxu0 0.0
        %354 = vmatpush.msra.mxu0 0.0
        %355 = vmatpush.msra.mxu0 0.0
        %356 = vmatpush.msra.mxu0 0.0
        %357 = vmatpush.msra.mxu0 0.0
        %358 = vmatpush.msra.mxu0 0.0
        %359 = vmatpush.msra.mxu0 0.0
        %360 = vmatpush.msra.mxu0 %v319
        %361 = vmatpush.msra.mxu0 %v318
        %362 = vmatmul.f32.gmra.mxu0 %v323
        %v363 = vpop.f32.mrf.mxu0
        %v364 = vadd.f32 0.0, %v363
        %365 = vmatmul.f32.gmra.mxu0 %v326
        %v366 = vpop.f32.mrf.mxu0
        %v367 = vadd.f32 0.0, %v366
        %368 = vmatmul.f32.gmra.mxu0 %v329
        %v369 = vpop.f32.mrf.mxu0
        %v370 = vadd.f32 0.0, %v369
        %371 = vmatmul.f32.gmra.mxu0 %v332
        %v372 = vpop.f32.mrf.mxu0
        %v373 = vadd.f32 0.0, %v372
        %374 = vmatmul.f32.gmra.mxu0 %v335
        %v375 = vpop.f32.mrf.mxu0
        %v376 = vadd.f32 0.0, %v375
        %377 = vmatmul.f32.gmra.mxu0 %v338
        %v378 = vpop.f32.mrf.mxu0
        %v379 = vadd.f32 0.0, %v378
        %380 = vmatmul.f32.gmra.mxu0 %v341
        %v381 = vpop.f32.mrf.mxu0
        %v382 = vadd.f32 0.0, %v381
        %383 = vmatmul.f32.gmra.mxu0 %v344
        %v384 = vpop.f32.mrf.mxu0
        %v385 = vadd.f32 0.0, %v384
        %386 = vdwg.mxu0
        %v387 = vmul.f32 %v364, 0.125
        %v388 = vmul.f32 %v367, 0.125
        %v389 = vmul.f32 %v370, 0.125
        %v390 = vmul.f32 %v373, 0.125
        %v391 = vmul.f32 %v376, 0.125
        %v392 = vmul.f32 %v379, 0.125
        %v393 = vmul.f32 %v382, 0.125
        %v394 = vmul.f32 %v385, 0.125
        %v395 = vmul.f32 %v310, %v310
        %v396 = vmul.f32 %v311, %v311
        %v397 = vmul.f32 %v312, %v312
        %v398 = vmul.f32 %v313, %v313
        %v399 = vmul.f32 %v314, %v314
        %v400 = vmul.f32 %v315, %v315
        %v401 = vmul.f32 %v316, %v316
        %v402 = vmul.f32 %v317, %v317
        %v404 = vsel %vm321, %v395, 0
        %v407 = vsel %vm321, %v396, 0
        %v410 = vsel %vm321, %v397, 0
        %v413 = vsel %vm321, %v398, 0
        %v416 = vsel %vm321, %v399, 0
        %v419 = vsel %vm321, %v400, 0
        %v422 = vsel %vm321, %v401, 0
        %v425 = vsel %vm321, %v402, 0
        %427 = vmatpush.msra.mxu0 0.0
        %428 = vmatpush.msra.mxu0 0.0
        %429 = vmatpush.msra.mxu0 0.0
        %430 = vmatpush.msra.mxu0 0.0
        %431 = vmatpush.msra.mxu0 0.0
        %432 = vmatpush.msra.mxu0 0.0
        %433 = vmatpush.msra.mxu0 0.0
        %434 = vmatpush.msra.mxu0 0.0
        %435 = vmatpush.msra.mxu0 0.0
        %436 = vmatpush.msra.mxu0 0.0
        %437 = vmatpush.msra.mxu0 0.0
        %438 = vmatpush.msra.mxu0 0.0
        %439 = vmatpush.msra.mxu0 0.0
        %440 = vmatpush.msra.mxu0 0.0
        %441 = vmatpush.msra.mxu0 %v319
        %442 = vmatpush.msra.mxu0 %v318
        %443 = vmatmul.f32.gmra.mxu0 %v404
        %v444 = vpop.f32.mrf.mxu0
        %v445 = vadd.f32 0.0, %v444
        %446 = vmatmul.f32.gmra.mxu0 %v407
        %v447 = vpop.f32.mrf.mxu0
        %v448 = vadd.f32 0.0, %v447
        %449 = vmatmul.f32.gmra.mxu0 %v410
        %v450 = vpop.f32.mrf.mxu0
        %v451 = vadd.f32 0.0, %v450
        %452 = vmatmul.f32.gmra.mxu0 %v413
        %v453 = vpop.f32.mrf.mxu0
        %v454 = vadd.f32 0.0, %v453
        %455 = vmatmul.f32.gmra.mxu0 %v416
        %v456 = vpop.f32.mrf.mxu0
        %v457 = vadd.f32 0.0, %v456
        %458 = vmatmul.f32.gmra.mxu0 %v419
        %v459 = vpop.f32.mrf.mxu0
        %v460 = vadd.f32 0.0, %v459
        %461 = vmatmul.f32.gmra.mxu0 %v422
        %v462 = vpop.f32.mrf.mxu0
        %v463 = vadd.f32 0.0, %v462
        %464 = vmatmul.f32.gmra.mxu0 %v425
        %v465 = vpop.f32.mrf.mxu0
        %v466 = vadd.f32 0.0, %v465
        %467 = vdwg.mxu0
        %v468 = vmul.f32 %v445, 0.125
        %v469 = vmul.f32 %v448, 0.125
        %v470 = vmul.f32 %v451, 0.125
        %v471 = vmul.f32 %v454, 0.125
        %v472 = vmul.f32 %v457, 0.125
        %v473 = vmul.f32 %v460, 0.125
        %v474 = vmul.f32 %v463, 0.125
        %v475 = vmul.f32 %v466, 0.125
        %v476 = vmul.f32 %v387, %v387
        %v477 = vmul.f32 %v388, %v388
        %v478 = vmul.f32 %v389, %v389
        %v479 = vmul.f32 %v390, %v390
        %v480 = vmul.f32 %v391, %v391
        %v481 = vmul.f32 %v392, %v392
        %v482 = vmul.f32 %v393, %v393
        %v483 = vmul.f32 %v394, %v394
        %v484 = vsub.f32 %v468, %v476
        %v485 = vsub.f32 %v469, %v477
        %v486 = vsub.f32 %v470, %v478
        %v487 = vsub.f32 %v471, %v479
        %v488 = vsub.f32 %v472, %v480
        %v489 = vsub.f32 %v473, %v481
        %v490 = vsub.f32 %v474, %v482
        %v491 = vsub.f32 %v475, %v483
        %v492 = vadd.f32 %v484, 1e-05
        %v493 = vadd.f32 %v485, 1e-05
        %v494 = vadd.f32 %v486, 1e-05
        %v495 = vadd.f32 %v487, 1e-05
        %v496 = vadd.f32 %v488, 1e-05
        %v497 = vadd.f32 %v489, 1e-05
        %v498 = vadd.f32 %v490, 1e-05
        %v499 = vadd.f32 %v491, 1e-05
        %v500 = vrsqrt.pop %v492
        %v501 = vmul.f32 %v500, %v492
        %v502 = vmul.f32 %v501, %v500
        %v503 = vmul.f32 0.5, %v502
        %v504 = vsub.f32 1.5, %v503
        %v505 = vmul.f32 %v500, %v504
        %vm506 = vweird.f32 %v492
        %vm507 = vweird.f32 %v500
        %vm508 = vmor %vm506, %vm507
        %v509 = vsel %vm508, %v500, %v505
        %v510 = vrsqrt.pop %v493
        %v511 = vmul.f32 %v510, %v493
        %v512 = vmul.f32 %v511, %v510
        %v513 = vmul.f32 0.5, %v512
        %v514 = vsub.f32 1.5, %v513
        %v515 = vmul.f32 %v510, %v514
        %vm516 = vweird.f32 %v493
        %vm517 = vweird.f32 %v510
        %vm518 = vmor %vm516, %vm517
        %v519 = vsel %vm518, %v510, %v515
        %v520 = vrsqrt.pop %v494
        %v521 = vmul.f32 %v520, %v494
        %v522 = vmul.f32 %v521, %v520
        %v523 = vmul.f32 0.5, %v522
        %v524 = vsub.f32 1.5, %v523
        %v525 = vmul.f32 %v520, %v524
        %vm526 = vweird.f32 %v494
        %vm527 = vweird.f32 %v520
        %vm528 = vmor %vm526, %vm527
        %v529 = vsel %vm528, %v520, %v525
        %v530 = vrsqrt.pop %v495
        %v531 = vmul.f32 %v530, %v495
        %v532 = vmul.f32 %v531, %v530
        %v533 = vmul.f32 0.5, %v532
        %v534 = vsub.f32 1.5, %v533
        %v535 = vmul.f32 %v530, %v534
        %vm536 = vweird.f32 %v495
        %vm537 = vweird.f32 %v530
        %vm538 = vmor %vm536, %vm537
        %v539 = vsel %vm538, %v530, %v535
        %v540 = vrsqrt.pop %v496
        %v541 = vmul.f32 %v540, %v496
        %v542 = vmul.f32 %v541, %v540
        %v543 = vmul.f32 0.5, %v542
        %v544 = vsub.f32 1.5, %v543
        %v545 = vmul.f32 %v540, %v544
        %vm546 = vweird.f32 %v496
        %vm547 = vweird.f32 %v540
        %vm548 = vmor %vm546, %vm547
        %v549 = vsel %vm548, %v540, %v545
        %v550 = vrsqrt.pop %v497
        %v551 = vmul.f32 %v550, %v497
        %v552 = vmul.f32 %v551, %v550
        %v553 = vmul.f32 0.5, %v552
        %v554 = vsub.f32 1.5, %v553
        %v555 = vmul.f32 %v550, %v554
        %vm556 = vweird.f32 %v497
        %vm557 = vweird.f32 %v550
        %vm558 = vmor %vm556, %vm557
        %v559 = vsel %vm558, %v550, %v555
        %v560 = vrsqrt.pop %v498
        %v561 = vmul.f32 %v560, %v498
        %v562 = vmul.f32 %v561, %v560
        %v563 = vmul.f32 0.5, %v562
        %v564 = vsub.f32 1.5, %v563
        %v565 = vmul.f32 %v560, %v564
        %vm566 = vweird.f32 %v498
        %vm567 = vweird.f32 %v560
        %vm568 = vmor %vm566, %vm567
        %v569 = vsel %vm568, %v560, %v565
        %v570 = vrsqrt.pop %v499
        %v571 = vmul.f32 %v570, %v499
        %v572 = vmul.f32 %v571, %v570
        %v573 = vmul.f32 0.5, %v572
        %v574 = vsub.f32 1.5, %v573
        %v575 = vmul.f32 %v570, %v574
        %vm576 = vweird.f32 %v499
        %vm577 = vweird.f32 %v570
        %vm578 = vmor %vm576, %vm577
        %v579 = vsel %vm578, %v570, %v575
        %vm580 = vcmask 15360
        %v582 = vsel %vm580, %v387, 0
        %v585 = vsel %vm580, %v388, 0
        %v588 = vsel %vm580, %v389, 0
        %v591 = vsel %vm580, %v390, 0
        %v594 = vsel %vm580, %v391, 0
        %v597 = vsel %vm580, %v392, 0
        %v600 = vsel %vm580, %v393, 0
        %v603 = vsel %vm580, %v394, 0
        %vm605 = vcmask 1041408
        %v607 = vsel %vm605, %v320, 0
        %609 = vmatpush.msra.mxu0 0.0
        %610 = vmatpush.msra.mxu0 0.0
        %611 = vmatpush.msra.mxu0 0.0
        %612 = vmatpush.msra.mxu0 0.0
        %613 = vmatpush.msra.mxu0 0.0
        %614 = vmatpush.msra.mxu0 0.0
        %615 = vmatpush.msra.mxu0 0.0
        %616 = vmatpush.msra.mxu0 0.0
        %617 = vmatpush.msra.mxu0 0.0
        %618 = vmatpush.msra.mxu0 0.0
        %619 = vmatpush.msra.mxu0 0.0
        %620 = vmatpush.msra.mxu0 0.0
        %621 = vmatpush.msra.mxu0 0.0
        %622 = vmatpush.msra.mxu0 0.0
        %623 = vmatpush.msra.mxu0 0.0
        %624 = vmatpush.msra.mxu0 %v607
        %625 = vmatmul.f32.gmra.mxu0 %v582
        %v626 = vpop.f32.mrf.mxu0
        %v627 = vadd.f32 0.0, %v626
        %628 = vmatmul.f32.gmra.mxu0 %v585
        %v629 = vpop.f32.mrf.mxu0
        %v630 = vadd.f32 0.0, %v629
        %631 = vmatmul.f32.gmra.mxu0 %v588
        %v632 = vpop.f32.mrf.mxu0
        %v633 = vadd.f32 0.0, %v632
        %634 = vmatmul.f32.gmra.mxu0 %v591
        %v635 = vpop.f32.mrf.mxu0
        %v636 = vadd.f32 0.0, %v635
        %637 = vmatmul.f32.gmra.mxu0 %v594
        %v638 = vpop.f32.mrf.mxu0
        %v639 = vadd.f32 0.0, %v638
        %640 = vmatmul.f32.gmra.mxu0 %v597
        %v641 = vpop.f32.mrf.mxu0
        %v642 = vadd.f32 0.0, %v641
        %643 = vmatmul.f32.gmra.mxu0 %v600
        %v644 = vpop.f32.mrf.mxu0
        %v645 = vadd.f32 0.0, %v644
        %646 = vmatmul.f32.gmra.mxu0 %v603
        %v647 = vpop.f32.mrf.mxu0
        %v648 = vadd.f32 0.0, %v647
        %649 = vdwg.mxu0
        %v651 = vsel %vm580, %v509, 0
        %v654 = vsel %vm580, %v519, 0
        %v657 = vsel %vm580, %v529, 0
        %v660 = vsel %vm580, %v539, 0
        %v663 = vsel %vm580, %v549, 0
        %v666 = vsel %vm580, %v559, 0
        %v669 = vsel %vm580, %v569, 0
        %v672 = vsel %vm580, %v579, 0
        %674 = vmatpush.msra.mxu0 0.0
        %675 = vmatpush.msra.mxu0 0.0
        %676 = vmatpush.msra.mxu0 0.0
        %677 = vmatpush.msra.mxu0 0.0
        %678 = vmatpush.msra.mxu0 0.0
        %679 = vmatpush.msra.mxu0 0.0
        %680 = vmatpush.msra.mxu0 0.0
        %681 = vmatpush.msra.mxu0 0.0
        %682 = vmatpush.msra.mxu0 0.0
        %683 = vmatpush.msra.mxu0 0.0
        %684 = vmatpush.msra.mxu0 0.0
        %685 = vmatpush.msra.mxu0 0.0
        %686 = vmatpush.msra.mxu0 0.0
        %687 = vmatpush.msra.mxu0 0.0
        %688 = vmatpush.msra.mxu0 0.0
        %689 = vmatpush.msra.mxu0 %v607
        %690 = vmatmul.f32.gmra.mxu0 %v651
        %v691 = vpop.f32.mrf.mxu0
        %v692 = vadd.f32 0.0, %v691
        %693 = vmatmul.f32.gmra.mxu0 %v654
        %v694 = vpop.f32.mrf.mxu0
        %v695 = vadd.f32 0.0, %v694
        %696 = vmatmul.f32.gmra.mxu0 %v657
        %v697 = vpop.f32.mrf.mxu0
        %v698 = vadd.f32 0.0, %v697
        %699 = vmatmul.f32.gmra.mxu0 %v660
        %v700 = vpop.f32.mrf.mxu0
        %v701 = vadd.f32 0.0, %v700
        %702 = vmatmul.f32.gmra.mxu0 %v663
        %v703 = vpop.f32.mrf.mxu0
        %v704 = vadd.f32 0.0, %v703
        %705 = vmatmul.f32.gmra.mxu0 %v666
        %v706 = vpop.f32.mrf.mxu0
        %v707 = vadd.f32 0.0, %v706
        %708 = vmatmul.f32.gmra.mxu0 %v669
        %v709 = vpop.f32.mrf.mxu0
        %v710 = vadd.f32 0.0, %v709
        %711 = vmatmul.f32.gmra.mxu0 %v672
        %v712 = vpop.f32.mrf.mxu0
        %v713 = vadd.f32 0.0, %v712
        %714 = vdwg.mxu0
        %v715 = vsub.f32 %v310, %v627
        %v716 = vsub.f32 %v311, %v630
        %v717 = vsub.f32 %v312, %v633
        %v718 = vsub.f32 %v313, %v636
        %v719 = vsub.f32 %v314, %v639
        %v720 = vsub.f32 %v315, %v642
        %v721 = vsub.f32 %v316, %v645
        %v722 = vsub.f32 %v317, %v648
        %v723 = vmul.f32 %v715, %v692
        %v724 = vmul.f32 %v716, %v695
        %v725 = vmul.f32 %v717, %v698
        %v726 = vmul.f32 %v718, %v701
        %v727 = vmul.f32 %v719, %v704
        %v728 = vmul.f32 %v720, %v707
        %v729 = vmul.f32 %v721, %v710
        %v730 = vmul.f32 %v722, %v713
        %v731 = vld [vmem:[%s3] sm:$0x1]
        %v733 = vperm.slane %v731, 0
        %v735 = vmul.f32 %v723, %v733
        %v736 = vmul.f32 %v724, %v733
        %v737 = vmul.f32 %v725, %v733
        %v738 = vmul.f32 %v726, %v733
        %v739 = vmul.f32 %v727, %v733
        %v740 = vmul.f32 %v728, %v733
        %v741 = vmul.f32 %v729, %v733
        %v742 = vmul.f32 %v730, %v733
        %v743 = vld [vmem:[%s4] sm:$0x1]
        %v745 = vperm.slane %v743, 0
        %v747 = vadd.f32 %v735, %v745
        %v748 = vadd.f32 %v736, %v745
        %v749 = vadd.f32 %v737, %v745
        %v750 = vadd.f32 %v738, %v745
        %v751 = vadd.f32 %v739, %v745
        %v752 = vadd.f32 %v740, %v745
        %v753 = vadd.f32 %v741, %v745
        %v754 = vadd.f32 %v742, %v745
        %v755 = vpack.c.bf16 %v748, %v747
        %v756 = vpack.c.bf16 %v750, %v749
        %v757 = vpack.c.bf16 %v752, %v751
        %v758 = vpack.c.bf16 %v754, %v753
        %v759 = vld [vmem:[%s5] sm:$0xff]
        %v760 = vld [vmem:[%s5 + $0x8] sm:$0xff]
        %v761 = vld [vmem:[%s5 + $0x10] sm:$0xff]
        %v762 = vld [vmem:[%s5 + $0x18] sm:$0xff]
        %v763 = vld [vmem:[%s5 + $0x20] sm:$0xff]
        %v764 = vld [vmem:[%s5 + $0x28] sm:$0xff]
        %v765 = vld [vmem:[%s5 + $0x30] sm:$0xff]
        %v766 = vld [vmem:[%s5 + $0x38] sm:$0xff]
        %v767 = vld [vmem:[%s6] sm:$0xff]
        %v769 = vperm.slane %v767, 0
        %v770 = vperm.slane %v767, 1
        %v771 = vperm.slane %v767, 2
        %v772 = vperm.slane %v767, 3
        %v773 = vperm.slane %v767, 4
        %v774 = vperm.slane %v767, 5
        %v775 = vperm.slane %v767, 6
        %v776 = vperm.slane %v767, 7
        %v793 = vunpack.c.l.b16 %v759
        %v794 = vunpack.c.h.b16 %v759
        %v795 = vunpack.c.l.b16 %v760
        %v796 = vunpack.c.h.b16 %v760
        %v797 = vunpack.c.l.b16 %v761
        %v798 = vunpack.c.h.b16 %v761
        %v799 = vunpack.c.l.b16 %v762
        %v800 = vunpack.c.h.b16 %v762
        %v801 = vunpack.c.l.b16 %v763
        %v802 = vunpack.c.h.b16 %v763
        %v803 = vunpack.c.l.b16 %v764
        %v804 = vunpack.c.h.b16 %v764
        %v805 = vunpack.c.l.b16 %v765
        %v806 = vunpack.c.h.b16 %v765
        %v807 = vunpack.c.l.b16 %v766
        %v808 = vunpack.c.h.b16 %v766
        %v809 = vpack.c.b16 %v801, %v793
        %v810 = vpack.c.b16 %v802, %v794
        %v811 = vpack.c.b16 %v803, %v795
        %v812 = vpack.c.b16 %v804, %v796
        %v813 = vpack.c.b16 %v805, %v797
        %v814 = vpack.c.b16 %v806, %v798
        %v815 = vpack.c.b16 %v807, %v799
        %v816 = vpack.c.b16 %v808, %v800
        %v826 = vsel %vm321, %v755, 0
        %v829 = vsel %vm321, %v756, 0
        %v832 = vsel %vm321, %v757, 0
        %v835 = vsel %vm321, %v758, 0
        %837 = vmatpush.bf16.msra.mxu0 0
        %838 = vmatpush.bf16.msra.mxu0 0
        %839 = vmatpush.bf16.msra.mxu0 0
        %840 = vmatpush.bf16.msra.mxu0 0
        %841 = vmatpush.bf16.msra.mxu0 0
        %842 = vmatpush.bf16.msra.mxu0 0
        %843 = vmatpush.bf16.msra.mxu0 0
        %844 = vmatpush.bf16.msra.mxu0 %v809
        %845 = vmatmul.bf16.gmra.mxu0 %v826
        %v846 = vpop.f32.mrf.mxu0
        %v847 = vadd.f32 %v769, %v846
        %v848 = vpop.f32.mrf.mxu0
        %v849 = vadd.f32 %v769, %v848
        %850 = vmatmul.bf16.gmra.mxu0 %v829
        %v851 = vpop.f32.mrf.mxu0
        %v852 = vadd.f32 %v769, %v851
        %v853 = vpop.f32.mrf.mxu0
        %v854 = vadd.f32 %v769, %v853
        %855 = vmatmul.bf16.gmra.mxu0 %v832
        %v856 = vpop.f32.mrf.mxu0
        %v857 = vadd.f32 %v769, %v856
        %v858 = vpop.f32.mrf.mxu0
        %v859 = vadd.f32 %v769, %v858
        %860 = vmatmul.bf16.gmra.mxu0 %v835
        %v861 = vpop.f32.mrf.mxu0
        %v862 = vadd.f32 %v769, %v861
        %v863 = vpop.f32.mrf.mxu0
        %v864 = vadd.f32 %v769, %v863
        %865 = vdwg.mxu0
        %866 = vmatpush.bf16.msra.mxu0 0
        %867 = vmatpush.bf16.msra.mxu0 0
        %868 = vmatpush.bf16.msra.mxu0 0
        %869 = vmatpush.bf16.msra.mxu0 0
        %870 = vmatpush.bf16.msra.mxu0 0
        %871 = vmatpush.bf16.msra.mxu0 0
        %872 = vmatpush.bf16.msra.mxu0 0
        %873 = vmatpush.bf16.msra.mxu0 %v810
        %874 = vmatmul.bf16.gmra.mxu0 %v826
        %v875 = vpop.f32.mrf.mxu0
        %v876 = vadd.f32 %v770, %v875
        %v877 = vpop.f32.mrf.mxu0
        %v878 = vadd.f32 %v770, %v877
        %879 = vmatmul.bf16.gmra.mxu0 %v829
        %v880 = vpop.f32.mrf.mxu0
        %v881 = vadd.f32 %v770, %v880
        %v882 = vpop.f32.mrf.mxu0
        %v883 = vadd.f32 %v770, %v882
        %884 = vmatmul.bf16.gmra.mxu0 %v832
        %v885 = vpop.f32.mrf.mxu0
        %v886 = vadd.f32 %v770, %v885
        %v887 = vpop.f32.mrf.mxu0
        %v888 = vadd.f32 %v770, %v887
        %889 = vmatmul.bf16.gmra.mxu0 %v835
        %v890 = vpop.f32.mrf.mxu0
        %v891 = vadd.f32 %v770, %v890
        %v892 = vpop.f32.mrf.mxu0
        %v893 = vadd.f32 %v770, %v892
        %894 = vdwg.mxu0
        %895 = vmatpush.bf16.msra.mxu0 0
        %896 = vmatpush.bf16.msra.mxu0 0
        %897 = vmatpush.bf16.msra.mxu0 0
        %898 = vmatpush.bf16.msra.mxu0 0
        %899 = vmatpush.bf16.msra.mxu0 0
        %900 = vmatpush.bf16.msra.mxu0 0
        %901 = vmatpush.bf16.msra.mxu0 0
        %902 = vmatpush.bf16.msra.mxu0 %v811
        %903 = vmatmul.bf16.gmra.mxu0 %v826
        %v904 = vpop.f32.mrf.mxu0
        %v905 = vadd.f32 %v771, %v904
        %v906 = vpop.f32.mrf.mxu0
        %v907 = vadd.f32 %v771, %v906
        %908 = vmatmul.bf16.gmra.mxu0 %v829
        %v909 = vpop.f32.mrf.mxu0
        %v910 = vadd.f32 %v771, %v909
        %v911 = vpop.f32.mrf.mxu0
        %v912 = vadd.f32 %v771, %v911
        %913 = vmatmul.bf16.gmra.mxu0 %v832
        %v914 = vpop.f32.mrf.mxu0
        %v915 = vadd.f32 %v771, %v914
        %v916 = vpop.f32.mrf.mxu0
        %v917 = vadd.f32 %v771, %v916
        %918 = vmatmul.bf16.gmra.mxu0 %v835
        %v919 = vpop.f32.mrf.mxu0
        %v920 = vadd.f32 %v771, %v919
        %v921 = vpop.f32.mrf.mxu0
        %v922 = vadd.f32 %v771, %v921
        %923 = vdwg.mxu0
        %924 = vmatpush.bf16.msra.mxu0 0
        %925 = vmatpush.bf16.msra.mxu0 0
        %926 = vmatpush.bf16.msra.mxu0 0
        %927 = vmatpush.bf16.msra.mxu0 0
        %928 = vmatpush.bf16.msra.mxu0 0
        %929 = vmatpush.bf16.msra.mxu0 0
        %930 = vmatpush.bf16.msra.mxu0 0
        %931 = vmatpush.bf16.msra.mxu0 %v812
        %932 = vmatmul.bf16.gmra.mxu0 %v826
        %v933 = vpop.f32.mrf.mxu0
        %v934 = vadd.f32 %v772, %v933
        %v935 = vpop.f32.mrf.mxu0
        %v936 = vadd.f32 %v772, %v935
        %937 = vmatmul.bf16.gmra.mxu0 %v829
        %v938 = vpop.f32.mrf.mxu0
        %v939 = vadd.f32 %v772, %v938
        %v940 = vpop.f32.mrf.mxu0
        %v941 = vadd.f32 %v772, %v940
        %942 = vmatmul.bf16.gmra.mxu0 %v832
        %v943 = vpop.f32.mrf.mxu0
        %v944 = vadd.f32 %v772, %v943
        %v945 = vpop.f32.mrf.mxu0
        %v946 = vadd.f32 %v772, %v945
        %947 = vmatmul.bf16.gmra.mxu0 %v835
        %v948 = vpop.f32.mrf.mxu0
        %v949 = vadd.f32 %v772, %v948
        %v950 = vpop.f32.mrf.mxu0
        %v951 = vadd.f32 %v772, %v950
        %952 = vdwg.mxu0
        %953 = vmatpush.bf16.msra.mxu0 0
        %954 = vmatpush.bf16.msra.mxu0 0
        %955 = vmatpush.bf16.msra.mxu0 0
        %956 = vmatpush.bf16.msra.mxu0 0
        %957 = vmatpush.bf16.msra.mxu0 0
        %958 = vmatpush.bf16.msra.mxu0 0
        %959 = vmatpush.bf16.msra.mxu0 0
        %960 = vmatpush.bf16.msra.mxu0 %v813
        %961 = vmatmul.bf16.gmra.mxu0 %v826
        %v962 = vpop.f32.mrf.mxu0
        %v963 = vadd.f32 %v773, %v962
        %v964 = vpop.f32.mrf.mxu0
        %v965 = vadd.f32 %v773, %v964
        %966 = vmatmul.bf16.gmra.mxu0 %v829
        %v967 = vpop.f32.mrf.mxu0
        %v968 = vadd.f32 %v773, %v967
        %v969 = vpop.f32.mrf.mxu0
        %v970 = vadd.f32 %v773, %v969
        %971 = vmatmul.bf16.gmra.mxu0 %v832
        %v972 = vpop.f32.mrf.mxu0
        %v973 = vadd.f32 %v773, %v972
        %v974 = vpop.f32.mrf.mxu0
        %v975 = vadd.f32 %v773, %v974
        %976 = vmatmul.bf16.gmra.mxu0 %v835
        %v977 = vpop.f32.mrf.mxu0
        %v978 = vadd.f32 %v773, %v977
        %v979 = vpop.f32.mrf.mxu0
        %v980 = vadd.f32 %v773, %v979
        %981 = vdwg.mxu0
        %982 = vmatpush.bf16.msra.mxu0 0
        %983 = vmatpush.bf16.msra.mxu0 0
        %984 = vmatpush.bf16.msra.mxu0 0
        %985 = vmatpush.bf16.msra.mxu0 0
        %986 = vmatpush.bf16.msra.mxu0 0
        %987 = vmatpush.bf16.msra.mxu0 0
        %988 = vmatpush.bf16.msra.mxu0 0
        %989 = vmatpush.bf16.msra.mxu0 %v814
        %990 = vmatmul.bf16.gmra.mxu0 %v826
        %v991 = vpop.f32.mrf.mxu0
        %v992 = vadd.f32 %v774, %v991
        %v993 = vpop.f32.mrf.mxu0
        %v994 = vadd.f32 %v774, %v993
        %995 = vmatmul.bf16.gmra.mxu0 %v829
        %v996 = vpop.f32.mrf.mxu0
        %v997 = vadd.f32 %v774, %v996
        %v998 = vpop.f32.mrf.mxu0
        %v999 = vadd.f32 %v774, %v998
        %1000 = vmatmul.bf16.gmra.mxu0 %v832
        %v1001 = vpop.f32.mrf.mxu0
        %v1002 = vadd.f32 %v774, %v1001
        %v1003 = vpop.f32.mrf.mxu0
        %v1004 = vadd.f32 %v774, %v1003
        %1005 = vmatmul.bf16.gmra.mxu0 %v835
        %v1006 = vpop.f32.mrf.mxu0
        %v1007 = vadd.f32 %v774, %v1006
        %v1008 = vpop.f32.mrf.mxu0
        %v1009 = vadd.f32 %v774, %v1008
        %1010 = vdwg.mxu0
        %1011 = vmatpush.bf16.msra.mxu0 0
        %1012 = vmatpush.bf16.msra.mxu0 0
        %1013 = vmatpush.bf16.msra.mxu0 0
        %1014 = vmatpush.bf16.msra.mxu0 0
        %1015 = vmatpush.bf16.msra.mxu0 0
        %1016 = vmatpush.bf16.msra.mxu0 0
        %1017 = vmatpush.bf16.msra.mxu0 0
        %1018 = vmatpush.bf16.msra.mxu0 %v815
        %1019 = vmatmul.bf16.gmra.mxu0 %v826
        %v1020 = vpop.f32.mrf.mxu0
        %v1021 = vadd.f32 %v775, %v1020
        %v1022 = vpop.f32.mrf.mxu0
        %v1023 = vadd.f32 %v775, %v1022
        %1024 = vmatmul.bf16.gmra.mxu0 %v829
        %v1025 = vpop.f32.mrf.mxu0
        %v1026 = vadd.f32 %v775, %v1025
        %v1027 = vpop.f32.mrf.mxu0
        %v1028 = vadd.f32 %v775, %v1027
        %1029 = vmatmul.bf16.gmra.mxu0 %v832
        %v1030 = vpop.f32.mrf.mxu0
        %v1031 = vadd.f32 %v775, %v1030
        %v1032 = vpop.f32.mrf.mxu0
        %v1033 = vadd.f32 %v775, %v1032
        %1034 = vmatmul.bf16.gmra.mxu0 %v835
        %v1035 = vpop.f32.mrf.mxu0
        %v1036 = vadd.f32 %v775, %v1035
        %v1037 = vpop.f32.mrf.mxu0
        %v1038 = vadd.f32 %v775, %v1037
        %1039 = vdwg.mxu0
        %1040 = vmatpush.bf16.msra.mxu0 0
        %1041 = vmatpush.bf16.msra.mxu0 0
        %1042 = vmatpush.bf16.msra.mxu0 0
        %1043 = vmatpush.bf16.msra.mxu0 0
        %1044 = vmatpush.bf16.msra.mxu0 0
        %1045 = vmatpush.bf16.msra.mxu0 0
        %1046 = vmatpush.bf16.msra.mxu0 0
        %1047 = vmatpush.bf16.msra.mxu0 %v816
        %1048 = vmatmul.bf16.gmra.mxu0 %v826
        %v1049 = vpop.f32.mrf.mxu0
        %v1050 = vadd.f32 %v776, %v1049
        %v1051 = vpop.f32.mrf.mxu0
        %v1052 = vadd.f32 %v776, %v1051
        %1053 = vmatmul.bf16.gmra.mxu0 %v829
        %v1054 = vpop.f32.mrf.mxu0
        %v1055 = vadd.f32 %v776, %v1054
        %v1056 = vpop.f32.mrf.mxu0
        %v1057 = vadd.f32 %v776, %v1056
        %1058 = vmatmul.bf16.gmra.mxu0 %v832
        %v1059 = vpop.f32.mrf.mxu0
        %v1060 = vadd.f32 %v776, %v1059
        %v1061 = vpop.f32.mrf.mxu0
        %v1062 = vadd.f32 %v776, %v1061
        %1063 = vmatmul.bf16.gmra.mxu0 %v835
        %v1064 = vpop.f32.mrf.mxu0
        %v1065 = vadd.f32 %v776, %v1064
        %v1066 = vpop.f32.mrf.mxu0
        %v1067 = vadd.f32 %v776, %v1066
        %1068 = vdwg.mxu0
        %v1069 = vpack.c.bf16 %v876, %v847
        %v1070 = vpack.c.bf16 %v934, %v905
        %v1071 = vpack.c.bf16 %v992, %v963
        %v1072 = vpack.c.bf16 %v1050, %v1021
        %v1073 = vpack.c.bf16 %v878, %v849
        %v1074 = vpack.c.bf16 %v936, %v907
        %v1075 = vpack.c.bf16 %v994, %v965
        %v1076 = vpack.c.bf16 %v1052, %v1023
        %v1077 = vpack.c.bf16 %v881, %v852
        %v1078 = vpack.c.bf16 %v939, %v910
        %v1079 = vpack.c.bf16 %v997, %v968
        %v1080 = vpack.c.bf16 %v1055, %v1026
        %v1081 = vpack.c.bf16 %v883, %v854
        %v1082 = vpack.c.bf16 %v941, %v912
        %v1083 = vpack.c.bf16 %v999, %v970
        %v1084 = vpack.c.bf16 %v1057, %v1028
        %v1085 = vpack.c.bf16 %v886, %v857
        %v1086 = vpack.c.bf16 %v944, %v915
        %v1087 = vpack.c.bf16 %v1002, %v973
        %v1088 = vpack.c.bf16 %v1060, %v1031
        %v1089 = vpack.c.bf16 %v888, %v859
        %v1090 = vpack.c.bf16 %v946, %v917
        %v1091 = vpack.c.bf16 %v1004, %v975
        %v1092 = vpack.c.bf16 %v1062, %v1033
        %v1093 = vpack.c.bf16 %v891, %v862
        %v1094 = vpack.c.bf16 %v949, %v920
        %v1095 = vpack.c.bf16 %v1007, %v978
        %v1096 = vpack.c.bf16 %v1065, %v1036
        %v1097 = vpack.c.bf16 %v893, %v864
        %v1098 = vpack.c.bf16 %v951, %v922
        %v1099 = vpack.c.bf16 %v1009, %v980
        %v1100 = vpack.c.bf16 %v1067, %v1038
        %1101 = vst [vmem:[%s280] sm:$0xff] %v1069
        %1102 = vst [vmem:[%s280 + $0x8] sm:$0xff] %v1070
        %1103 = vst [vmem:[%s280 + $0x10] sm:$0xff] %v1071
        %1104 = vst [vmem:[%s280 + $0x18] sm:$0xff] %v1072
        %1105 = vst [vmem:[%s280 + $0x20] sm:$0xff] %v1073
        %1106 = vst [vmem:[%s280 + $0x28] sm:$0xff] %v1074
        %1107 = vst [vmem:[%s280 + $0x30] sm:$0xff] %v1075
        %1108 = vst [vmem:[%s280 + $0x38] sm:$0xff] %v1076
        %1109 = vst [vmem:[%s280 + $0x40] sm:$0xff] %v1077
        %1110 = vst [vmem:[%s280 + $0x48] sm:$0xff] %v1078
        %1111 = vst [vmem:[%s280 + $0x50] sm:$0xff] %v1079
        %1112 = vst [vmem:[%s280 + $0x58] sm:$0xff] %v1080
        %1113 = vst [vmem:[%s280 + $0x60] sm:$0xff] %v1081
        %1114 = vst [vmem:[%s280 + $0x68] sm:$0xff] %v1082
        %1115 = vst [vmem:[%s280 + $0x70] sm:$0xff] %v1083
        %1116 = vst [vmem:[%s280 + $0x78] sm:$0xff] %v1084
        %1117 = vst [vmem:[%s280 + $0x80] sm:$0xff] %v1085
        %1118 = vst [vmem:[%s280 + $0x88] sm:$0xff] %v1086
        %1119 = vst [vmem:[%s280 + $0x90] sm:$0xff] %v1087
        %1120 = vst [vmem:[%s280 + $0x98] sm:$0xff] %v1088
        %1121 = vst [vmem:[%s280 + $0xa0] sm:$0xff] %v1089
        %1122 = vst [vmem:[%s280 + $0xa8] sm:$0xff] %v1090
        %1123 = vst [vmem:[%s280 + $0xb0] sm:$0xff] %v1091
        %1124 = vst [vmem:[%s280 + $0xb8] sm:$0xff] %v1092
        %1125 = vst [vmem:[%s280 + $0xc0] sm:$0xff] %v1093
        %1126 = vst [vmem:[%s280 + $0xc8] sm:$0xff] %v1094
        %1127 = vst [vmem:[%s280 + $0xd0] sm:$0xff] %v1095
        %1128 = vst [vmem:[%s280 + $0xd8] sm:$0xff] %v1096
        %1129 = vst [vmem:[%s280 + $0xe0] sm:$0xff] %v1097
        %1130 = vst [vmem:[%s280 + $0xe8] sm:$0xff] %v1098
        %1131 = vst [vmem:[%s280 + $0xf0] sm:$0xff] %v1099
        %1132 = vst [vmem:[%s280 + $0xf8] sm:$0xff] %v1100
        %s1133 = sand.u32 %s178, 1
        %s1134 = sand.u32 %s178, 1
        %s1135 = smul.addr %s1134, 256
        %s1136 = scalar_lea.vmem [#allocation2], %s1135
        // Predicated region
        $region49: #{gridnet_block_forward.13} parent=47 // pred_check
          %p1137 = pneg %p188
        $region50: #{gridnet_block_forward.13} parent=47 // pred_check_branch
          %1139 = sbr.rel (%p1137) target = $region52
        $region51: #{gridnet_block_forward.13} parent=47 // pred_region
          %s1140 = smul.u32 8, %s18
          %s1141 = ssub.s32 14, %s1140
          %p1142 = scmp.lt.s32.totalorder %s1141, 8
          %s1143 = scalar_select %p1142, %s1141, 8
          %s1144 = smul.u32 4, %s1143
          %s1145 = smul.u32 %s1144, 8
          %p1146 = scmp.ne.s32.totalorder 0, %s1145
          %s1147 = smul.addr %s1140, 8
          %s1148 = smul.addr %s1147, 4
          %s1149 = scalar_lea.vmem %s7, %s1148
          // Predicated region
          $region53: #{gridnet_block_forward.13} parent=51 // pred_check
            %p1150 = pneg %p1146
          $region54: #{gridnet_block_forward.13} parent=51 // pred_check_branch
            %1152 = sbr.rel (%p1150) target = $region56
          $region55: #{gridnet_block_forward.13} parent=51 // pred_region
            // Predicated region
            $region57: #{gridnet_block_forward.13} parent=55 // pred_check
              _
            $region58: #{gridnet_block_forward.13} parent=55 // pred_check_branch
              %1154 = sbr.rel (0) target = $region60
            $region59: #{gridnet_block_forward.13} parent=55 // pred_region
              %s1155 = sshrl.u32 %s1143, 3
              // While loop
              $region61: #{gridnet_block_forward.13} parent=59 // loop_pre_header
                _
              $region62: #{gridnet_block_forward.13} parent=59 // loop_header
                %s1157 = sphi 0, %s1159
                %p1158 = scmp.ge.s32.totalorder %s1157, %s1155
                %s1162 = sphi 0, %s1231
                %s1163 = sphi %s1136, %s1234
                %s1164 = sphi %s1149, %s1235
              $region63: #{gridnet_block_forward.13} parent=59 // loop_header_branch
                %1161 = sbr.rel (%p1158) target = $region67
              $region64: #{gridnet_block_forward.13} parent=59 // loop_body
                %v1165 = vld [vmem:[%s1163] sm:$0xff]
                %1166 = vst [vmem:[%s1164] sm:$0xff] %v1165
                %v1167 = vld [vmem:[%s1163 + $0x20] sm:$0xff]
                %1168 = vst [vmem:[%s1164 + $0x20] sm:$0xff] %v1167
                %v1169 = vld [vmem:[%s1163 + $0x40] sm:$0xff]
                %1170 = vst [vmem:[%s1164 + $0x40] sm:$0xff] %v1169
                %v1171 = vld [vmem:[%s1163 + $0x60] sm:$0xff]
                %1172 = vst [vmem:[%s1164 + $0x60] sm:$0xff] %v1171
                %v1173 = vld [vmem:[%s1163 + $0x80] sm:$0xff]
                %1174 = vst [vmem:[%s1164 + $0x80] sm:$0xff] %v1173
                %v1175 = vld [vmem:[%s1163 + $0xa0] sm:$0xff]
                %1176 = vst [vmem:[%s1164 + $0xa0] sm:$0xff] %v1175
                %v1177 = vld [vmem:[%s1163 + $0xc0] sm:$0xff]
                %1178 = vst [vmem:[%s1164 + $0xc0] sm:$0xff] %v1177
                %v1179 = vld [vmem:[%s1163 + $0xe0] sm:$0xff]
                %1180 = vst [vmem:[%s1164 + $0xe0] sm:$0xff] %v1179
                %v1181 = vld [vmem:[%s1163 + $0x8] sm:$0xff]
                %1182 = vst [vmem:[%s1164 + $0x8] sm:$0xff] %v1181
                %v1183 = vld [vmem:[%s1163 + $0x28] sm:$0xff]
                %1184 = vst [vmem:[%s1164 + $0x28] sm:$0xff] %v1183
                %v1185 = vld [vmem:[%s1163 + $0x48] sm:$0xff]
                %1186 = vst [vmem:[%s1164 + $0x48] sm:$0xff] %v1185
                %v1187 = vld [vmem:[%s1163 + $0x68] sm:$0xff]
                %1188 = vst [vmem:[%s1164 + $0x68] sm:$0xff] %v1187
                %v1189 = vld [vmem:[%s1163 + $0x88] sm:$0xff]
                %1190 = vst [vmem:[%s1164 + $0x88] sm:$0xff] %v1189
                %v1191 = vld [vmem:[%s1163 + $0xa8] sm:$0xff]
                %1192 = vst [vmem:[%s1164 + $0xa8] sm:$0xff] %v1191
                %v1193 = vld [vmem:[%s1163 + $0xc8] sm:$0xff]
                %1194 = vst [vmem:[%s1164 + $0xc8] sm:$0xff] %v1193
                %v1195 = vld [vmem:[%s1163 + $0xe8] sm:$0xff]
                %1196 = vst [vmem:[%s1164 + $0xe8] sm:$0xff] %v1195
                %v1197 = vld [vmem:[%s1163 + $0x10] sm:$0xff]
                %1198 = vst [vmem:[%s1164 + $0x10] sm:$0xff] %v1197
                %v1199 = vld [vmem:[%s1163 + $0x30] sm:$0xff]
                %1200 = vst [vmem:[%s1164 + $0x30] sm:$0xff] %v1199
                %v1201 = vld [vmem:[%s1163 + $0x50] sm:$0xff]
                %1202 = vst [vmem:[%s1164 + $0x50] sm:$0xff] %v1201
                %v1203 = vld [vmem:[%s1163 + $0x70] sm:$0xff]
                %1204 = vst [vmem:[%s1164 + $0x70] sm:$0xff] %v1203
                %v1205 = vld [vmem:[%s1163 + $0x90] sm:$0xff]
                %1206 = vst [vmem:[%s1164 + $0x90] sm:$0xff] %v1205
                %v1207 = vld [vmem:[%s1163 + $0xb0] sm:$0xff]
                %1208 = vst [vmem:[%s1164 + $0xb0] sm:$0xff] %v1207
                %v1209 = vld [vmem:[%s1163 + $0xd0] sm:$0xff]
                %1210 = vst [vmem:[%s1164 + $0xd0] sm:$0xff] %v1209
                %v1211 = vld [vmem:[%s1163 + $0xf0] sm:$0xff]
                %1212 = vst [vmem:[%s1164 + $0xf0] sm:$0xff] %v1211
                %v1213 = vld [vmem:[%s1163 + $0x18] sm:$0xff]
                %1214 = vst [vmem:[%s1164 + $0x18] sm:$0xff] %v1213
                %v1215 = vld [vmem:[%s1163 + $0x38] sm:$0xff]
                %1216 = vst [vmem:[%s1164 + $0x38] sm:$0xff] %v1215
                %v1217 = vld [vmem:[%s1163 + $0x58] sm:$0xff]
                %1218 = vst [vmem:[%s1164 + $0x58] sm:$0xff] %v1217
                %v1219 = vld [vmem:[%s1163 + $0x78] sm:$0xff]
                %1220 = vst [vmem:[%s1164 + $0x78] sm:$0xff] %v1219
                %v1221 = vld [vmem:[%s1163 + $0x98] sm:$0xff]
                %1222 = vst [vmem:[%s1164 + $0x98] sm:$0xff] %v1221
                %v1223 = vld [vmem:[%s1163 + $0xb8] sm:$0xff]
                %1224 = vst [vmem:[%s1164 + $0xb8] sm:$0xff] %v1223
                %v1225 = vld [vmem:[%s1163 + $0xd8] sm:$0xff]
                %1226 = vst [vmem:[%s1164 + $0xd8] sm:$0xff] %v1225
                %v1227 = vld [vmem:[%s1163 + $0xf8] sm:$0xff]
                %1228 = vst [vmem:[%s1164 + $0xf8] sm:$0xff] %v1227
                %s1229 = sadd.s32 1, %s1162
                %p1230 = scmp.ge.s32.totalorder %s1229, %s1155
                %s1231 = scalar_select %p1230, 0, %s1229
                %s1232 = smul.u32 %s1231, 256
                %s1233 = smul.u32 %s1231, 256
                %s1234 = scalar_lea.vmem %s1136, %s1232 [#allocation2]
                %s1235 = scalar_lea.vmem %s1149, %s1233
              $region65: #{gridnet_block_forward.13} parent=59 // loop_footer
                %s1159 = sadd.s32 %s1157, 1
              $region66: #{gridnet_block_forward.13} parent=59 // loop_footer_branch
                %1156 = sbr.rel target = $region62
              $region67: #{gridnet_block_forward.13} parent=59 // loop_exit
                _
              %s1236 = sshrl.u32 %s1143, 3
              %s1237 = sand.u32 %s1143, 7
              %s1238 = smul.u32 %s1236, 8
              %s1239 = smul.u32 32, %s1238
              %s1240 = scalar_lea.vmem %s1136, %s1239 [#allocation2]
              %s1241 = smul.u32 32, %s1238
              %s1242 = scalar_lea.vmem %s1149, %s1241
              // While loop
              $region68: #{gridnet_block_forward.13} parent=59 // loop_pre_header
                _
              $region69: #{gridnet_block_forward.13} parent=59 // loop_header
                %s1244 = sphi 0, %s1246
                %p1245 = scmp.ge.s32.totalorder %s1244, %s1237
                %s1249 = sphi 0, %s1262
                %s1250 = sphi %s1240, %s1265
                %s1251 = sphi %s1242, %s1266
              $region70: #{gridnet_block_forward.13} parent=59 // loop_header_branch
                %1248 = sbr.rel (%p1245) target = $region74
              $region71: #{gridnet_block_forward.13} parent=59 // loop_body
                %v1252 = vld [vmem:[%s1250] sm:$0xff]
                %1253 = vst [vmem:[%s1251] sm:$0xff] %v1252
                %v1254 = vld [vmem:[%s1250 + $0x8] sm:$0xff]
                %1255 = vst [vmem:[%s1251 + $0x8] sm:$0xff] %v1254
                %v1256 = vld [vmem:[%s1250 + $0x10] sm:$0xff]
                %1257 = vst [vmem:[%s1251 + $0x10] sm:$0xff] %v1256
                %v1258 = vld [vmem:[%s1250 + $0x18] sm:$0xff]
                %1259 = vst [vmem:[%s1251 + $0x18] sm:$0xff] %v1258
                %s1260 = sadd.s32 1, %s1249
                %p1261 = scmp.ge.s32.totalorder %s1260, %s1237
                %s1262 = scalar_select %p1261, 0, %s1260
                %s1263 = smul.u32 %s1262, 32
                %s1264 = smul.u32 %s1262, 32
                %s1265 = scalar_lea.vmem %s1240, %s1263 [#allocation2]
                %s1266 = scalar_lea.vmem %s1242, %s1264
              $region72: #{gridnet_block_forward.13} parent=59 // loop_footer
                %s1246 = sadd.s32 %s1244, 1
              $region73: #{gridnet_block_forward.13} parent=59 // loop_footer_branch
                %1243 = sbr.rel target = $region69
              $region74: #{gridnet_block_forward.13} parent=59 // loop_exit
                _
            $region60: #{gridnet_block_forward.13} parent=55 // pred_fallthru
              _
            // Predicated region
            $region75: #{gridnet_block_forward.13} parent=55 // pred_check
              _
            $region76: #{gridnet_block_forward.13} parent=55 // pred_check_branch
              %1268 = sbr.rel target = $region78
            $region77: #{gridnet_block_forward.13} parent=55 // pred_region
              _
            $region78: #{gridnet_block_forward.13} parent=55 // pred_fallthru
              _
          $region56: #{gridnet_block_forward.13} parent=51 // pred_fallthru
            _
          %1269 = vnop
        $region52: #{gridnet_block_forward.13} parent=47 // pred_fallthru
          _
      $region48: #{gridnet_block_forward.13} parent=5 // pred_fallthru
        _
      %p1270 = scmp.le.s32.totalorder 2, %s13
      // Predicated region
      $region79: #{gridnet_block_forward.13} parent=5 // pred_check
        %p1271 = pneg %p1270
      $region80: #{gridnet_block_forward.13} parent=5 // pred_check_branch
        %1273 = sbr.rel (%p1271) target = $region82
      $region81: #{gridnet_block_forward.13} parent=5 // pred_region
        %s1274 = ssub.s32 %s13, 2
        // Predicated region
        $region83: #{gridnet_block_forward.13} parent=81 // pred_check
          %p1275 = pneg %p194
        $region84: #{gridnet_block_forward.13} parent=81 // pred_check_branch
          %1277 = sbr.rel (%p1275) target = $region86
        $region85: #{gridnet_block_forward.13} parent=81 // pred_region
          %s1278 = sand.u32 %s179, 1
          %s1279 = sand.u32 %s179, 1
          %s1280 = smul.addr %s1279, 256
          %s1281 = scalar_lea.vmem [#allocation2], %s1280
        $region86: #{gridnet_block_forward.13} parent=81 // pred_fallthru
          _
      $region82: #{gridnet_block_forward.13} parent=5 // pred_fallthru
        _
    $region6: #{gridnet_block_forward.13} parent=1 // loop_footer
      %s17 = sadd.s32 1, %s13
    $region7: #{gridnet_block_forward.13} parent=1 // loop_footer_branch
      %12 = sbr.rel target = $region3
    $region8: #{gridnet_block_forward.13} parent=1 // loop_exit
      _

// kernel: gridnet_block_forward.14
$region0: #{gridnet_block_forward.14}
  #allocation0 [shape = 'u32[]', space=smem, size = 0x4, offset = 0x4, fixed_abs, tag = 'smem constant byte address 0x4 - core index']
  #allocation1 [shape = 'u32[72,128]{1,0:T(1,128)}', space=vmem, size = 0x9000, scoped, tag = 'internal scratch']
  #allocation2 [shape = 'f32[16,128]{1,0:T(8,128)}', space=vmem, size = 0x2000, scoped, tag = 'scratch operand']
  #allocation3 [shape = 'f32[16,128]{1,0:T(8,128)}', space=vmem, size = 0x2000, scoped, tag = 'scratch operand']
  #allocation4 [shape = 'f32[16,128]{1,0:T(8,128)}', space=vmem, size = 0x2000, scoped, tag = 'scratch operand']
  #allocation5 [shape = 'f32[16,128]{1,0:T(8,128)}', space=vmem, size = 0x2000, scoped, tag = 'scratch operand']
  %s0 = inlined_call_operand.vmem [shape: bf16[7,16,512], index: 0, kind: input, shape index: {}]
  %s1 = inlined_call_operand.vmem [shape: bf16[7,16,512], index: 1, kind: input, shape index: {}]
  %s2 = inlined_call_operand.vmem [shape: bf16[128,512], index: 2, kind: input, shape index: {}]
  %s3 = inlined_call_operand.vmem [shape: bf16[128,512], index: 3, kind: input, shape index: {}]
  %s4 = inlined_call_operand.vmem [shape: bf16[7,16,128], index: 4, kind: output, shape index: {0}]
  %s5 = inlined_call_operand.vmem [shape: bf16[7,16,128], index: 5, kind: output, shape index: {1}]
  %6 = xla_tuple %s4, %s5
  %s7 = sld [smem:[#allocation0]]
  $region41: #{gridnet_block_forward.14} parent=0
    _
  %s9 = ssub.s32 1, %s7
  %s10 = scalar_select 0, %s9, %s7
  // Predicated region
  $region2: #{gridnet_block_forward.14} parent=0 // pred_check
    _
  $region3: #{gridnet_block_forward.14} parent=0 // pred_check_branch
    %12 = sbr.rel (0) target = $region5
  $region4: #{gridnet_block_forward.14} parent=0 // pred_region
    _
  $region5: #{gridnet_block_forward.14} parent=0 // pred_fallthru
    _
  // Predicated region
  $region6: #{gridnet_block_forward.14} parent=0 // pred_check
    _
  $region7: #{gridnet_block_forward.14} parent=0 // pred_check_branch
    %14 = sbr.rel (0) target = $region9
  $region8: #{gridnet_block_forward.14} parent=0 // pred_region
    _
  $region9: #{gridnet_block_forward.14} parent=0 // pred_fallthru
    _
  // Predicated region
  $region10: #{gridnet_block_forward.14} parent=0 // pred_check
    _
  $region11: #{gridnet_block_forward.14} parent=0 // pred_check_branch
    %16 = sbr.rel (0) target = $region13
  $region12: #{gridnet_block_forward.14} parent=0 // pred_region
    _
  $region13: #{gridnet_block_forward.14} parent=0 // pred_fallthru
    _
  // Predicated region
  $region14: #{gridnet_block_forward.14} parent=0 // pred_check
    _
  $region15: #{gridnet_block_forward.14} parent=0 // pred_check_branch
    %18 = sbr.rel (0) target = $region17
  $region16: #{gridnet_block_forward.14} parent=0 // pred_region
    _
  $region17: #{gridnet_block_forward.14} parent=0 // pred_fallthru
    _
  %19 = vst [vmem:[#allocation2] sm:$0xff] 0.0
  %20 = vst [vmem:[#allocation2 + $0x8] sm:$0xff] 0.0
  %21 = vst [vmem:[#allocation3] sm:$0xff] 0.0
  %22 = vst [vmem:[#allocation3 + $0x8] sm:$0xff] 0.0
  %23 = vst [vmem:[#allocation4] sm:$0xff] 0.0
  %24 = vst [vmem:[#allocation4 + $0x8] sm:$0xff] 0.0
  %25 = vst [vmem:[#allocation5] sm:$0xff] 0.0
  %26 = vst [vmem:[#allocation5 + $0x8] sm:$0xff] 0.0
  loop: start=0, step=1, limit=7
  $region18: #{gridnet_block_forward.14} parent=0 // loop_pre_header
    _
  $region19: #{gridnet_block_forward.14} parent=0 // loop_header
    %s28 = sphi 0, %s32
    %p29 = scmp.ge.s32.totalorder %s28, 7
  $region20: #{gridnet_block_forward.14} parent=0 // loop_header_branch
    %31 = sbr.rel (%p29) target = $region24
  $region21: #{gridnet_block_forward.14} parent=0 // loop_body
    %s33 = ssub.s32 6, %s28
    %s34 = smul.u32 %s28, 8
    %s35 = smul.addr %s34, 4
    %s36 = scalar_lea.vmem %s0, %s35
    %v37 = vld [vmem:[%s36] sm:$0xff]
    %v38 = vld [vmem:[%s36 + $0x8] sm:$0xff]
    %v39 = vld [vmem:[%s36 + $0x10] sm:$0xff]
    %v40 = vld [vmem:[%s36 + $0x18] sm:$0xff]
    %v41 = vld [vmem:[#allocation2] sm:$0xff]
    %v42 = vld [vmem:[#allocation2 + $0x8] sm:$0xff]
    %v43 = vld [vmem:[#allocation3] sm:$0xff]
    %v44 = vld [vmem:[#allocation3 + $0x8] sm:$0xff]
    %v45 = vunpack.c.l.bf16 %v37
    %v46 = vunpack.c.h.bf16 %v37
    %v47 = vunpack.c.l.bf16 %v38
    %v48 = vunpack.c.h.bf16 %v38
    %v49 = vunpack.c.l.bf16 %v39
    %v50 = vunpack.c.h.bf16 %v39
    %v51 = vunpack.c.l.bf16 %v40
    %v52 = vunpack.c.h.bf16 %v40
    %v53 = vpack.c.bf16 %v42, %v41
    %v54 = vld [vmem:[%s2] sm:$0xff]
    %v55 = vld [vmem:[%s2 + $0x8] sm:$0xff]
    %v56 = vld [vmem:[%s2 + $0x10] sm:$0xff]
    %v57 = vld [vmem:[%s2 + $0x18] sm:$0xff]
    %v58 = vld [vmem:[%s2 + $0x20] sm:$0xff]
    %v59 = vld [vmem:[%s2 + $0x28] sm:$0xff]
    %v60 = vld [vmem:[%s2 + $0x30] sm:$0xff]
    %v61 = vld [vmem:[%s2 + $0x38] sm:$0xff]
    %v62 = vld [vmem:[%s2 + $0x40] sm:$0xff]
    %v63 = vld [vmem:[%s2 + $0x48] sm:$0xff]
    %v64 = vld [vmem:[%s2 + $0x50] sm:$0xff]
    %v65 = vld [vmem:[%s2 + $0x58] sm:$0xff]
    %v66 = vld [vmem:[%s2 + $0x60] sm:$0xff]
    %v67 = vld [vmem:[%s2 + $0x68] sm:$0xff]
    %v68 = vld [vmem:[%s2 + $0x70] sm:$0xff]
    %v69 = vld [vmem:[%s2 + $0x78] sm:$0xff]
    %v70 = vld [vmem:[%s2 + $0x80] sm:$0xff]
    %v71 = vld [vmem:[%s2 + $0x88] sm:$0xff]
    %v72 = vld [vmem:[%s2 + $0x90] sm:$0xff]
    %v73 = vld [vmem:[%s2 + $0x98] sm:$0xff]
    %v74 = vld [vmem:[%s2 + $0xa0] sm:$0xff]
    %v75 = vld [vmem:[%s2 + $0xa8] sm:$0xff]
    %v76 = vld [vmem:[%s2 + $0xb0] sm:$0xff]
    %v77 = vld [vmem:[%s2 + $0xb8] sm:$0xff]
    %v78 = vld [vmem:[%s2 + $0xc0] sm:$0xff]
    %v79 = vld [vmem:[%s2 + $0xc8] sm:$0xff]
    %v80 = vld [vmem:[%s2 + $0xd0] sm:$0xff]
    %v81 = vld [vmem:[%s2 + $0xd8] sm:$0xff]
    %v82 = vld [vmem:[%s2 + $0xe0] sm:$0xff]
    %v83 = vld [vmem:[%s2 + $0xe8] sm:$0xff]
    %v84 = vld [vmem:[%s2 + $0xf0] sm:$0xff]
    %v85 = vld [vmem:[%s2 + $0xf8] sm:$0xff]
    %v118 = vunpack.c.l.b16 %v54
    %v119 = vunpack.c.h.b16 %v54
    %v120 = vunpack.c.l.b16 %v55
    %v121 = vunpack.c.h.b16 %v55
    %v122 = vunpack.c.l.b16 %v56
    %v123 = vunpack.c.h.b16 %v56
    %v124 = vunpack.c.l.b16 %v57
    %v125 = vunpack.c.h.b16 %v57
    %v126 = vunpack.c.l.b16 %v58
    %v127 = vunpack.c.h.b16 %v58
    %v128 = vunpack.c.l.b16 %v59
    %v129 = vunpack.c.h.b16 %v59
    %v130 = vunpack.c.l.b16 %v60
    %v131 = vunpack.c.h.b16 %v60
    %v132 = vunpack.c.l.b16 %v61
    %v133 = vunpack.c.h.b16 %v61
    %v134 = vunpack.c.l.b16 %v62
    %v135 = vunpack.c.h.b16 %v62
    %v136 = vunpack.c.l.b16 %v63
    %v137 = vunpack.c.h.b16 %v63
    %v138 = vunpack.c.l.b16 %v64
    %v139 = vunpack.c.h.b16 %v64
    %v140 = vunpack.c.l.b16 %v65
    %v141 = vunpack.c.h.b16 %v65
    %v142 = vunpack.c.l.b16 %v66
    %v143 = vunpack.c.h.b16 %v66
    %v144 = vunpack.c.l.b16 %v67
    %v145 = vunpack.c.h.b16 %v67
    %v146 = vunpack.c.l.b16 %v68
    %v147 = vunpack.c.h.b16 %v68
    %v148 = vunpack.c.l.b16 %v69
    %v149 = vunpack.c.h.b16 %v69
    %v150 = vunpack.c.l.b16 %v70
    %v151 = vunpack.c.h.b16 %v70
    %v152 = vunpack.c.l.b16 %v71
    %v153 = vunpack.c.h.b16 %v71
    %v154 = vunpack.c.l.b16 %v72
    %v155 = vunpack.c.h.b16 %v72
    %v156 = vunpack.c.l.b16 %v73
    %v157 = vunpack.c.h.b16 %v73
    %v158 = vunpack.c.l.b16 %v74
    %v159 = vunpack.c.h.b16 %v74
    %v160 = vunpack.c.l.b16 %v75
    %v161 = vunpack.c.h.b16 %v75
    %v162 = vunpack.c.l.b16 %v76
    %v163 = vunpack.c.h.b16 %v76
    %v164 = vunpack.c.l.b16 %v77
    %v165 = vunpack.c.h.b16 %v77
    %v166 = vunpack.c.l.b16 %v78
    %v167 = vunpack.c.h.b16 %v78
    %v168 = vunpack.c.l.b16 %v79
    %v169 = vunpack.c.h.b16 %v79
    %v170 = vunpack.c.l.b16 %v80
    %v171 = vunpack.c.h.b16 %v80
    %v172 = vunpack.c.l.b16 %v81
    %v173 = vunpack.c.h.b16 %v81
    %v174 = vunpack.c.l.b16 %v82
    %v175 = vunpack.c.h.b16 %v82
    %v176 = vunpack.c.l.b16 %v83
    %v177 = vunpack.c.h.b16 %v83
    %v178 = vunpack.c.l.b16 %v84
    %v179 = vunpack.c.h.b16 %v84
    %v180 = vunpack.c.l.b16 %v85
    %v181 = vunpack.c.h.b16 %v85
    %v182 = vpack.c.b16 %v122, %v118
    %v183 = vpack.c.b16 %v123, %v119
    %v184 = vpack.c.b16 %v124, %v120
    %v185 = vpack.c.b16 %v125, %v121
    %v186 = vpack.c.b16 %v130, %v126
    %v187 = vpack.c.b16 %v131, %v127
    %v188 = vpack.c.b16 %v132, %v128
    %v189 = vpack.c.b16 %v133, %v129
    %v190 = vpack.c.b16 %v138, %v134
    %v191 = vpack.c.b16 %v139, %v135
    %v192 = vpack.c.b16 %v140, %v136
    %v193 = vpack.c.b16 %v141, %v137
    %v194 = vpack.c.b16 %v146, %v142
    %v195 = vpack.c.b16 %v147, %v143
    %v196 = vpack.c.b16 %v148, %v144
    %v197 = vpack.c.b16 %v149, %v145
    %v198 = vpack.c.b16 %v154, %v150
    %v199 = vpack.c.b16 %v155, %v151
    %v200 = vpack.c.b16 %v156, %v152
    %v201 = vpack.c.b16 %v157, %v153
    %v202 = vpack.c.b16 %v162, %v158
    %v203 = vpack.c.b16 %v163, %v159
    %v204 = vpack.c.b16 %v164, %v160
    %v205 = vpack.c.b16 %v165, %v161
    %v206 = vpack.c.b16 %v170, %v166
    %v207 = vpack.c.b16 %v171, %v167
    %v208 = vpack.c.b16 %v172, %v168
    %v209 = vpack.c.b16 %v173, %v169
    %v210 = vpack.c.b16 %v178, %v174
    %v211 = vpack.c.b16 %v179, %v175
    %v212 = vpack.c.b16 %v180, %v176
    %v213 = vpack.c.b16 %v181, %v177
    %246 = vmatpush.bf16.msra.mxu0 %v210
    %247 = vmatpush.bf16.msra.mxu0 %v206
    %248 = vmatpush.bf16.msra.mxu0 %v202
    %249 = vmatpush.bf16.msra.mxu0 %v198
    %250 = vmatpush.bf16.msra.mxu0 %v194
    %251 = vmatpush.bf16.msra.mxu0 %v190
    %252 = vmatpush.bf16.msra.mxu0 %v186
    %253 = vmatpush.bf16.msra.mxu0 %v182
    %254 = vmatmul.bf16.gmra.mxu0 %v53
    %v255 = vpop.f32.mrf.mxu0
    %v256 = vadd.f32 0.0, %v255
    %v257 = vpop.f32.mrf.mxu0
    %v258 = vadd.f32 0.0, %v257
    %259 = vdwg.mxu0
    %260 = vmatpush.bf16.msra.mxu0 %v211
    %261 = vmatpush.bf16.msra.mxu0 %v207
    %262 = vmatpush.bf16.msra.mxu0 %v203
    %263 = vmatpush.bf16.msra.mxu0 %v199
    %264 = vmatpush.bf16.msra.mxu0 %v195
    %265 = vmatpush.bf16.msra.mxu0 %v191
    %266 = vmatpush.bf16.msra.mxu0 %v187
    %267 = vmatpush.bf16.msra.mxu0 %v183
    %268 = vmatmul.bf16.gmra.mxu0 %v53
    %v269 = vpop.f32.mrf.mxu0
    %v270 = vadd.f32 0.0, %v269
    %v271 = vpop.f32.mrf.mxu0
    %v272 = vadd.f32 0.0, %v271
    %273 = vdwg.mxu0
    %274 = vmatpush.bf16.msra.mxu0 %v212
    %275 = vmatpush.bf16.msra.mxu0 %v208
    %276 = vmatpush.bf16.msra.mxu0 %v204
    %277 = vmatpush.bf16.msra.mxu0 %v200
    %278 = vmatpush.bf16.msra.mxu0 %v196
    %279 = vmatpush.bf16.msra.mxu0 %v192
    %280 = vmatpush.bf16.msra.mxu0 %v188
    %281 = vmatpush.bf16.msra.mxu0 %v184
    %282 = vmatmul.bf16.gmra.mxu0 %v53
    %v283 = vpop.f32.mrf.mxu0
    %v284 = vadd.f32 0.0, %v283
    %v285 = vpop.f32.mrf.mxu0
    %v286 = vadd.f32 0.0, %v285
    %287 = vdwg.mxu0
    %288 = vmatpush.bf16.msra.mxu0 %v213
    %289 = vmatpush.bf16.msra.mxu0 %v209
    %290 = vmatpush.bf16.msra.mxu0 %v205
    %291 = vmatpush.bf16.msra.mxu0 %v201
    %292 = vmatpush.bf16.msra.mxu0 %v197
    %293 = vmatpush.bf16.msra.mxu0 %v193
    %294 = vmatpush.bf16.msra.mxu0 %v189
    %295 = vmatpush.bf16.msra.mxu0 %v185
    %296 = vmatmul.bf16.gmra.mxu0 %v53
    %v297 = vpop.f32.mrf.mxu0
    %v298 = vadd.f32 0.0, %v297
    %v299 = vpop.f32.mrf.mxu0
    %v300 = vadd.f32 0.0, %v299
    %301 = vdwg.mxu0
    %v302 = vadd.f32 %v45, %v256
    %v303 = vadd.f32 %v46, %v270
    %v304 = vadd.f32 %v47, %v284
    %v305 = vadd.f32 %v48, %v298
    %v306 = vadd.f32 %v49, %v258
    %v307 = vadd.f32 %v50, %v272
    %v308 = vadd.f32 %v51, %v286
    %v309 = vadd.f32 %v52, %v300
    %v310 = vxor.u32 %v302, 2147483648
    %v311 = vxor.u32 %v306, 2147483648
    %v312 = vmul.f32 %v310, 1.442695
    %v313 = vpow.pop %v312
    %v314 = vmul.f32 %v311, 1.442695
    %v315 = vpow.pop %v314
    %v316 = vadd.f32 %v313, 1.0
    %v317 = vadd.f32 %v315, 1.0
    %v318 = vrcp.pop %v316
    %v319 = vmul.f32 %v316, %v318
    %v320 = vsub.f32 1.0, %v319
    %v321 = vmul.f32 %v318, %v320
    %v322 = vadd.f32 %v318, %v321
    %vm323 = vweird.f32 %v316
    %vm324 = vweird.f32 %v318
    %vm325 = vmor %vm323, %vm324
    %v326 = vsel %vm325, %v318, %v322
    %v327 = vand.u32 2147483647, %v316
    %vm328 = vcmp.eq.f32.partialorder %v327, 8.507059e+37
    %v329 = vand.u32 %v316, 2147483648
    %v330 = vor.u32 1.1754944e-38, %v329
    %v331 = vsel %vm328, %v330, %v326
    %v332 = vmul.f32 1.0, %v331
    %v333 = vrcp.pop %v317
    %v334 = vmul.f32 %v317, %v333
    %v335 = vsub.f32 1.0, %v334
    %v336 = vmul.f32 %v333, %v335
    %v337 = vadd.f32 %v333, %v336
    %vm338 = vweird.f32 %v317
    %vm339 = vweird.f32 %v333
    %vm340 = vmor %vm338, %vm339
    %v341 = vsel %vm340, %v333, %v337
    %v342 = vand.u32 2147483647, %v317
    %vm343 = vcmp.eq.f32.partialorder %v342, 8.507059e+37
    %v344 = vand.u32 %v317, 2147483648
    %v345 = vor.u32 1.1754944e-38, %v344
    %v346 = vsel %vm343, %v345, %v341
    %v347 = vmul.f32 1.0, %v346
    %v348 = vxor.u32 %v303, 2147483648
    %v349 = vxor.u32 %v307, 2147483648
    %v350 = vmul.f32 %v348, 1.442695
    %v351 = vpow.pop %v350
    %v352 = vmul.f32 %v349, 1.442695
    %v353 = vpow.pop %v352
    %v354 = vadd.f32 %v351, 1.0
    %v355 = vadd.f32 %v353, 1.0
    %v356 = vrcp.pop %v354
    %v357 = vmul.f32 %v354, %v356
    %v358 = vsub.f32 1.0, %v357
    %v359 = vmul.f32 %v356, %v358
    %v360 = vadd.f32 %v356, %v359
    %vm361 = vweird.f32 %v354
    %vm362 = vweird.f32 %v356
    %vm363 = vmor %vm361, %vm362
    %v364 = vsel %vm363, %v356, %v360
    %v365 = vand.u32 2147483647, %v354
    %vm366 = vcmp.eq.f32.partialorder %v365, 8.507059e+37
    %v367 = vand.u32 %v354, 2147483648
    %v368 = vor.u32 1.1754944e-38, %v367
    %v369 = vsel %vm366, %v368, %v364
    %v370 = vmul.f32 1.0, %v369
    %v371 = vrcp.pop %v355
    %v372 = vmul.f32 %v355, %v371
    %v373 = vsub.f32 1.0, %v372
    %v374 = vmul.f32 %v371, %v373
    %v375 = vadd.f32 %v371, %v374
    %vm376 = vweird.f32 %v355
    %vm377 = vweird.f32 %v371
    %vm378 = vmor %vm376, %vm377
    %v379 = vsel %vm378, %v371, %v375
    %v380 = vand.u32 2147483647, %v355
    %vm381 = vcmp.eq.f32.partialorder %v380, 8.507059e+37
    %v382 = vand.u32 %v355, 2147483648
    %v383 = vor.u32 1.1754944e-38, %v382
    %v384 = vsel %vm381, %v383, %v379
    %v385 = vmul.f32 1.0, %v384
    %v386 = vtanh.pop %v304
    %v387 = vtanh.pop %v308
    %v388 = vxor.u32 %v305, 2147483648
    %v389 = vxor.u32 %v309, 2147483648
    %v390 = vmul.f32 %v388, 1.442695
    %v391 = vpow.pop %v390
    %v392 = vmul.f32 %v389, 1.442695
    %v393 = vpow.pop %v392
    %v394 = vadd.f32 %v391, 1.0
    %v395 = vadd.f32 %v393, 1.0
    %v396 = vrcp.pop %v394
    %v397 = vmul.f32 %v394, %v396
    %v398 = vsub.f32 1.0, %v397
    %v399 = vmul.f32 %v396, %v398
    %v400 = vadd.f32 %v396, %v399
    %vm401 = vweird.f32 %v394
    %vm402 = vweird.f32 %v396
    %vm403 = vmor %vm401, %vm402
    %v404 = vsel %vm403, %v396, %v400
    %v405 = vand.u32 2147483647, %v394
    %vm406 = vcmp.eq.f32.partialorder %v405, 8.507059e+37
    %v407 = vand.u32 %v394, 2147483648
    %v408 = vor.u32 1.1754944e-38, %v407
    %v409 = vsel %vm406, %v408, %v404
    %v410 = vmul.f32 1.0, %v409
    %v411 = vrcp.pop %v395
    %v412 = vmul.f32 %v395, %v411
    %v413 = vsub.f32 1.0, %v412
    %v414 = vmul.f32 %v411, %v413
    %v415 = vadd.f32 %v411, %v414
    %vm416 = vweird.f32 %v395
    %vm417 = vweird.f32 %v411
    %vm418 = vmor %vm416, %vm417
    %v419 = vsel %vm418, %v411, %v415
    %v420 = vand.u32 2147483647, %v395
    %vm421 = vcmp.eq.f32.partialorder %v420, 8.507059e+37
    %v422 = vand.u32 %v395, 2147483648
    %v423 = vor.u32 1.1754944e-38, %v422
    %v424 = vsel %vm421, %v423, %v419
    %v425 = vmul.f32 1.0, %v424
    %v426 = vmul.f32 %v370, %v43
    %v427 = vmul.f32 %v385, %v44
    %v428 = vmul.f32 %v332, %v386
    %v429 = vmul.f32 %v347, %v387
    %v430 = vadd.f32 %v426, %v428
    %v431 = vadd.f32 %v427, %v429
    %v432 = vtanh.pop %v430
    %v433 = vtanh.pop %v431
    %v434 = vmul.f32 %v410, %v432
    %v435 = vmul.f32 %v425, %v433
    %s436 = smul.u32 %s33, 8
    %s437 = smul.addr %s436, 4
    %s438 = scalar_lea.vmem %s1, %s437
    %v439 = vld [vmem:[%s438] sm:$0xff]
    %v440 = vld [vmem:[%s438 + $0x8] sm:$0xff]
    %v441 = vld [vmem:[%s438 + $0x10] sm:$0xff]
    %v442 = vld [vmem:[%s438 + $0x18] sm:$0xff]
    %v443 = vld [vmem:[#allocation4] sm:$0xff]
    %v444 = vld [vmem:[#allocation4 + $0x8] sm:$0xff]
    %v445 = vld [vmem:[#allocation5] sm:$0xff]
    %v446 = vld [vmem:[#allocation5 + $0x8] sm:$0xff]
    %v447 = vunpack.c.l.bf16 %v439
    %v448 = vunpack.c.h.bf16 %v439
    %v449 = vunpack.c.l.bf16 %v440
    %v450 = vunpack.c.h.bf16 %v440
    %v451 = vunpack.c.l.bf16 %v441
    %v452 = vunpack.c.h.bf16 %v441
    %v453 = vunpack.c.l.bf16 %v442
    %v454 = vunpack.c.h.bf16 %v442
    %v455 = vpack.c.bf16 %v444, %v443
    %v456 = vld [vmem:[%s3] sm:$0xff]
    %v457 = vld [vmem:[%s3 + $0x8] sm:$0xff]
    %v458 = vld [vmem:[%s3 + $0x10] sm:$0xff]
    %v459 = vld [vmem:[%s3 + $0x18] sm:$0xff]
    %v460 = vld [vmem:[%s3 + $0x20] sm:$0xff]
    %v461 = vld [vmem:[%s3 + $0x28] sm:$0xff]
    %v462 = vld [vmem:[%s3 + $0x30] sm:$0xff]
    %v463 = vld [vmem:[%s3 + $0x38] sm:$0xff]
    %v464 = vld [vmem:[%s3 + $0x40] sm:$0xff]
    %v465 = vld [vmem:[%s3 + $0x48] sm:$0xff]
    %v466 = vld [vmem:[%s3 + $0x50] sm:$0xff]
    %v467 = vld [vmem:[%s3 + $0x58] sm:$0xff]
    %v468 = vld [vmem:[%s3 + $0x60] sm:$0xff]
    %v469 = vld [vmem:[%s3 + $0x68] sm:$0xff]
    %v470 = vld [vmem:[%s3 + $0x70] sm:$0xff]
    %v471 = vld [vmem:[%s3 + $0x78] sm:$0xff]
    %v472 = vld [vmem:[%s3 + $0x80] sm:$0xff]
    %v473 = vld [vmem:[%s3 + $0x88] sm:$0xff]
    %v474 = vld [vmem:[%s3 + $0x90] sm:$0xff]
    %v475 = vld [vmem:[%s3 + $0x98] sm:$0xff]
    %v476 = vld [vmem:[%s3 + $0xa0] sm:$0xff]
    %v477 = vld [vmem:[%s3 + $0xa8] sm:$0xff]
    %v478 = vld [vmem:[%s3 + $0xb0] sm:$0xff]
    %v479 = vld [vmem:[%s3 + $0xb8] sm:$0xff]
    %v480 = vld [vmem:[%s3 + $0xc0] sm:$0xff]
    %v481 = vld [vmem:[%s3 + $0xc8] sm:$0xff]
    %v482 = vld [vmem:[%s3 + $0xd0] sm:$0xff]
    %v483 = vld [vmem:[%s3 + $0xd8] sm:$0xff]
    %v484 = vld [vmem:[%s3 + $0xe0] sm:$0xff]
    %v485 = vld [vmem:[%s3 + $0xe8] sm:$0xff]
    %v486 = vld [vmem:[%s3 + $0xf0] sm:$0xff]
    %v487 = vld [vmem:[%s3 + $0xf8] sm:$0xff]
    %v520 = vunpack.c.l.b16 %v456
    %v521 = vunpack.c.h.b16 %v456
    %v522 = vunpack.c.l.b16 %v457
    %v523 = vunpack.c.h.b16 %v457
    %v524 = vunpack.c.l.b16 %v458
    %v525 = vunpack.c.h.b16 %v458
    %v526 = vunpack.c.l.b16 %v459
    %v527 = vunpack.c.h.b16 %v459
    %v528 = vunpack.c.l.b16 %v460
    %v529 = vunpack.c.h.b16 %v460
    %v530 = vunpack.c.l.b16 %v461
    %v531 = vunpack.c.h.b16 %v461
    %v532 = vunpack.c.l.b16 %v462
    %v533 = vunpack.c.h.b16 %v462
    %v534 = vunpack.c.l.b16 %v463
    %v535 = vunpack.c.h.b16 %v463
    %v536 = vunpack.c.l.b16 %v464
    %v537 = vunpack.c.h.b16 %v464
    %v538 = vunpack.c.l.b16 %v465
    %v539 = vunpack.c.h.b16 %v465
    %v540 = vunpack.c.l.b16 %v466
    %v541 = vunpack.c.h.b16 %v466
    %v542 = vunpack.c.l.b16 %v467
    %v543 = vunpack.c.h.b16 %v467
    %v544 = vunpack.c.l.b16 %v468
    %v545 = vunpack.c.h.b16 %v468
    %v546 = vunpack.c.l.b16 %v469
    %v547 = vunpack.c.h.b16 %v469
    %v548 = vunpack.c.l.b16 %v470
    %v549 = vunpack.c.h.b16 %v470
    %v550 = vunpack.c.l.b16 %v471
    %v551 = vunpack.c.h.b16 %v471
    %v552 = vunpack.c.l.b16 %v472
    %v553 = vunpack.c.h.b16 %v472
    %v554 = vunpack.c.l.b16 %v473
    %v555 = vunpack.c.h.b16 %v473
    %v556 = vunpack.c.l.b16 %v474
    %v557 = vunpack.c.h.b16 %v474
    %v558 = vunpack.c.l.b16 %v475
    %v559 = vunpack.c.h.b16 %v475
    %v560 = vunpack.c.l.b16 %v476
    %v561 = vunpack.c.h.b16 %v476
    %v562 = vunpack.c.l.b16 %v477
    %v563 = vunpack.c.h.b16 %v477
    %v564 = vunpack.c.l.b16 %v478
    %v565 = vunpack.c.h.b16 %v478
    %v566 = vunpack.c.l.b16 %v479
    %v567 = vunpack.c.h.b16 %v479
    %v568 = vunpack.c.l.b16 %v480
    %v569 = vunpack.c.h.b16 %v480
    %v570 = vunpack.c.l.b16 %v481
    %v571 = vunpack.c.h.b16 %v481
    %v572 = vunpack.c.l.b16 %v482
    %v573 = vunpack.c.h.b16 %v482
    %v574 = vunpack.c.l.b16 %v483
    %v575 = vunpack.c.h.b16 %v483
    %v576 = vunpack.c.l.b16 %v484
    %v577 = vunpack.c.h.b16 %v484
    %v578 = vunpack.c.l.b16 %v485
    %v579 = vunpack.c.h.b16 %v485
    %v580 = vunpack.c.l.b16 %v486
    %v581 = vunpack.c.h.b16 %v486
    %v582 = vunpack.c.l.b16 %v487
    %v583 = vunpack.c.h.b16 %v487
    %v584 = vpack.c.b16 %v524, %v520
    %v585 = vpack.c.b16 %v525, %v521
    %v586 = vpack.c.b16 %v526, %v522
    %v587 = vpack.c.b16 %v527, %v523
    %v588 = vpack.c.b16 %v532, %v528
    %v589 = vpack.c.b16 %v533, %v529
    %v590 = vpack.c.b16 %v534, %v530
    %v591 = vpack.c.b16 %v535, %v531
    %v592 = vpack.c.b16 %v540, %v536
    %v593 = vpack.c.b16 %v541, %v537
    %v594 = vpack.c.b16 %v542, %v538
    %v595 = vpack.c.b16 %v543, %v539
    %v596 = vpack.c.b16 %v548, %v544
    %v597 = vpack.c.b16 %v549, %v545
    %v598 = vpack.c.b16 %v550, %v546
    %v599 = vpack.c.b16 %v551, %v547
    %v600 = vpack.c.b16 %v556, %v552
    %v601 = vpack.c.b16 %v557, %v553
    %v602 = vpack.c.b16 %v558, %v554
    %v603 = vpack.c.b16 %v559, %v555
    %v604 = vpack.c.b16 %v564, %v560
    %v605 = vpack.c.b16 %v565, %v561
    %v606 = vpack.c.b16 %v566, %v562
    %v607 = vpack.c.b16 %v567, %v563
    %v608 = vpack.c.b16 %v572, %v568
    %v609 = vpack.c.b16 %v573, %v569
    %v610 = vpack.c.b16 %v574, %v570
    %v611 = vpack.c.b16 %v575, %v571
    %v612 = vpack.c.b16 %v580, %v576
    %v613 = vpack.c.b16 %v581, %v577
    %v614 = vpack.c.b16 %v582, %v578
    %v615 = vpack.c.b16 %v583, %v579
    %648 = vmatpush.bf16.msra.mxu0 %v612
    %649 = vmatpush.bf16.msra.mxu0 %v608
    %650 = vmatpush.bf16.msra.mxu0 %v604
    %651 = vmatpush.bf16.msra.mxu0 %v600
    %652 = vmatpush.bf16.msra.mxu0 %v596
    %653 = vmatpush.bf16.msra.mxu0 %v592
    %654 = vmatpush.bf16.msra.mxu0 %v588
    %655 = vmatpush.bf16.msra.mxu0 %v584
    %656 = vmatmul.bf16.gmra.mxu0 %v455
    %v657 = vpop.f32.mrf.mxu0
    %v658 = vadd.f32 0.0, %v657
    %v659 = vpop.f32.mrf.mxu0
    %v660 = vadd.f32 0.0, %v659
    %661 = vdwg.mxu0
    %662 = vmatpush.bf16.msra.mxu0 %v613
    %663 = vmatpush.bf16.msra.mxu0 %v609
    %664 = vmatpush.bf16.msra.mxu0 %v605
    %665 = vmatpush.bf16.msra.mxu0 %v601
    %666 = vmatpush.bf16.msra.mxu0 %v597
    %667 = vmatpush.bf16.msra.mxu0 %v593
    %668 = vmatpush.bf16.msra.mxu0 %v589
    %669 = vmatpush.bf16.msra.mxu0 %v585
    %670 = vmatmul.bf16.gmra.mxu0 %v455
    %v671 = vpop.f32.mrf.mxu0
    %v672 = vadd.f32 0.0, %v671
    %v673 = vpop.f32.mrf.mxu0
    %v674 = vadd.f32 0.0, %v673
    %675 = vdwg.mxu0
    %676 = vmatpush.bf16.msra.mxu0 %v614
    %677 = vmatpush.bf16.msra.mxu0 %v610
    %678 = vmatpush.bf16.msra.mxu0 %v606
    %679 = vmatpush.bf16.msra.mxu0 %v602
    %680 = vmatpush.bf16.msra.mxu0 %v598
    %681 = vmatpush.bf16.msra.mxu0 %v594
    %682 = vmatpush.bf16.msra.mxu0 %v590
    %683 = vmatpush.bf16.msra.mxu0 %v586
    %684 = vmatmul.bf16.gmra.mxu0 %v455
    %v685 = vpop.f32.mrf.mxu0
    %v686 = vadd.f32 0.0, %v685
    %v687 = vpop.f32.mrf.mxu0
    %v688 = vadd.f32 0.0, %v687
    %689 = vdwg.mxu0
    %690 = vmatpush.bf16.msra.mxu0 %v615
    %691 = vmatpush.bf16.msra.mxu0 %v611
    %692 = vmatpush.bf16.msra.mxu0 %v607
    %693 = vmatpush.bf16.msra.mxu0 %v603
    %694 = vmatpush.bf16.msra.mxu0 %v599
    %695 = vmatpush.bf16.msra.mxu0 %v595
    %696 = vmatpush.bf16.msra.mxu0 %v591
    %697 = vmatpush.bf16.msra.mxu0 %v587
    %698 = vmatmul.bf16.gmra.mxu0 %v455
    %v699 = vpop.f32.mrf.mxu0
    %v700 = vadd.f32 0.0, %v699
    %v701 = vpop.f32.mrf.mxu0
    %v702 = vadd.f32 0.0, %v701
    %703 = vdwg.mxu0
    %v704 = vadd.f32 %v447, %v658
    %v705 = vadd.f32 %v448, %v672
    %v706 = vadd.f32 %v449, %v686
    %v707 = vadd.f32 %v450, %v700
    %v708 = vadd.f32 %v451, %v660
    %v709 = vadd.f32 %v452, %v674
    %v710 = vadd.f32 %v453, %v688
    %v711 = vadd.f32 %v454, %v702
    %v712 = vxor.u32 %v704, 2147483648
    %v713 = vxor.u32 %v708, 2147483648
    %v714 = vmul.f32 %v712, 1.442695
    %v715 = vpow.pop %v714
    %v716 = vmul.f32 %v713, 1.442695
    %v717 = vpow.pop %v716
    %v718 = vadd.f32 %v715, 1.0
    %v719 = vadd.f32 %v717, 1.0
    %v720 = vrcp.pop %v718
    %v721 = vmul.f32 %v718, %v720
    %v722 = vsub.f32 1.0, %v721
    %v723 = vmul.f32 %v720, %v722
    %v724 = vadd.f32 %v720, %v723
    %vm725 = vweird.f32 %v718
    %vm726 = vweird.f32 %v720
    %vm727 = vmor %vm725, %vm726
    %v728 = vsel %vm727, %v720, %v724
    %v729 = vand.u32 2147483647, %v718
    %vm730 = vcmp.eq.f32.partialorder %v729, 8.507059e+37
    %v731 = vand.u32 %v718, 2147483648
    %v732 = vor.u32 1.1754944e-38, %v731
    %v733 = vsel %vm730, %v732, %v728
    %v734 = vmul.f32 1.0, %v733
    %v735 = vrcp.pop %v719
    %v736 = vmul.f32 %v719, %v735
    %v737 = vsub.f32 1.0, %v736
    %v738 = vmul.f32 %v735, %v737
    %v739 = vadd.f32 %v735, %v738
    %vm740 = vweird.f32 %v719
    %vm741 = vweird.f32 %v735
    %vm742 = vmor %vm740, %vm741
    %v743 = vsel %vm742, %v735, %v739
    %v744 = vand.u32 2147483647, %v719
    %vm745 = vcmp.eq.f32.partialorder %v744, 8.507059e+37
    %v746 = vand.u32 %v719, 2147483648
    %v747 = vor.u32 1.1754944e-38, %v746
    %v748 = vsel %vm745, %v747, %v743
    %v749 = vmul.f32 1.0, %v748
    %v750 = vxor.u32 %v705, 2147483648
    %v751 = vxor.u32 %v709, 2147483648
    %v752 = vmul.f32 %v750, 1.442695
    %v753 = vpow.pop %v752
    %v754 = vmul.f32 %v751, 1.442695
    %v755 = vpow.pop %v754
    %v756 = vadd.f32 %v753, 1.0
    %v757 = vadd.f32 %v755, 1.0
    %v758 = vrcp.pop %v756
    %v759 = vmul.f32 %v756, %v758
    %v760 = vsub.f32 1.0, %v759
    %v761 = vmul.f32 %v758, %v760
    %v762 = vadd.f32 %v758, %v761
    %vm763 = vweird.f32 %v756
    %vm764 = vweird.f32 %v758
    %vm765 = vmor %vm763, %vm764
    %v766 = vsel %vm765, %v758, %v762
    %v767 = vand.u32 2147483647, %v756
    %vm768 = vcmp.eq.f32.partialorder %v767, 8.507059e+37
    %v769 = vand.u32 %v756, 2147483648
    %v770 = vor.u32 1.1754944e-38, %v769
    %v771 = vsel %vm768, %v770, %v766
    %v772 = vmul.f32 1.0, %v771
    %v773 = vrcp.pop %v757
    %v774 = vmul.f32 %v757, %v773
    %v775 = vsub.f32 1.0, %v774
    %v776 = vmul.f32 %v773, %v775
    %v777 = vadd.f32 %v773, %v776
    %vm778 = vweird.f32 %v757
    %vm779 = vweird.f32 %v773
    %vm780 = vmor %vm778, %vm779
    %v781 = vsel %vm780, %v773, %v777
    %v782 = vand.u32 2147483647, %v757
    %vm783 = vcmp.eq.f32.partialorder %v782, 8.507059e+37
    %v784 = vand.u32 %v757, 2147483648
    %v785 = vor.u32 1.1754944e-38, %v784
    %v786 = vsel %vm783, %v785, %v781
    %v787 = vmul.f32 1.0, %v786
    %v788 = vtanh.pop %v706
    %v789 = vtanh.pop %v710
    %v790 = vxor.u32 %v707, 2147483648
    %v791 = vxor.u32 %v711, 2147483648
    %v792 = vmul.f32 %v790, 1.442695
    %v793 = vpow.pop %v792
    %v794 = vmul.f32 %v791, 1.442695
    %v795 = vpow.pop %v794
    %v796 = vadd.f32 %v793, 1.0
    %v797 = vadd.f32 %v795, 1.0
    %v798 = vrcp.pop %v796
    %v799 = vmul.f32 %v796, %v798
    %v800 = vsub.f32 1.0, %v799
    %v801 = vmul.f32 %v798, %v800
    %v802 = vadd.f32 %v798, %v801
    %vm803 = vweird.f32 %v796
    %vm804 = vweird.f32 %v798
    %vm805 = vmor %vm803, %vm804
    %v806 = vsel %vm805, %v798, %v802
    %v807 = vand.u32 2147483647, %v796
    %vm808 = vcmp.eq.f32.partialorder %v807, 8.507059e+37
    %v809 = vand.u32 %v796, 2147483648
    %v810 = vor.u32 1.1754944e-38, %v809
    %v811 = vsel %vm808, %v810, %v806
    %v812 = vmul.f32 1.0, %v811
    %v813 = vrcp.pop %v797
    %v814 = vmul.f32 %v797, %v813
    %v815 = vsub.f32 1.0, %v814
    %v816 = vmul.f32 %v813, %v815
    %v817 = vadd.f32 %v813, %v816
    %vm818 = vweird.f32 %v797
    %vm819 = vweird.f32 %v813
    %vm820 = vmor %vm818, %vm819
    %v821 = vsel %vm820, %v813, %v817
    %v822 = vand.u32 2147483647, %v797
    %vm823 = vcmp.eq.f32.partialorder %v822, 8.507059e+37
    %v824 = vand.u32 %v797, 2147483648
    %v825 = vor.u32 1.1754944e-38, %v824
    %v826 = vsel %vm823, %v825, %v821
    %v827 = vmul.f32 1.0, %v826
    %v828 = vmul.f32 %v772, %v445
    %v829 = vmul.f32 %v787, %v446
    %v830 = vmul.f32 %v734, %v788
    %v831 = vmul.f32 %v749, %v789
    %v832 = vadd.f32 %v828, %v830
    %v833 = vadd.f32 %v829, %v831
    %v834 = vtanh.pop %v832
    %v835 = vtanh.pop %v833
    %v836 = vmul.f32 %v812, %v834
    %v837 = vmul.f32 %v827, %v835
    %838 = vst [vmem:[#allocation2] sm:$0xff] %v434
    %839 = vst [vmem:[#allocation2 + $0x8] sm:$0xff] %v435
    %840 = vst [vmem:[#allocation3] sm:$0xff] %v430
    %841 = vst [vmem:[#allocation3 + $0x8] sm:$0xff] %v431
    %842 = vst [vmem:[#allocation4] sm:$0xff] %v836
    %843 = vst [vmem:[#allocation4 + $0x8] sm:$0xff] %v837
    %844 = vst [vmem:[#allocation5] sm:$0xff] %v832
    %845 = vst [vmem:[#allocation5 + $0x8] sm:$0xff] %v833
    %v846 = vpack.c.bf16 %v434, %v434
    %v847 = vpack.c.bf16 %v435, %v435
    %s848 = smul.u32 %s28, 2
    %s849 = smul.addr %s848, 4
    %s850 = scalar_lea.vmem %s4, %s849
    %851 = vst [vmem:[%s850] sm:$0xf] %v846
    %852 = vst [vmem:[%s850 + $0x4] sm:$0xf] %v847
    %v853 = vpack.c.bf16 %v836, %v836
    %v854 = vpack.c.bf16 %v837, %v837
    %s855 = smul.u32 %s33, 2
    %s856 = smul.addr %s855, 4
    %s857 = scalar_lea.vmem %s5, %s856
    %858 = vst [vmem:[%s857] sm:$0xf] %v853
    %859 = vst [vmem:[%s857 + $0x4] sm:$0xf] %v854
  $region22: #{gridnet_block_forward.14} parent=0 // loop_footer
    %s32 = sadd.s32 1, %s28
  $region23: #{gridnet_block_forward.14} parent=0 // loop_footer_branch
    %27 = sbr.rel target = $region19
  $region24: #{gridnet_block_forward.14} parent=0 // loop_exit
    _
  // Predicated region
  $region25: #{gridnet_block_forward.14} parent=0 // pred_check
    _
  $region26: #{gridnet_block_forward.14} parent=0 // pred_check_branch
    %861 = sbr.rel (0) target = $region28
  $region27: #{gridnet_block_forward.14} parent=0 // pred_region
    _
  $region28: #{gridnet_block_forward.14} parent=0 // pred_fallthru
    _
  // Predicated region
  $region29: #{gridnet_block_forward.14} parent=0 // pred_check
    _
  $region30: #{gridnet_block_forward.14} parent=0 // pred_check_branch
    %863 = sbr.rel (0) target = $region32
  $region31: #{gridnet_block_forward.14} parent=0 // pred_region
    _
  $region32: #{gridnet_block_forward.14} parent=0 // pred_fallthru
    _
  // Predicated region
  $region33: #{gridnet_block_forward.14} parent=0 // pred_check
    _
  $region34: #{gridnet_block_forward.14} parent=0 // pred_check_branch
    %865 = sbr.rel (0) target = $region36
  $region35: #{gridnet_block_forward.14} parent=0 // pred_region
    _
  $region36: #{gridnet_block_forward.14} parent=0 // pred_fallthru
    _
  // Predicated region
  $region37: #{gridnet_block_forward.14} parent=0 // pred_check
    _
  $region38: #{gridnet_block_forward.14} parent=0 // pred_check_branch
    %867 = sbr.rel (0) target = $region40
  $region39: #{gridnet_block_forward.14} parent=0 // pred_region
    _
  $region40: #{gridnet_block_forward.14} parent=0 // pred_fallthru
    _

// kernel: gridnet_block_forward.15
$region0: #{gridnet_block_forward.15}
  #allocation0 [shape = 'u32[]', space=smem, size = 0x4, offset = 0x4, fixed_abs, tag = 'smem constant byte address 0x4 - core index']
  #allocation1 [shape = 'u32[72,128]{1,0:T(1,128)}', space=vmem, size = 0x9000, scoped, tag = 'internal scratch']
  %s0 = inlined_call_operand.vmem [shape: bf16[112,256], index: 0, kind: input, shape index: {}]
  %s1 = inlined_call_operand.vmem [shape: bf16[256,128], index: 1, kind: input, shape index: {}]
  %s2 = inlined_call_operand.vmem [shape: f32[1,128], index: 2, kind: input, shape index: {}]
  %s3 = inlined_call_operand.vmem [shape: f32[112,128], index: 3, kind: output, shape index: {}]
  %s4 = sld [smem:[#allocation0]]
  $region93: #{gridnet_block_forward.15} parent=0
    _
  %s6 = ssub.s32 1, %s4
  %s7 = scalar_select 0, %s6, %s4
  $region1: #{gridnet_block_forward.15} parent=0
    #allocation2 [shape = 'u8[65536]{0}', space=vmem, size = 0x10000, scoped, tag = 'output window, operand 0']
    loop: start=0, step=1, limit=4
    $region2: #{gridnet_block_forward.15} parent=1 // loop_pre_header
      _
    $region3: #{gridnet_block_forward.15} parent=1 // loop_header
      %s9 = sphi 0, %s13
      %p10 = scmp.ge.s32.totalorder %s9, 4
      %s19 = sphi 0, %s21
      %s22 = sphi 0, %s19
      %s23 = sphi 0, %s22
      %s39 = sphi 0, %s23
      %s43 = sphi 0, %s43
      %s45 = sphi 0, %s43
      %s46 = sphi 0, %s45
      %s60 = sphi 0, %s46
      %s64 = sphi 0, %s64
      %s66 = sphi 0, %s64
      %s67 = sphi 0, %s66
      %s81 = sphi 0, %s67
      %s87 = sphi 0, %s89
      %s90 = sphi 0, %s87
      %s91 = sphi 0, %s90
      %s107 = sphi 0, %s91
    $region4: #{gridnet_block_forward.15} parent=1 // loop_header_branch
      %12 = sbr.rel (%p10) target = $region8
    $region5: #{gridnet_block_forward.15} parent=1 // loop_body
      %s14 = ssub.s32 %s9, 1
      %s15 = ssub.s32 %s9, 2
      %s16 = sadd.s32 %s9, 1
      %s17 = ssub.s32 %s9, %s16
      %p18 = scmp.eq.s32.totalorder %s17, 0
      %s20 = sadd.s32 %s19, 1
      %s21 = scalar_select %p18, %s19, %s20
      %p24 = pneg %p18
      %p25 = scmp.eq.s32.totalorder %s9, 1
      %p26 = por %p24, %p25
      %p27 = scmp.ne.s32.totalorder %s19, %s22
      %p28 = scmp.eq.s32.totalorder %s9, 0
      %p29 = por %p27, %p28
      %p30 = scmp.ne.s32.totalorder %s19, %s22
      %p31 = scmp.eq.s32.totalorder %s14, 1
      %p32 = por %p30, %p31
      %p33 = scmp.ne.s32.totalorder %s22, %s23
      %p34 = scmp.eq.s32.totalorder %s14, 0
      %p35 = por %p33, %p34
      %p36 = scmp.ne.s32.totalorder %s22, %s23
      %p37 = scmp.eq.s32.totalorder %s15, 1
      %p38 = por %p36, %p37
      %p40 = scmp.ne.s32.totalorder %s23, %s39
      %p41 = scmp.eq.s32.totalorder %s15, 0
      %p42 = por %p40, %p41
      %s44 = sadd.s32 %s43, 1
      %p47 = scmp.eq.s32.totalorder %s9, 1
      %p48 = scmp.ne.s32.totalorder %s43, %s45
      %p49 = scmp.eq.s32.totalorder %s9, 0
      %p50 = por %p48, %p49
      %p51 = scmp.ne.s32.totalorder %s43, %s45
      %p52 = scmp.eq.s32.totalorder %s14, 1
      %p53 = por %p51, %p52
      %p54 = scmp.ne.s32.totalorder %s45, %s46
      %p55 = scmp.eq.s32.totalorder %s14, 0
      %p56 = por %p54, %p55
      %p57 = scmp.ne.s32.totalorder %s45, %s46
      %p58 = scmp.eq.s32.totalorder %s15, 1
      %p59 = por %p57, %p58
      %p61 = scmp.ne.s32.totalorder %s46, %s60
      %p62 = scmp.eq.s32.totalorder %s15, 0
      %p63 = por %p61, %p62
      %s65 = sadd.s32 %s64, 1
      %p68 = scmp.eq.s32.totalorder %s9, 1
      %p69 = scmp.ne.s32.totalorder %s64, %s66
      %p70 = scmp.eq.s32.totalorder %s9, 0
      %p71 = por %p69, %p70
      %p72 = scmp.ne.s32.totalorder %s64, %s66
      %p73 = scmp.eq.s32.totalorder %s14, 1
      %p74 = por %p72, %p73
      %p75 = scmp.ne.s32.totalorder %s66, %s67
      %p76 = scmp.eq.s32.totalorder %s14, 0
      %p77 = por %p75, %p76
      %p78 = scmp.ne.s32.totalorder %s66, %s67
      %p79 = scmp.eq.s32.totalorder %s15, 1
      %p80 = por %p78, %p79
      %p82 = scmp.ne.s32.totalorder %s67, %s81
      %p83 = scmp.eq.s32.totalorder %s15, 0
      %p84 = por %p82, %p83
      %s85 = ssub.s32 %s9, %s16
      %p86 = scmp.eq.s32.totalorder %s85, 0
      %s88 = sadd.s32 %s87, 1
      %s89 = scalar_select %p86, %s87, %s88
      %p92 = pneg %p86
      %p93 = scmp.eq.s32.totalorder %s9, 1
      %p94 = por %p92, %p93
      %p95 = scmp.ne.s32.totalorder %s87, %s90
      %p96 = scmp.eq.s32.totalorder %s9, 0
      %p97 = por %p95, %p96
      %p98 = scmp.ne.s32.totalorder %s87, %s90
      %p99 = scmp.eq.s32.totalorder %s14, 1
      %p100 = por %p98, %p99
      %p101 = scmp.ne.s32.totalorder %s90, %s91
      %p102 = scmp.eq.s32.totalorder %s14, 0
      %p103 = por %p101, %p102
      %p104 = scmp.ne.s32.totalorder %s90, %s91
      %p105 = scmp.eq.s32.totalorder %s15, 1
      %p106 = por %p104, %p105
      %p108 = scmp.ne.s32.totalorder %s91, %s107
      %p109 = scmp.eq.s32.totalorder %s15, 0
      %p110 = por %p108, %p109
      %p111 = scmp.le.s32.totalorder 1, %s9
      %p112 = scmp.lt.s32.totalorder %s9, 3
      %p113 = pnand %p111, %p112
      %p114 = pneg %p113
      // Predicated region
      $region9: #{gridnet_block_forward.15} parent=5 // pred_check
        _
      $region10: #{gridnet_block_forward.15} parent=5 // pred_check_branch
        %116 = sbr.rel (%p113) target = $region12
      $region11: #{gridnet_block_forward.15} parent=5 // pred_region
        %s117 = ssub.s32 %s9, 1
        // Predicated region
        $region13: #{gridnet_block_forward.15} parent=11 // pred_check
          %p118 = pneg %p56
        $region14: #{gridnet_block_forward.15} parent=11 // pred_check_branch
          %120 = sbr.rel (%p118) target = $region16
        $region15: #{gridnet_block_forward.15} parent=11 // pred_region
          _
        $region16: #{gridnet_block_forward.15} parent=11 // pred_fallthru
          _
        // Predicated region
        $region17: #{gridnet_block_forward.15} parent=11 // pred_check
          %p121 = pneg %p77
        $region18: #{gridnet_block_forward.15} parent=11 // pred_check_branch
          %123 = sbr.rel (%p121) target = $region20
        $region19: #{gridnet_block_forward.15} parent=11 // pred_region
          _
        $region20: #{gridnet_block_forward.15} parent=11 // pred_fallthru
          _
      $region12: #{gridnet_block_forward.15} parent=5 // pred_fallthru
        _
      %p124 = scmp.lt.s32.totalorder %s9, 2
      // Predicated region
      $region21: #{gridnet_block_forward.15} parent=5 // pred_check
        %p125 = pneg %p124
      $region22: #{gridnet_block_forward.15} parent=5 // pred_check_branch
        %127 = sbr.rel (%p125) target = $region24
      $region23: #{gridnet_block_forward.15} parent=5 // pred_region
        // Predicated region
        $region25: #{gridnet_block_forward.15} parent=23 // pred_check
          %p128 = pneg %p29
        $region26: #{gridnet_block_forward.15} parent=23 // pred_check_branch
          %130 = sbr.rel (%p128) target = $region28
        $region27: #{gridnet_block_forward.15} parent=23 // pred_region
          %s131 = smul.u32 8, %s9
          %s132 = ssub.s32 14, %s131
          %p133 = scmp.lt.s32.totalorder %s132, 8
          %s134 = scalar_select %p133, %s132, 8
          %s135 = smul.u32 4, %s134
          %s136 = smul.u32 %s135, 2
          %p137 = scmp.lt.s32.totalorder %s131, 13
          %s138 = scalar_select %p137, %s131, 13
          %s139 = smul.addr %s138, 2
          %s140 = smul.addr %s139, 4
          %s141 = scalar_lea.vmem %s0, %s140
          %s142 = smul.u32 8, %s9
          %s143 = ssub.s32 14, %s142
          %p144 = scmp.lt.s32.totalorder %s143, 8
          %s145 = scalar_select %p144, %s143, 8
          %s146 = smul.u32 4, %s145
          %s147 = smul.u32 %s146, 2
        $region28: #{gridnet_block_forward.15} parent=23 // pred_fallthru
          _
      $region24: #{gridnet_block_forward.15} parent=5 // pred_fallthru
        _
      %p148 = scmp.le.s32.totalorder 1, %s9
      %p149 = scmp.lt.s32.totalorder %s9, 3
      %p150 = pnand %p148, %p149
      %p151 = pneg %p150
      // Predicated region
      $region29: #{gridnet_block_forward.15} parent=5 // pred_check
        _
      $region30: #{gridnet_block_forward.15} parent=5 // pred_check_branch
        %153 = sbr.rel (%p150) target = $region32
      $region31: #{gridnet_block_forward.15} parent=5 // pred_region
        %s154 = ssub.s32 %s9, 1
        %s155 = smul.u32 8, %s14
        %s156 = ssub.s32 14, %s155
        %p157 = scmp.lt.s32.totalorder %s156, 8
        %s158 = scalar_select %p157, %s156, 8
        %s159 = smul.u32 4, %s158
        %s160 = smul.u32 %s159, 2
        %p161 = scmp.lt.s32.totalorder %s155, 13
        %s162 = scalar_select %p161, %s155, 13
        %s163 = smul.addr %s162, 2
        %s164 = smul.addr %s163, 4
        %s165 = scalar_lea.vmem %s0, %s164
        %p166 = pneg %p35
        %p167 = pneg %p32
        %p168 = pneg %p56
        %p169 = pneg %p53
        %p170 = pneg %p77
        %p171 = pneg %p74
        %p172 = pneg %p103
        %p173 = pneg %p100
        %s174 = sand.u32 %s90, 1
        %s175 = sand.u32 %s90, 1
        %s176 = smul.addr %s175, 64
        %s177 = scalar_lea.vmem [#allocation2], %s176
        %s178 = smul.u32 8, %s14
        %s179 = ssub.s32 14, %s178
        %p180 = scmp.lt.s32.totalorder %s179, 8
        %s181 = scalar_select %p180, %s179, 8
        %s182 = smul.u32 4, %s181
        %s183 = smul.u32 %s182, 2
        %p184 = scmp.lt.s32.totalorder %s178, 13
        %s185 = scalar_select %p184, %s178, 13
        %s186 = smul.addr %s185, 2
        %s187 = smul.addr %s186, 4
        %s188 = scalar_lea.vmem %s0, %s187
        %s189 = smul.u32 8, %s14
        %s190 = ssub.s32 14, %s189
        %p191 = scmp.lt.s32.totalorder %s190, 8
        %s192 = scalar_select %p191, %s190, 8
        %s193 = smul.u32 4, %s192
        %s194 = smul.u32 %s193, 2
        %s195 = smul.u32 8, %s14
        %s196 = ssub.s32 14, %s195
        %p197 = scmp.lt.s32.totalorder %s196, 8
        %s198 = scalar_select %p197, %s196, 8
        %s199 = smul.u32 8, %s198
        %v200 = vld [vmem:[%s188] sm:$0xff]
        %v201 = vld [vmem:[%s188 + $0x8] sm:$0xff]
        %v202 = vld [vmem:[%s188 + $0x10] sm:$0xff]
        %v203 = vld [vmem:[%s188 + $0x18] sm:$0xff]
        %v204 = vld [vmem:[%s188 + $0x20] sm:$0xff]
        %v205 = vld [vmem:[%s188 + $0x28] sm:$0xff]
        %v206 = vld [vmem:[%s188 + $0x30] sm:$0xff]
        %v207 = vld [vmem:[%s188 + $0x38] sm:$0xff]
        %v208 = vld [vmem:[%s1] sm:$0xf]
        %v209 = vld [vmem:[%s1 + $0x4] sm:$0xf]
        %v210 = vld [vmem:[%s1 + $0x8] sm:$0xf]
        %v211 = vld [vmem:[%s1 + $0xc] sm:$0xf]
        %v212 = vld [vmem:[%s1 + $0x10] sm:$0xf]
        %v213 = vld [vmem:[%s1 + $0x14] sm:$0xf]
        %v214 = vld [vmem:[%s1 + $0x18] sm:$0xf]
        %v215 = vld [vmem:[%s1 + $0x1c] sm:$0xf]
        %v216 = vld [vmem:[%s1 + $0x20] sm:$0xf]
        %v217 = vld [vmem:[%s1 + $0x24] sm:$0xf]
        %v218 = vld [vmem:[%s1 + $0x28] sm:$0xf]
        %v219 = vld [vmem:[%s1 + $0x2c] sm:$0xf]
        %v220 = vld [vmem:[%s1 + $0x30] sm:$0xf]
        %v221 = vld [vmem:[%s1 + $0x34] sm:$0xf]
        %v222 = vld [vmem:[%s1 + $0x38] sm:$0xf]
        %v223 = vld [vmem:[%s1 + $0x3c] sm:$0xf]
        %v224 = vld [vmem:[%s1 + $0x40] sm:$0xf]
        %v225 = vld [vmem:[%s1 + $0x44] sm:$0xf]
        %v226 = vld [vmem:[%s1 + $0x48] sm:$0xf]
        %v227 = vld [vmem:[%s1 + $0x4c] sm:$0xf]
        %v228 = vld [vmem:[%s1 + $0x50] sm:$0xf]
        %v229 = vld [vmem:[%s1 + $0x54] sm:$0xf]
        %v230 = vld [vmem:[%s1 + $0x58] sm:$0xf]
        %v231 = vld [vmem:[%s1 + $0x5c] sm:$0xf]
        %v232 = vld [vmem:[%s1 + $0x60] sm:$0xf]
        %v233 = vld [vmem:[%s1 + $0x64] sm:$0xf]
        %v234 = vld [vmem:[%s1 + $0x68] sm:$0xf]
        %v235 = vld [vmem:[%s1 + $0x6c] sm:$0xf]
        %v236 = vld [vmem:[%s1 + $0x70] sm:$0xf]
        %v237 = vld [vmem:[%s1 + $0x74] sm:$0xf]
        %v238 = vld [vmem:[%s1 + $0x78] sm:$0xf]
        %v239 = vld [vmem:[%s1 + $0x7c] sm:$0xf]
        %v240 = vld [vmem:[%s2] sm:$0x1]
        %v242 = vperm.slane %v240, 0
        %v252 = vunpack.c.l.b16 %v200
        %v253 = vunpack.c.h.b16 %v200
        %v254 = vunpack.c.l.b16 %v201
        %v255 = vunpack.c.h.b16 %v201
        %v256 = vunpack.c.l.b16 %v202
        %v257 = vunpack.c.h.b16 %v202
        %v258 = vunpack.c.l.b16 %v203
        %v259 = vunpack.c.h.b16 %v203
        %v260 = vunpack.c.l.b16 %v204
        %v261 = vunpack.c.h.b16 %v204
        %v262 = vunpack.c.l.b16 %v205
        %v263 = vunpack.c.h.b16 %v205
        %v264 = vunpack.c.l.b16 %v206
        %v265 = vunpack.c.h.b16 %v206
        %v266 = vunpack.c.l.b16 %v207
        %v267 = vunpack.c.h.b16 %v207
        %v268 = vpack.c.b16 %v254, %v252
        %v269 = vpack.c.b16 %v255, %v253
        %v270 = vpack.c.b16 %v258, %v256
        %v271 = vpack.c.b16 %v259, %v257
        %v272 = vpack.c.b16 %v262, %v260
        %v273 = vpack.c.b16 %v263, %v261
        %v274 = vpack.c.b16 %v266, %v264
        %v275 = vpack.c.b16 %v267, %v265
        %v316 = vunpack.c.l.b16 %v208
        %v317 = vunpack.c.l.b16 %v209
        %v318 = vunpack.c.l.b16 %v210
        %v319 = vunpack.c.l.b16 %v211
        %v320 = vunpack.c.l.b16 %v212
        %v321 = vunpack.c.l.b16 %v213
        %v322 = vunpack.c.l.b16 %v214
        %v323 = vunpack.c.l.b16 %v215
        %v324 = vunpack.c.l.b16 %v216
        %v325 = vunpack.c.l.b16 %v217
        %v326 = vunpack.c.l.b16 %v218
        %v327 = vunpack.c.l.b16 %v219
        %v328 = vunpack.c.l.b16 %v220
        %v329 = vunpack.c.l.b16 %v221
        %v330 = vunpack.c.l.b16 %v222
        %v331 = vunpack.c.l.b16 %v223
        %v332 = vunpack.c.l.b16 %v224
        %v333 = vunpack.c.l.b16 %v225
        %v334 = vunpack.c.l.b16 %v226
        %v335 = vunpack.c.l.b16 %v227
        %v336 = vunpack.c.l.b16 %v228
        %v337 = vunpack.c.l.b16 %v229
        %v338 = vunpack.c.l.b16 %v230
        %v339 = vunpack.c.l.b16 %v231
        %v340 = vunpack.c.l.b16 %v232
        %v341 = vunpack.c.l.b16 %v233
        %v342 = vunpack.c.l.b16 %v234
        %v343 = vunpack.c.l.b16 %v235
        %v344 = vunpack.c.l.b16 %v236
        %v345 = vunpack.c.l.b16 %v237
        %v346 = vunpack.c.l.b16 %v238
        %v347 = vunpack.c.l.b16 %v239
        %v348 = vpack.c.b16 %v317, %v316
        %v349 = vpack.c.b16 %v319, %v318
        %v350 = vpack.c.b16 %v321, %v320
        %v351 = vpack.c.b16 %v323, %v322
        %v352 = vpack.c.b16 %v325, %v324
        %v353 = vpack.c.b16 %v327, %v326
        %v354 = vpack.c.b16 %v329, %v328
        %v355 = vpack.c.b16 %v331, %v330
        %v356 = vpack.c.b16 %v333, %v332
        %v357 = vpack.c.b16 %v335, %v334
        %v358 = vpack.c.b16 %v337, %v336
        %v359 = vpack.c.b16 %v339, %v338
        %v360 = vpack.c.b16 %v341, %v340
        %v361 = vpack.c.b16 %v343, %v342
        %v362 = vpack.c.b16 %v345, %v344
        %v363 = vpack.c.b16 %v347, %v346
        %380 = vmatpush.bf16.msra.mxu0 %v355
        %381 = vmatpush.bf16.msra.mxu0 %v354
        %382 = vmatpush.bf16.msra.mxu0 %v353
        %383 = vmatpush.bf16.msra.mxu0 %v352
        %384 = vmatpush.bf16.msra.mxu0 %v351
        %385 = vmatpush.bf16.msra.mxu0 %v350
        %386 = vmatpush.bf16.msra.mxu0 %v349
        %387 = vmatpush.bf16.msra.mxu0 %v348
        %388 = vmatmul.bf16.gmra.mxu0 %v268
        %v389 = vpop.f32.mrf.mxu0
        %v390 = vadd.f32 %v242, %v389
        %v391 = vpop.f32.mrf.mxu0
        %v392 = vadd.f32 %v242, %v391
        %393 = vmatmul.bf16.gmra.mxu0 %v270
        %v394 = vpop.f32.mrf.mxu0
        %v395 = vadd.f32 %v242, %v394
        %v396 = vpop.f32.mrf.mxu0
        %v397 = vadd.f32 %v242, %v396
        %398 = vmatmul.bf16.gmra.mxu0 %v272
        %v399 = vpop.f32.mrf.mxu0
        %v400 = vadd.f32 %v242, %v399
        %v401 = vpop.f32.mrf.mxu0
        %v402 = vadd.f32 %v242, %v401
        %403 = vmatmul.bf16.gmra.mxu0 %v274
        %v404 = vpop.f32.mrf.mxu0
        %v405 = vadd.f32 %v242, %v404
        %v406 = vpop.f32.mrf.mxu0
        %v407 = vadd.f32 %v242, %v406
        %408 = vdwg.mxu0
        %409 = vmatpush.bf16.msra.mxu0 %v363
        %410 = vmatpush.bf16.msra.mxu0 %v362
        %411 = vmatpush.bf16.msra.mxu0 %v361
        %412 = vmatpush.bf16.msra.mxu0 %v360
        %413 = vmatpush.bf16.msra.mxu0 %v359
        %414 = vmatpush.bf16.msra.mxu0 %v358
        %415 = vmatpush.bf16.msra.mxu0 %v357
        %416 = vmatpush.bf16.msra.mxu0 %v356
        %417 = vmatmul.bf16.gmra.mxu0 %v269
        %v418 = vpop.f32.mrf.mxu0
        %v419 = vadd.f32 %v390, %v418
        %v420 = vpop.f32.mrf.mxu0
        %v421 = vadd.f32 %v392, %v420
        %422 = vmatmul.bf16.gmra.mxu0 %v271
        %v423 = vpop.f32.mrf.mxu0
        %v424 = vadd.f32 %v395, %v423
        %v425 = vpop.f32.mrf.mxu0
        %v426 = vadd.f32 %v397, %v425
        %427 = vmatmul.bf16.gmra.mxu0 %v273
        %v428 = vpop.f32.mrf.mxu0
        %v429 = vadd.f32 %v400, %v428
        %v430 = vpop.f32.mrf.mxu0
        %v431 = vadd.f32 %v402, %v430
        %432 = vmatmul.bf16.gmra.mxu0 %v275
        %v433 = vpop.f32.mrf.mxu0
        %v434 = vadd.f32 %v405, %v433
        %v435 = vpop.f32.mrf.mxu0
        %v436 = vadd.f32 %v407, %v435
        %437 = vdwg.mxu0
        %438 = vst [vmem:[%s177] sm:$0xff] %v419
        %439 = vst [vmem:[%s177 + $0x8] sm:$0xff] %v421
        %440 = vst [vmem:[%s177 + $0x10] sm:$0xff] %v424
        %441 = vst [vmem:[%s177 + $0x18] sm:$0xff] %v426
        %442 = vst [vmem:[%s177 + $0x20] sm:$0xff] %v429
        %443 = vst [vmem:[%s177 + $0x28] sm:$0xff] %v431
        %444 = vst [vmem:[%s177 + $0x30] sm:$0xff] %v434
        %445 = vst [vmem:[%s177 + $0x38] sm:$0xff] %v436
        %s446 = sand.u32 %s90, 1
        %s447 = sand.u32 %s90, 1
        %s448 = smul.addr %s447, 64
        %s449 = scalar_lea.vmem [#allocation2], %s448
        // Predicated region
        $region33: #{gridnet_block_forward.15} parent=31 // pred_check
          %p450 = pneg %p100
        $region34: #{gridnet_block_forward.15} parent=31 // pred_check_branch
          %452 = sbr.rel (%p450) target = $region36
        $region35: #{gridnet_block_forward.15} parent=31 // pred_region
          %s453 = smul.u32 8, %s14
          %s454 = ssub.s32 14, %s453
          %p455 = scmp.lt.s32.totalorder %s454, 8
          %s456 = scalar_select %p455, %s454, 8
          %s457 = smul.u32 8, %s456
          %p458 = scmp.ne.s32.totalorder 0, %s457
          %s459 = smul.addr %s453, 8
          %s460 = scalar_lea.vmem %s3, %s459
          // Predicated region
          $region37: #{gridnet_block_forward.15} parent=35 // pred_check
            %p461 = pneg %p458
          $region38: #{gridnet_block_forward.15} parent=35 // pred_check_branch
            %463 = sbr.rel (%p461) target = $region40
          $region39: #{gridnet_block_forward.15} parent=35 // pred_region
            // Predicated region
            $region41: #{gridnet_block_forward.15} parent=39 // pred_check
              _
            $region42: #{gridnet_block_forward.15} parent=39 // pred_check_branch
              %465 = sbr.rel (0) target = $region44
            $region43: #{gridnet_block_forward.15} parent=39 // pred_region
              // Predicated region
              $region63: #{gridnet_block_forward.15} parent=43 // pred_check
                _
              $region64: #{gridnet_block_forward.15} parent=43 // pred_check_branch
                %529 = sbr.rel (0) target = $region66
              $region65: #{gridnet_block_forward.15} parent=43 // pred_region
                %s530 = sshrl.u32 %s456, 3
                // While loop
                $region67: #{gridnet_block_forward.15} parent=65 // loop_pre_header
                  _
                $region68: #{gridnet_block_forward.15} parent=65 // loop_header
                  %s532 = sphi 0, %s534
                  %p533 = scmp.ge.s32.totalorder %s532, %s530
                  %s537 = sphi 0, %s558
                  %s538 = sphi %s449, %s561
                  %s539 = sphi %s460, %s562
                $region69: #{gridnet_block_forward.15} parent=65 // loop_header_branch
                  %536 = sbr.rel (%p533) target = $region73
                $region70: #{gridnet_block_forward.15} parent=65 // loop_body
                  %v540 = vld [vmem:[%s538] sm:$0xff]
                  %541 = vst [vmem:[%s539] sm:$0xff] %v540
                  %v542 = vld [vmem:[%s538 + $0x8] sm:$0xff]
                  %543 = vst [vmem:[%s539 + $0x8] sm:$0xff] %v542
                  %v544 = vld [vmem:[%s538 + $0x10] sm:$0xff]
                  %545 = vst [vmem:[%s539 + $0x10] sm:$0xff] %v544
                  %v546 = vld [vmem:[%s538 + $0x18] sm:$0xff]
                  %547 = vst [vmem:[%s539 + $0x18] sm:$0xff] %v546
                  %v548 = vld [vmem:[%s538 + $0x20] sm:$0xff]
                  %549 = vst [vmem:[%s539 + $0x20] sm:$0xff] %v548
                  %v550 = vld [vmem:[%s538 + $0x28] sm:$0xff]
                  %551 = vst [vmem:[%s539 + $0x28] sm:$0xff] %v550
                  %v552 = vld [vmem:[%s538 + $0x30] sm:$0xff]
                  %553 = vst [vmem:[%s539 + $0x30] sm:$0xff] %v552
                  %v554 = vld [vmem:[%s538 + $0x38] sm:$0xff]
                  %555 = vst [vmem:[%s539 + $0x38] sm:$0xff] %v554
                  %s556 = sadd.s32 1, %s537
                  %p557 = scmp.ge.s32.totalorder %s556, %s530
                  %s558 = scalar_select %p557, 0, %s556
                  %s559 = smul.u32 %s558, 64
                  %s560 = smul.u32 %s558, 64
                  %s561 = scalar_lea.vmem %s449, %s559 [#allocation2]
                  %s562 = scalar_lea.vmem %s460, %s560
                $region71: #{gridnet_block_forward.15} parent=65 // loop_footer
                  %s534 = sadd.s32 %s532, 1
                $region72: #{gridnet_block_forward.15} parent=65 // loop_footer_branch
                  %531 = sbr.rel target = $region68
                $region73: #{gridnet_block_forward.15} parent=65 // loop_exit
                  _
                %s563 = sshrl.u32 %s456, 3
                %s564 = sand.u32 %s456, 7
                %s565 = smul.u32 %s563, 8
                %s566 = smul.u32 8, %s565
                %s567 = scalar_lea.vmem %s449, %s566 [#allocation2]
                %s568 = smul.u32 8, %s565
                %s569 = scalar_lea.vmem %s460, %s568
                // While loop
                $region74: #{gridnet_block_forward.15} parent=65 // loop_pre_header
                  _
                $region75: #{gridnet_block_forward.15} parent=65 // loop_header
                  %s571 = sphi 0, %s573
                  %p572 = scmp.ge.s32.totalorder %s571, %s564
                  %s576 = sphi 0, %s583
                  %s577 = sphi %s567, %s586
                  %s578 = sphi %s569, %s587
                $region76: #{gridnet_block_forward.15} parent=65 // loop_header_branch
                  %575 = sbr.rel (%p572) target = $region80
                $region77: #{gridnet_block_forward.15} parent=65 // loop_body
                  %v579 = vld [vmem:[%s577] sm:$0xff]
                  %580 = vst [vmem:[%s578] sm:$0xff] %v579
                  %s581 = sadd.s32 1, %s576
                  %p582 = scmp.ge.s32.totalorder %s581, %s564
                  %s583 = scalar_select %p582, 0, %s581
                  %s584 = smul.u32 %s583, 8
                  %s585 = smul.u32 %s583, 8
                  %s586 = scalar_lea.vmem %s567, %s584 [#allocation2]
                  %s587 = scalar_lea.vmem %s569, %s585
                $region78: #{gridnet_block_forward.15} parent=65 // loop_footer
                  %s573 = sadd.s32 %s571, 1
                $region79: #{gridnet_block_forward.15} parent=65 // loop_footer_branch
                  %570 = sbr.rel target = $region75
                $region80: #{gridnet_block_forward.15} parent=65 // loop_exit
                  _
              $region66: #{gridnet_block_forward.15} parent=43 // pred_fallthru
                _
              // Predicated region
              $region81: #{gridnet_block_forward.15} parent=43 // pred_check
                _
              $region82: #{gridnet_block_forward.15} parent=43 // pred_check_branch
                %589 = sbr.rel target = $region84
              $region83: #{gridnet_block_forward.15} parent=43 // pred_region
                _
              $region84: #{gridnet_block_forward.15} parent=43 // pred_fallthru
                _
            $region44: #{gridnet_block_forward.15} parent=39 // pred_fallthru
              _
            // Predicated region
            $region45: #{gridnet_block_forward.15} parent=39 // pred_check
              _
            $region46: #{gridnet_block_forward.15} parent=39 // pred_check_branch
              %467 = sbr.rel target = $region48
            $region47: #{gridnet_block_forward.15} parent=39 // pred_region
              %s469 = ssub.s32 256, 1
              %s470 = sshrl.u32 %s456, 3
              // While loop
              $region49: #{gridnet_block_forward.15} parent=47 // loop_pre_header
                _
              $region50: #{gridnet_block_forward.15} parent=47 // loop_header
                %s472 = sphi 0, %s474
                %p473 = scmp.ge.s32.totalorder %s472, %s470
                %s477 = sphi 0, %s498
                %s478 = sphi %s449, %s501
                %s479 = sphi %s460, %s502
              $region51: #{gridnet_block_forward.15} parent=47 // loop_header_branch
                %476 = sbr.rel (%p473) target = $region55
              $region52: #{gridnet_block_forward.15} parent=47 // loop_body
                %v480 = vld [vmem:[%s478] sm:%s469]
                %481 = vst [vmem:[%s479] sm:%s469] %v480
                %v482 = vld [vmem:[%s478 + $0x8] sm:%s469]
                %483 = vst [vmem:[%s479 + $0x8] sm:%s469] %v482
                %v484 = vld [vmem:[%s478 + $0x10] sm:%s469]
                %485 = vst [vmem:[%s479 + $0x10] sm:%s469] %v484
                %v486 = vld [vmem:[%s478 + $0x18] sm:%s469]
                %487 = vst [vmem:[%s479 + $0x18] sm:%s469] %v486
                %v488 = vld [vmem:[%s478 + $0x20] sm:%s469]
                %489 = vst [vmem:[%s479 + $0x20] sm:%s469] %v488
                %v490 = vld [vmem:[%s478 + $0x28] sm:%s469]
                %491 = vst [vmem:[%s479 + $0x28] sm:%s469] %v490
                %v492 = vld [vmem:[%s478 + $0x30] sm:%s469]
                %493 = vst [vmem:[%s479 + $0x30] sm:%s469] %v492
                %v494 = vld [vmem:[%s478 + $0x38] sm:%s469]
                %495 = vst [vmem:[%s479 + $0x38] sm:%s469] %v494
                %s496 = sadd.s32 1, %s477
                %p497 = scmp.ge.s32.totalorder %s496, %s470
                %s498 = scalar_select %p497, 0, %s496
                %s499 = smul.u32 %s498, 64
                %s500 = smul.u32 %s498, 64
                %s501 = scalar_lea.vmem %s449, %s499 [#allocation2]
                %s502 = scalar_lea.vmem %s460, %s500
              $region53: #{gridnet_block_forward.15} parent=47 // loop_footer
                %s474 = sadd.s32 %s472, 1
              $region54: #{gridnet_block_forward.15} parent=47 // loop_footer_branch
                %471 = sbr.rel target = $region50
              $region55: #{gridnet_block_forward.15} parent=47 // loop_exit
                _
              %s503 = sshrl.u32 %s456, 3
              %s504 = sand.u32 %s456, 7
              %s505 = smul.u32 %s503, 8
              %s506 = smul.u32 8, %s505
              %s507 = scalar_lea.vmem %s449, %s506 [#allocation2]
              %s508 = smul.u32 8, %s505
              %s509 = scalar_lea.vmem %s460, %s508
              // While loop
              $region56: #{gridnet_block_forward.15} parent=47 // loop_pre_header
                _
              $region57: #{gridnet_block_forward.15} parent=47 // loop_header
                %s511 = sphi 0, %s513
                %p512 = scmp.ge.s32.totalorder %s511, %s504
                %s516 = sphi 0, %s523
                %s517 = sphi %s507, %s526
                %s518 = sphi %s509, %s527
              $region58: #{gridnet_block_forward.15} parent=47 // loop_header_branch
                %515 = sbr.rel (%p512) target = $region62
              $region59: #{gridnet_block_forward.15} parent=47 // loop_body
                %v519 = vld [vmem:[%s517] sm:%s469]
                %520 = vst [vmem:[%s518] sm:%s469] %v519
                %s521 = sadd.s32 1, %s516
                %p522 = scmp.ge.s32.totalorder %s521, %s504
                %s523 = scalar_select %p522, 0, %s521
                %s524 = smul.u32 %s523, 8
                %s525 = smul.u32 %s523, 8
                %s526 = scalar_lea.vmem %s507, %s524 [#allocation2]
                %s527 = scalar_lea.vmem %s509, %s525
              $region60: #{gridnet_block_forward.15} parent=47 // loop_footer
                %s513 = sadd.s32 %s511, 1
              $region61: #{gridnet_block_forward.15} parent=47 // loop_footer_branch
                %510 = sbr.rel target = $region57
              $region62: #{gridnet_block_forward.15} parent=47 // loop_exit
                _
            $region48: #{gridnet_block_forward.15} parent=39 // pred_fallthru
              _
          $region40: #{gridnet_block_forward.15} parent=35 // pred_fallthru
            _
          %590 = vnop
        $region36: #{gridnet_block_forward.15} parent=31 // pred_fallthru
          _
      $region32: #{gridnet_block_forward.15} parent=5 // pred_fallthru
        _
      %p591 = scmp.le.s32.totalorder 2, %s9
      // Predicated region
      $region85: #{gridnet_block_forward.15} parent=5 // pred_check
        %p592 = pneg %p591
      $region86: #{gridnet_block_forward.15} parent=5 // pred_check_branch
        %594 = sbr.rel (%p592) target = $region88
      $region87: #{gridnet_block_forward.15} parent=5 // pred_region
        %s595 = ssub.s32 %s9, 2
        // Predicated region
        $region89: #{gridnet_block_forward.15} parent=87 // pred_check
          %p596 = pneg %p106
        $region90: #{gridnet_block_forward.15} parent=87 // pred_check_branch
          %598 = sbr.rel (%p596) target = $region92
        $region91: #{gridnet_block_forward.15} parent=87 // pred_region
          %s599 = sand.u32 %s91, 1
          %s600 = sand.u32 %s91, 1
          %s601 = smul.addr %s600, 64
          %s602 = scalar_lea.vmem [#allocation2], %s601
        $region92: #{gridnet_block_forward.15} parent=87 // pred_fallthru
          _
      $region88: #{gridnet_block_forward.15} parent=5 // pred_fallthru
        _
    $region6: #{gridnet_block_forward.15} parent=1 // loop_footer
      %s13 = sadd.s32 1, %s9
    $region7: #{gridnet_block_forward.15} parent=1 // loop_footer_branch
      %8 = sbr.rel target = $region3
    $region8: #{gridnet_block_forward.15} parent=1 // loop_exit
      _

// kernel: gridnet_block_forward.19
$region0: #{gridnet_block_forward.19}
  #allocation0 [shape = 'u32[]', space=smem, size = 0x4, offset = 0x4, fixed_abs, tag = 'smem constant byte address 0x4 - core index']
  #allocation1 [shape = 'u32[72,128]{1,0:T(1,128)}', space=vmem, size = 0x9000, scoped, tag = 'internal scratch']
  %s0 = inlined_call_operand.vmem [shape: bf16[128,8], index: 0, kind: input, shape index: {}]
  %s1 = inlined_call_operand.vmem [shape: bf16[8,128], index: 1, kind: input, shape index: {}]
  %s2 = inlined_call_operand.vmem [shape: f32[1,128], index: 2, kind: input, shape index: {}]
  %s3 = inlined_call_operand.vmem [shape: f32[1,128], index: 3, kind: input, shape index: {}]
  %s4 = inlined_call_operand.vmem [shape: bf16[128,128], index: 4, kind: output, shape index: {}]
  %s5 = sld [smem:[#allocation0]]
  $region49: #{gridnet_block_forward.19} parent=0
    _
  %s7 = ssub.s32 1, %s5
  %s8 = scalar_select 0, %s7, %s5
  loop: start=0, step=1, limit=4
  $region2: #{gridnet_block_forward.19} parent=0 // loop_pre_header
    _
  $region3: #{gridnet_block_forward.19} parent=0 // loop_header
    %s10 = sphi 0, %s14
    %p11 = scmp.ge.s32.totalorder %s10, 4
    %s20 = sphi 0, %s22
    %s23 = sphi 0, %s20
    %s24 = sphi 0, %s23
    %s40 = sphi 0, %s24
    %s44 = sphi 0, %s44
    %s46 = sphi 0, %s44
    %s47 = sphi 0, %s46
    %s61 = sphi 0, %s47
    %s65 = sphi 0, %s65
    %s67 = sphi 0, %s65
    %s68 = sphi 0, %s67
    %s82 = sphi 0, %s68
    %s86 = sphi 0, %s86
    %s88 = sphi 0, %s86
    %s89 = sphi 0, %s88
    %s103 = sphi 0, %s89
    %s109 = sphi 0, %s111
    %s112 = sphi 0, %s109
    %s113 = sphi 0, %s112
    %s129 = sphi 0, %s113
  $region4: #{gridnet_block_forward.19} parent=0 // loop_header_branch
    %13 = sbr.rel (%p11) target = $region8
  $region5: #{gridnet_block_forward.19} parent=0 // loop_body
    %s15 = ssub.s32 %s10, 1
    %s16 = ssub.s32 %s10, 2
    %s17 = sadd.s32 %s10, 1
    %s18 = ssub.s32 %s10, %s17
    %p19 = scmp.eq.s32.totalorder %s18, 0
    %s21 = sadd.s32 %s20, 1
    %s22 = scalar_select %p19, %s20, %s21
    %p25 = pneg %p19
    %p26 = scmp.eq.s32.totalorder %s10, 1
    %p27 = por %p25, %p26
    %p28 = scmp.ne.s32.totalorder %s20, %s23
    %p29 = scmp.eq.s32.totalorder %s10, 0
    %p30 = por %p28, %p29
    %p31 = scmp.ne.s32.totalorder %s20, %s23
    %p32 = scmp.eq.s32.totalorder %s15, 1
    %p33 = por %p31, %p32
    %p34 = scmp.ne.s32.totalorder %s23, %s24
    %p35 = scmp.eq.s32.totalorder %s15, 0
    %p36 = por %p34, %p35
    %p37 = scmp.ne.s32.totalorder %s23, %s24
    %p38 = scmp.eq.s32.totalorder %s16, 1
    %p39 = por %p37, %p38
    %p41 = scmp.ne.s32.totalorder %s24, %s40
    %p42 = scmp.eq.s32.totalorder %s16, 0
    %p43 = por %p41, %p42
    %s45 = sadd.s32 %s44, 1
    %p48 = scmp.eq.s32.totalorder %s10, 1
    %p49 = scmp.ne.s32.totalorder %s44, %s46
    %p50 = scmp.eq.s32.totalorder %s10, 0
    %p51 = por %p49, %p50
    %p52 = scmp.ne.s32.totalorder %s44, %s46
    %p53 = scmp.eq.s32.totalorder %s15, 1
    %p54 = por %p52, %p53
    %p55 = scmp.ne.s32.totalorder %s46, %s47
    %p56 = scmp.eq.s32.totalorder %s15, 0
    %p57 = por %p55, %p56
    %p58 = scmp.ne.s32.totalorder %s46, %s47
    %p59 = scmp.eq.s32.totalorder %s16, 1
    %p60 = por %p58, %p59
    %p62 = scmp.ne.s32.totalorder %s47, %s61
    %p63 = scmp.eq.s32.totalorder %s16, 0
    %p64 = por %p62, %p63
    %s66 = sadd.s32 %s65, 1
    %p69 = scmp.eq.s32.totalorder %s10, 1
    %p70 = scmp.ne.s32.totalorder %s65, %s67
    %p71 = scmp.eq.s32.totalorder %s10, 0
    %p72 = por %p70, %p71
    %p73 = scmp.ne.s32.totalorder %s65, %s67
    %p74 = scmp.eq.s32.totalorder %s15, 1
    %p75 = por %p73, %p74
    %p76 = scmp.ne.s32.totalorder %s67, %s68
    %p77 = scmp.eq.s32.totalorder %s15, 0
    %p78 = por %p76, %p77
    %p79 = scmp.ne.s32.totalorder %s67, %s68
    %p80 = scmp.eq.s32.totalorder %s16, 1
    %p81 = por %p79, %p80
    %p83 = scmp.ne.s32.totalorder %s68, %s82
    %p84 = scmp.eq.s32.totalorder %s16, 0
    %p85 = por %p83, %p84
    %s87 = sadd.s32 %s86, 1
    %p90 = scmp.eq.s32.totalorder %s10, 1
    %p91 = scmp.ne.s32.totalorder %s86, %s88
    %p92 = scmp.eq.s32.totalorder %s10, 0
    %p93 = por %p91, %p92
    %p94 = scmp.ne.s32.totalorder %s86, %s88
    %p95 = scmp.eq.s32.totalorder %s15, 1
    %p96 = por %p94, %p95
    %p97 = scmp.ne.s32.totalorder %s88, %s89
    %p98 = scmp.eq.s32.totalorder %s15, 0
    %p99 = por %p97, %p98
    %p100 = scmp.ne.s32.totalorder %s88, %s89
    %p101 = scmp.eq.s32.totalorder %s16, 1
    %p102 = por %p100, %p101
    %p104 = scmp.ne.s32.totalorder %s89, %s103
    %p105 = scmp.eq.s32.totalorder %s16, 0
    %p106 = por %p104, %p105
    %s107 = ssub.s32 %s10, %s17
    %p108 = scmp.eq.s32.totalorder %s107, 0
    %s110 = sadd.s32 %s109, 1
    %s111 = scalar_select %p108, %s109, %s110
    %p114 = pneg %p108
    %p115 = scmp.eq.s32.totalorder %s10, 1
    %p116 = por %p114, %p115
    %p117 = scmp.ne.s32.totalorder %s109, %s112
    %p118 = scmp.eq.s32.totalorder %s10, 0
    %p119 = por %p117, %p118
    %p120 = scmp.ne.s32.totalorder %s109, %s112
    %p121 = scmp.eq.s32.totalorder %s15, 1
    %p122 = por %p120, %p121
    %p123 = scmp.ne.s32.totalorder %s112, %s113
    %p124 = scmp.eq.s32.totalorder %s15, 0
    %p125 = por %p123, %p124
    %p126 = scmp.ne.s32.totalorder %s112, %s113
    %p127 = scmp.eq.s32.totalorder %s16, 1
    %p128 = por %p126, %p127
    %p130 = scmp.ne.s32.totalorder %s113, %s129
    %p131 = scmp.eq.s32.totalorder %s16, 0
    %p132 = por %p130, %p131
    %p133 = scmp.le.s32.totalorder 1, %s10
    %p134 = scmp.lt.s32.totalorder %s10, 3
    %p135 = pnand %p133, %p134
    %p136 = pneg %p135
    // Predicated region
    $region9: #{gridnet_block_forward.19} parent=5 // pred_check
      _
    $region10: #{gridnet_block_forward.19} parent=5 // pred_check_branch
      %138 = sbr.rel (%p135) target = $region12
    $region11: #{gridnet_block_forward.19} parent=5 // pred_region
      %s139 = ssub.s32 %s10, 1
      // Predicated region
      $region13: #{gridnet_block_forward.19} parent=11 // pred_check
        %p140 = pneg %p57
      $region14: #{gridnet_block_forward.19} parent=11 // pred_check_branch
        %142 = sbr.rel (%p140) target = $region16
      $region15: #{gridnet_block_forward.19} parent=11 // pred_region
        _
      $region16: #{gridnet_block_forward.19} parent=11 // pred_fallthru
        _
      // Predicated region
      $region17: #{gridnet_block_forward.19} parent=11 // pred_check
        %p143 = pneg %p78
      $region18: #{gridnet_block_forward.19} parent=11 // pred_check_branch
        %145 = sbr.rel (%p143) target = $region20
      $region19: #{gridnet_block_forward.19} parent=11 // pred_region
        _
      $region20: #{gridnet_block_forward.19} parent=11 // pred_fallthru
        _
      // Predicated region
      $region21: #{gridnet_block_forward.19} parent=11 // pred_check
        %p146 = pneg %p99
      $region22: #{gridnet_block_forward.19} parent=11 // pred_check_branch
        %148 = sbr.rel (%p146) target = $region24
      $region23: #{gridnet_block_forward.19} parent=11 // pred_region
        _
      $region24: #{gridnet_block_forward.19} parent=11 // pred_fallthru
        _
    $region12: #{gridnet_block_forward.19} parent=5 // pred_fallthru
      _
    %p149 = scmp.lt.s32.totalorder %s10, 2
    // Predicated region
    $region25: #{gridnet_block_forward.19} parent=5 // pred_check
      %p150 = pneg %p149
    $region26: #{gridnet_block_forward.19} parent=5 // pred_check_branch
      %152 = sbr.rel (%p150) target = $region28
    $region27: #{gridnet_block_forward.19} parent=5 // pred_region
      // Predicated region
      $region29: #{gridnet_block_forward.19} parent=27 // pred_check
        %p153 = pneg %p30
      $region30: #{gridnet_block_forward.19} parent=27 // pred_check_branch
        %155 = sbr.rel (%p153) target = $region32
      $region31: #{gridnet_block_forward.19} parent=27 // pred_region
        %s156 = smul.u32 8, %s10
        %p157 = scmp.lt.s32.totalorder %s156, 15
        %s158 = scalar_select %p157, %s156, 15
        %s159 = smul.addr %s158, 4
        %s160 = scalar_lea.vmem %s0, %s159
        %s161 = smul.u32 8, %s10
      $region32: #{gridnet_block_forward.19} parent=27 // pred_fallthru
        _
    $region28: #{gridnet_block_forward.19} parent=5 // pred_fallthru
      _
    %p162 = scmp.le.s32.totalorder 1, %s10
    %p163 = scmp.lt.s32.totalorder %s10, 3
    %p164 = pnand %p162, %p163
    %p165 = pneg %p164
    // Predicated region
    $region33: #{gridnet_block_forward.19} parent=5 // pred_check
      _
    $region34: #{gridnet_block_forward.19} parent=5 // pred_check_branch
      %167 = sbr.rel (%p164) target = $region36
    $region35: #{gridnet_block_forward.19} parent=5 // pred_region
      %s168 = ssub.s32 %s10, 1
      %s169 = smul.u32 8, %s15
      %p170 = scmp.lt.s32.totalorder %s169, 15
      %s171 = scalar_select %p170, %s169, 15
      %s172 = smul.addr %s171, 4
      %s173 = scalar_lea.vmem %s0, %s172
      %p174 = pneg %p36
      %p175 = pneg %p33
      %p176 = pneg %p57
      %p177 = pneg %p54
      %p178 = pneg %p78
      %p179 = pneg %p75
      %p180 = pneg %p99
      %p181 = pneg %p96
      %p182 = pneg %p125
      %p183 = pneg %p122
      %s184 = smul.u32 8, %s15
      %p185 = scmp.lt.s32.totalorder %s184, 15
      %s186 = scalar_select %p185, %s184, 15
      %s187 = smul.addr %s186, 4
      %s188 = scalar_lea.vmem %s4, %s187
      %s189 = smul.u32 8, %s15
      %p190 = scmp.lt.s32.totalorder %s189, 15
      %s191 = scalar_select %p190, %s189, 15
      %s192 = smul.addr %s191, 4
      %s193 = scalar_lea.vmem %s0, %s192
      %s194 = smul.u32 8, %s15
      %s195 = smul.u32 8, %s15
      %p196 = scmp.lt.s32.totalorder %s195, 15
      %s197 = scalar_select %p196, %s195, 15
      %s198 = smul.addr %s197, 4
      %s199 = scalar_lea.vmem %s4, %s198
      %s200 = smul.u32 8, %s15
      %v202 = vld [vmem:[%s193] sm:$0xf]
      %v203 = vld [vmem:[%s193 + $0x4] sm:$0xf]
      %v204 = vld [vmem:[%s193 + $0x8] sm:$0xf]
      %v205 = vld [vmem:[%s193 + $0xc] sm:$0xf]
      %v206 = vld [vmem:[%s193 + $0x10] sm:$0xf]
      %v207 = vld [vmem:[%s193 + $0x14] sm:$0xf]
      %v208 = vld [vmem:[%s193 + $0x18] sm:$0xf]
      %v209 = vld [vmem:[%s193 + $0x1c] sm:$0xf]
      %v210 = vld [vmem:[%s1] sm:$0xf]
      %v211 = vld [vmem:[%s2] sm:$0x1]
      %v213 = vperm.slane %v211, 0
      %v223 = vunpack.c.l.b16 %v202
      %v224 = vunpack.c.l.b16 %v203
      %v225 = vunpack.c.l.b16 %v204
      %v226 = vunpack.c.l.b16 %v205
      %v227 = vunpack.c.l.b16 %v206
      %v228 = vunpack.c.l.b16 %v207
      %v229 = vunpack.c.l.b16 %v208
      %v230 = vunpack.c.l.b16 %v209
      %v231 = vpack.c.b16 %v224, %v223
      %v232 = vpack.c.b16 %v226, %v225
      %v233 = vpack.c.b16 %v228, %v227
      %v234 = vpack.c.b16 %v230, %v229
      %vm235 = vcmask 64512
      %v237 = vsel %vm235, %v231, 0
      %v240 = vsel %vm235, %v232, 0
      %v243 = vsel %vm235, %v233, 0
      %v246 = vsel %vm235, %v234, 0
      %vm248 = vcmask 1043456
      %v250 = vsel %vm248, %v210, 0
      %252 = vmatpush.bf16.msra.mxu0 0
      %253 = vmatpush.bf16.msra.mxu0 0
      %254 = vmatpush.bf16.msra.mxu0 0
      %255 = vmatpush.bf16.msra.mxu0 0
      %256 = vmatpush.bf16.msra.mxu0 0
      %257 = vmatpush.bf16.msra.mxu0 0
      %258 = vmatpush.bf16.msra.mxu0 0
      %259 = vmatpush.bf16.msra.mxu0 %v250
      %260 = vmatmul.bf16.gmra.mxu0 %v237
      %v261 = vpop.f32.mrf.mxu0
      %v262 = vadd.f32 %v213, %v261
      %v263 = vpop.f32.mrf.mxu0
      %v264 = vadd.f32 %v213, %v263
      %265 = vmatmul.bf16.gmra.mxu0 %v240
      %v266 = vpop.f32.mrf.mxu0
      %v267 = vadd.f32 %v213, %v266
      %v268 = vpop.f32.mrf.mxu0
      %v269 = vadd.f32 %v213, %v268
      %270 = vmatmul.bf16.gmra.mxu0 %v243
      %v271 = vpop.f32.mrf.mxu0
      %v272 = vadd.f32 %v213, %v271
      %v273 = vpop.f32.mrf.mxu0
      %v274 = vadd.f32 %v213, %v273
      %275 = vmatmul.bf16.gmra.mxu0 %v246
      %v276 = vpop.f32.mrf.mxu0
      %v277 = vadd.f32 %v213, %v276
      %v278 = vpop.f32.mrf.mxu0
      %v279 = vadd.f32 %v213, %v278
      %280 = vdwg.mxu0
      %vm281 = vcmp.ge.f32.partialorder %v262, 0.0
      %vm282 = vcmp.ge.f32.partialorder %v264, 0.0
      %vm283 = vcmp.ge.f32.partialorder %v267, 0.0
      %vm284 = vcmp.ge.f32.partialorder %v269, 0.0
      %vm285 = vcmp.ge.f32.partialorder %v272, 0.0
      %vm286 = vcmp.ge.f32.partialorder %v274, 0.0
      %vm287 = vcmp.ge.f32.partialorder %v277, 0.0
      %vm288 = vcmp.ge.f32.partialorder %v279, 0.0
      %v289 = vld [vmem:[%s3] sm:$0x1]
      %v291 = vperm.slane %v289, 0
      %v293 = vmul.f32 %v291, %v262
      %v294 = vmul.f32 %v291, %v264
      %v295 = vmul.f32 %v291, %v267
      %v296 = vmul.f32 %v291, %v269
      %v297 = vmul.f32 %v291, %v272
      %v298 = vmul.f32 %v291, %v274
      %v299 = vmul.f32 %v291, %v277
      %v300 = vmul.f32 %v291, %v279
      %v301 = vsel %vm281, %v262, %v293
      %v302 = vsel %vm282, %v264, %v294
      %v303 = vsel %vm283, %v267, %v295
      %v304 = vsel %vm284, %v269, %v296
      %v305 = vsel %vm285, %v272, %v297
      %v306 = vsel %vm286, %v274, %v298
      %v307 = vsel %vm287, %v277, %v299
      %v308 = vsel %vm288, %v279, %v300
      %v309 = vpack.c.bf16 %v301, %v301
      %v310 = vpack.c.bf16 %v302, %v302
      %v311 = vpack.c.bf16 %v303, %v303
      %v312 = vpack.c.bf16 %v304, %v304
      %v313 = vpack.c.bf16 %v305, %v305
      %v314 = vpack.c.bf16 %v306, %v306
      %v315 = vpack.c.bf16 %v307, %v307
      %v316 = vpack.c.bf16 %v308, %v308
      %317 = vst [vmem:[%s199] sm:$0xf] %v309
      %318 = vst [vmem:[%s199 + $0x4] sm:$0xf] %v310
      %319 = vst [vmem:[%s199 + $0x8] sm:$0xf] %v311
      %320 = vst [vmem:[%s199 + $0xc] sm:$0xf] %v312
      %321 = vst [vmem:[%s199 + $0x10] sm:$0xf] %v313
      %322 = vst [vmem:[%s199 + $0x14] sm:$0xf] %v314
      %323 = vst [vmem:[%s199 + $0x18] sm:$0xf] %v315
      %324 = vst [vmem:[%s199 + $0x1c] sm:$0xf] %v316
      %s325 = smul.u32 8, %s15
      %p326 = scmp.lt.s32.totalorder %s325, 15
      %s327 = scalar_select %p326, %s325, 15
      %s328 = smul.addr %s327, 4
      %s329 = scalar_lea.vmem %s4, %s328
      // Predicated region
      $region37: #{gridnet_block_forward.19} parent=35 // pred_check
        %p330 = pneg %p122
      $region38: #{gridnet_block_forward.19} parent=35 // pred_check_branch
        %332 = sbr.rel (%p330) target = $region40
      $region39: #{gridnet_block_forward.19} parent=35 // pred_region
        %s333 = smul.u32 8, %s15
      $region40: #{gridnet_block_forward.19} parent=35 // pred_fallthru
        _
    $region36: #{gridnet_block_forward.19} parent=5 // pred_fallthru
      _
    %p334 = scmp.le.s32.totalorder 2, %s10
    // Predicated region
    $region41: #{gridnet_block_forward.19} parent=5 // pred_check
      %p335 = pneg %p334
    $region42: #{gridnet_block_forward.19} parent=5 // pred_check_branch
      %337 = sbr.rel (%p335) target = $region44
    $region43: #{gridnet_block_forward.19} parent=5 // pred_region
      %s338 = ssub.s32 %s10, 2
      // Predicated region
      $region45: #{gridnet_block_forward.19} parent=43 // pred_check
        %p339 = pneg %p128
      $region46: #{gridnet_block_forward.19} parent=43 // pred_check_branch
        %341 = sbr.rel (%p339) target = $region48
      $region47: #{gridnet_block_forward.19} parent=43 // pred_region
        %s342 = smul.u32 8, %s16
        %p343 = scmp.lt.s32.totalorder %s342, 15
        %s344 = scalar_select %p343, %s342, 15
        %s345 = smul.addr %s344, 4
        %s346 = scalar_lea.vmem %s4, %s345
      $region48: #{gridnet_block_forward.19} parent=43 // pred_fallthru
        _
    $region44: #{gridnet_block_forward.19} parent=5 // pred_fallthru
      _
  $region6: #{gridnet_block_forward.19} parent=0 // loop_footer
    %s14 = sadd.s32 1, %s10
  $region7: #{gridnet_block_forward.19} parent=0 // loop_footer_branch
    %9 = sbr.rel target = $region3
  $region8: #{gridnet_block_forward.19} parent=0 // loop_exit
    _

// kernel: gridnet_block_forward.20
$region0: #{gridnet_block_forward.20}
  #allocation0 [shape = 'u32[]', space=smem, size = 0x4, offset = 0x4, fixed_abs, tag = 'smem constant byte address 0x4 - core index']
  #allocation1 [shape = 'u32[72,128]{1,0:T(1,128)}', space=vmem, size = 0x9000, scoped, tag = 'internal scratch']
  %s0 = inlined_call_operand.vmem [shape: bf16[4,16,32], index: 0, kind: input, shape index: {}]
  %s1 = inlined_call_operand.vmem [shape: f32[4,1,32], index: 1, kind: input, shape index: {}]
  %s2 = inlined_call_operand.vmem [shape: f32[4,1,32], index: 2, kind: input, shape index: {}]
  %s3 = inlined_call_operand.vmem [shape: bf16[4,16,32], index: 3, kind: output, shape index: {}]
  %s4 = sld [smem:[#allocation0]]
  $region45: #{gridnet_block_forward.20} parent=0
    _
  %s6 = ssub.s32 1, %s4
  %s7 = scalar_select 0, %s6, %s4
  loop: start=0, step=1, limit=6
  $region2: #{gridnet_block_forward.20} parent=0 // loop_pre_header
    _
  $region3: #{gridnet_block_forward.20} parent=0 // loop_header
    %s9 = sphi 0, %s13
    %p10 = scmp.ge.s32.totalorder %s9, 6
    %s16 = sphi 0, %s28
    %s17 = sphi 0, %s24
    %s18 = sphi 0, %s16
    %s19 = sphi 0, %s17
    %s20 = sphi 0, %s18
    %s21 = sphi 0, %s19
    %s33 = sphi 0, %s35
    %s36 = sphi 0, %s33
    %s37 = sphi 0, %s36
    %s53 = sphi 0, %s37
    %s59 = sphi 0, %s61
    %s62 = sphi 0, %s59
    %s63 = sphi 0, %s62
    %s79 = sphi 0, %s63
    %s85 = sphi 0, %s87
    %s88 = sphi 0, %s85
    %s89 = sphi 0, %s88
    %s105 = sphi 0, %s89
    %s113 = sphi 0, %s115
    %s116 = sphi 0, %s113
    %s117 = sphi 0, %s116
    %s133 = sphi 0, %s117
  $region4: #{gridnet_block_forward.20} parent=0 // loop_header_branch
    %12 = sbr.rel (%p10) target = $region8
  $region5: #{gridnet_block_forward.20} parent=0 // loop_body
    %s14 = ssub.s32 %s9, 1
    %s15 = ssub.s32 %s9, 2
    %s22 = sadd.s32 1, %s17
    %p23 = scmp.ge.s32.totalorder %s22, 1
    %s24 = scalar_select %p23, 0, %s22
    %s25 = sadd.s32 1, %s16
    %s26 = scalar_select %p23, %s25, %s16
    %p27 = scmp.ge.s32.totalorder %s26, 4
    %s28 = scalar_select %p27, 0, %s26
    %s29 = ssub.s32 %s16, %s28
    %s30 = ssub.s32 %s17, %s24
    %s31 = sor.u32 %s29, %s30
    %p32 = scmp.eq.s32.totalorder %s31, 0
    %s34 = sadd.s32 %s33, 1
    %s35 = scalar_select %p32, %s33, %s34
    %p38 = pneg %p32
    %p39 = scmp.eq.s32.totalorder %s9, 3
    %p40 = por %p38, %p39
    %p41 = scmp.ne.s32.totalorder %s33, %s36
    %p42 = scmp.eq.s32.totalorder %s9, 0
    %p43 = por %p41, %p42
    %p44 = scmp.ne.s32.totalorder %s33, %s36
    %p45 = scmp.eq.s32.totalorder %s14, 3
    %p46 = por %p44, %p45
    %p47 = scmp.ne.s32.totalorder %s36, %s37
    %p48 = scmp.eq.s32.totalorder %s14, 0
    %p49 = por %p47, %p48
    %p50 = scmp.ne.s32.totalorder %s36, %s37
    %p51 = scmp.eq.s32.totalorder %s15, 3
    %p52 = por %p50, %p51
    %p54 = scmp.ne.s32.totalorder %s37, %s53
    %p55 = scmp.eq.s32.totalorder %s15, 0
    %p56 = por %p54, %p55
    %s57 = ssub.s32 %s16, %s28
    %p58 = scmp.eq.s32.totalorder %s57, 0
    %s60 = sadd.s32 %s59, 1
    %s61 = scalar_select %p58, %s59, %s60
    %p64 = pneg %p58
    %p65 = scmp.eq.s32.totalorder %s9, 3
    %p66 = por %p64, %p65
    %p67 = scmp.ne.s32.totalorder %s59, %s62
    %p68 = scmp.eq.s32.totalorder %s9, 0
    %p69 = por %p67, %p68
    %p70 = scmp.ne.s32.totalorder %s59, %s62
    %p71 = scmp.eq.s32.totalorder %s14, 3
    %p72 = por %p70, %p71
    %p73 = scmp.ne.s32.totalorder %s62, %s63
    %p74 = scmp.eq.s32.totalorder %s14, 0
    %p75 = por %p73, %p74
    %p76 = scmp.ne.s32.totalorder %s62, %s63
    %p77 = scmp.eq.s32.totalorder %s15, 3
    %p78 = por %p76, %p77
    %p80 = scmp.ne.s32.totalorder %s63, %s79
    %p81 = scmp.eq.s32.totalorder %s15, 0
    %p82 = por %p80, %p81
    %s83 = ssub.s32 %s16, %s28
    %p84 = scmp.eq.s32.totalorder %s83, 0
    %s86 = sadd.s32 %s85, 1
    %s87 = scalar_select %p84, %s85, %s86
    %p90 = pneg %p84
    %p91 = scmp.eq.s32.totalorder %s9, 3
    %p92 = por %p90, %p91
    %p93 = scmp.ne.s32.totalorder %s85, %s88
    %p94 = scmp.eq.s32.totalorder %s9, 0
    %p95 = por %p93, %p94
    %p96 = scmp.ne.s32.totalorder %s85, %s88
    %p97 = scmp.eq.s32.totalorder %s14, 3
    %p98 = por %p96, %p97
    %p99 = scmp.ne.s32.totalorder %s88, %s89
    %p100 = scmp.eq.s32.totalorder %s14, 0
    %p101 = por %p99, %p100
    %p102 = scmp.ne.s32.totalorder %s88, %s89
    %p103 = scmp.eq.s32.totalorder %s15, 3
    %p104 = por %p102, %p103
    %p106 = scmp.ne.s32.totalorder %s89, %s105
    %p107 = scmp.eq.s32.totalorder %s15, 0
    %p108 = por %p106, %p107
    %s109 = ssub.s32 %s16, %s28
    %s110 = ssub.s32 %s17, %s24
    %s111 = sor.u32 %s109, %s110
    %p112 = scmp.eq.s32.totalorder %s111, 0
    %s114 = sadd.s32 %s113, 1
    %s115 = scalar_select %p112, %s113, %s114
    %p118 = pneg %p112
    %p119 = scmp.eq.s32.totalorder %s9, 3
    %p120 = por %p118, %p119
    %p121 = scmp.ne.s32.totalorder %s113, %s116
    %p122 = scmp.eq.s32.totalorder %s9, 0
    %p123 = por %p121, %p122
    %p124 = scmp.ne.s32.totalorder %s113, %s116
    %p125 = scmp.eq.s32.totalorder %s14, 3
    %p126 = por %p124, %p125
    %p127 = scmp.ne.s32.totalorder %s116, %s117
    %p128 = scmp.eq.s32.totalorder %s14, 0
    %p129 = por %p127, %p128
    %p130 = scmp.ne.s32.totalorder %s116, %s117
    %p131 = scmp.eq.s32.totalorder %s15, 3
    %p132 = por %p130, %p131
    %p134 = scmp.ne.s32.totalorder %s117, %s133
    %p135 = scmp.eq.s32.totalorder %s15, 0
    %p136 = por %p134, %p135
    %p137 = scmp.le.s32.totalorder 1, %s9
    %p138 = scmp.lt.s32.totalorder %s9, 5
    %p139 = pnand %p137, %p138
    %p140 = pneg %p139
    // Predicated region
    $region9: #{gridnet_block_forward.20} parent=5 // pred_check
      _
    $region10: #{gridnet_block_forward.20} parent=5 // pred_check_branch
      %142 = sbr.rel (%p139) target = $region12
    $region11: #{gridnet_block_forward.20} parent=5 // pred_region
      %s143 = ssub.s32 %s9, 1
    $region12: #{gridnet_block_forward.20} parent=5 // pred_fallthru
      _
    %p144 = scmp.lt.s32.totalorder %s9, 4
    // Predicated region
    $region13: #{gridnet_block_forward.20} parent=5 // pred_check
      %p145 = pneg %p144
    $region14: #{gridnet_block_forward.20} parent=5 // pred_check_branch
      %147 = sbr.rel (%p145) target = $region16
    $region15: #{gridnet_block_forward.20} parent=5 // pred_region
      // Predicated region
      $region17: #{gridnet_block_forward.20} parent=15 // pred_check
        %p148 = pneg %p43
      $region18: #{gridnet_block_forward.20} parent=15 // pred_check_branch
        %150 = sbr.rel (%p148) target = $region20
      $region19: #{gridnet_block_forward.20} parent=15 // pred_region
        %s151 = smul.u32 2, %s17
        %p152 = scmp.lt.s32.totalorder %s16, 3
        %s153 = scalar_select %p152, %s16, 3
        %p154 = scmp.lt.s32.totalorder %s151, 1
        %s155 = scalar_select %p154, %s151, 1
        %s156 = smul.addr %s153, 2
        %s157 = sadd.s32 %s155, %s156
        %s158 = smul.addr %s157, 4
        %s159 = scalar_lea.vmem %s0, %s158
        %s160 = smul.u32 2, %s17
      $region20: #{gridnet_block_forward.20} parent=15 // pred_fallthru
        _
      // Predicated region
      $region21: #{gridnet_block_forward.20} parent=15 // pred_check
        %p161 = pneg %p69
      $region22: #{gridnet_block_forward.20} parent=15 // pred_check_branch
        %163 = sbr.rel (%p161) target = $region24
      $region23: #{gridnet_block_forward.20} parent=15 // pred_region
        %p164 = scmp.lt.s32.totalorder %s16, 3
        %s165 = scalar_select %p164, %s16, 3
        %s166 = scalar_lea.vmem %s1, %s165
      $region24: #{gridnet_block_forward.20} parent=15 // pred_fallthru
        _
      // Predicated region
      $region25: #{gridnet_block_forward.20} parent=15 // pred_check
        %p167 = pneg %p95
      $region26: #{gridnet_block_forward.20} parent=15 // pred_check_branch
        %169 = sbr.rel (%p167) target = $region28
      $region27: #{gridnet_block_forward.20} parent=15 // pred_region
        %p170 = scmp.lt.s32.totalorder %s16, 3
        %s171 = scalar_select %p170, %s16, 3
        %s172 = scalar_lea.vmem %s2, %s171
      $region28: #{gridnet_block_forward.20} parent=15 // pred_fallthru
        _
    $region16: #{gridnet_block_forward.20} parent=5 // pred_fallthru
      _
    %p173 = scmp.le.s32.totalorder 1, %s9
    %p174 = scmp.lt.s32.totalorder %s9, 5
    %p175 = pnand %p173, %p174
    %p176 = pneg %p175
    // Predicated region
    $region29: #{gridnet_block_forward.20} parent=5 // pred_check
      _
    $region30: #{gridnet_block_forward.20} parent=5 // pred_check_branch
      %178 = sbr.rel (%p175) target = $region32
    $region31: #{gridnet_block_forward.20} parent=5 // pred_region
      %s179 = ssub.s32 %s9, 1
      %s180 = smul.u32 2, %s19
      %p181 = scmp.lt.s32.totalorder %s18, 3
      %s182 = scalar_select %p181, %s18, 3
      %p183 = scmp.lt.s32.totalorder %s180, 1
      %s184 = scalar_select %p183, %s180, 1
      %s185 = smul.addr %s182, 2
      %s186 = sadd.s32 %s184, %s185
      %s187 = smul.addr %s186, 4
      %s188 = scalar_lea.vmem %s0, %s187
      %p189 = pneg %p49
      %p190 = pneg %p46
      %p191 = scmp.lt.s32.totalorder %s18, 3
      %s192 = scalar_select %p191, %s18, 3
      %s193 = scalar_lea.vmem %s1, %s192
      %p194 = pneg %p75
      %p195 = pneg %p72
      %p196 = scmp.lt.s32.totalorder %s18, 3
      %s197 = scalar_select %p196, %s18, 3
      %s198 = scalar_lea.vmem %s2, %s197
      %p199 = pneg %p101
      %p200 = pneg %p98
      %p201 = pneg %p129
      %p202 = pneg %p126
      %s203 = smul.u32 2, %s19
      %p204 = scmp.lt.s32.totalorder %s18, 3
      %s205 = scalar_select %p204, %s18, 3
      %p206 = scmp.lt.s32.totalorder %s203, 1
      %s207 = scalar_select %p206, %s203, 1
      %s208 = smul.addr %s205, 2
      %s209 = sadd.s32 %s207, %s208
      %s210 = smul.addr %s209, 4
      %s211 = scalar_lea.vmem %s3, %s210
      %s212 = smul.u32 2, %s19
      %p213 = scmp.lt.s32.totalorder %s18, 3
      %s214 = scalar_select %p213, %s18, 3
      %p215 = scmp.lt.s32.totalorder %s212, 1
      %s216 = scalar_select %p215, %s212, 1
      %s217 = smul.addr %s214, 2
      %s218 = sadd.s32 %s216, %s217
      %s219 = smul.addr %s218, 4
      %s220 = scalar_lea.vmem %s0, %s219
      %s221 = smul.u32 2, %s19
      %p222 = scmp.lt.s32.totalorder %s18, 3
      %s223 = scalar_select %p222, %s18, 3
      %s224 = scalar_lea.vmem %s1, %s223
      %p225 = scmp.lt.s32.totalorder %s18, 3
      %s226 = scalar_select %p225, %s18, 3
      %s227 = scalar_lea.vmem %s2, %s226
      %s228 = smul.u32 2, %s19
      %p229 = scmp.lt.s32.totalorder %s18, 3
      %s230 = scalar_select %p229, %s18, 3
      %p231 = scmp.lt.s32.totalorder %s228, 1
      %s232 = scalar_select %p231, %s228, 1
      %s233 = smul.addr %s230, 2
      %s234 = sadd.s32 %s232, %s233
      %s235 = smul.addr %s234, 4
      %s236 = scalar_lea.vmem %s3, %s235
      %s237 = smul.u32 2, %s19
      %v238 = vld [vmem:[%s220] sm:$0xf]
      %v239 = vld [vmem:[%s220 + $0x4] sm:$0xf]
      %v240 = vunpack.c.l.bf16 %v238
      %v241 = vunpack.c.l.bf16 %v239
      %vm242 = vcmask 261120
      %v243 = vsel %vm242, %v240, 0.0
      %244 = vadd.xlane.f32.xlu0 %v243
      %v245 = vpop.xlane.xlu0 %244
      %v246 = vsel %vm242, %v241, 0.0
      %247 = vadd.xlane.f32.xlu0 %v246
      %v248 = vpop.xlane.xlu0 %247
      %v249 = vrcp.pop 32.0
      %v250 = vmul.f32 32.0, %v249
      %v251 = vsub.f32 1.0, %v250
      %v252 = vmul.f32 %v249, %v251
      %v253 = vadd.f32 %v249, %v252
      %vm254 = vweird.f32 %v249
      %v255 = vsel %vm254, %v249, %v253
      %v256 = vmul.f32 %v245, %v255
      %v257 = vmul.f32 %v248, %v255
      %v258 = vsub.f32 %v240, %v256
      %v259 = vsub.f32 %v241, %v257
      %v260 = vmul.f32 %v258, %v258
      %v261 = vmul.f32 %v259, %v259
      %v262 = vsel %vm242, %v260, 0.0
      %263 = vadd.xlane.f32.xlu0 %v262
      %v264 = vpop.xlane.xlu0 %263
      %v265 = vsel %vm242, %v261, 0.0
      %266 = vadd.xlane.f32.xlu0 %v265
      %v267 = vpop.xlane.xlu0 %266
      %v268 = vmul.f32 %v264, %v255
      %v269 = vmul.f32 %v267, %v255
      %v270 = vadd.f32 %v268, 1e-05
      %v271 = vadd.f32 %v269, 1e-05
      %v272 = vrsqrt.pop %v270
      %v273 = vmul.f32 %v272, %v270
      %v274 = vmul.f32 %v273, %v272
      %v275 = vmul.f32 0.5, %v274
      %v276 = vsub.f32 1.5, %v275
      %v277 = vmul.f32 %v272, %v276
      %vm278 = vweird.f32 %v270
      %vm279 = vweird.f32 %v272
      %vm280 = vmor %vm278, %vm279
      %v281 = vsel %vm280, %v272, %v277
      %v282 = vrsqrt.pop %v271
      %v283 = vmul.f32 %v282, %v271
      %v284 = vmul.f32 %v283, %v282
      %v285 = vmul.f32 0.5, %v284
      %v286 = vsub.f32 1.5, %v285
      %v287 = vmul.f32 %v282, %v286
      %vm288 = vweird.f32 %v271
      %vm289 = vweird.f32 %v282
      %vm290 = vmor %vm288, %vm289
      %v291 = vsel %vm290, %v282, %v287
      %v292 = vmul.f32 %v258, %v281
      %v293 = vmul.f32 %v259, %v291
      %v294 = vld [vmem:[%s224] sm:$0x1]
      %v296 = vperm.slane %v294, 0
      %v298 = vmul.f32 %v292, %v296
      %v299 = vmul.f32 %v293, %v296
      %v300 = vld [vmem:[%s227] sm:$0x1]
      %v302 = vperm.slane %v300, 0
      %v304 = vadd.f32 %v298, %v302
      %v305 = vadd.f32 %v299, %v302
      %v306 = vpack.c.bf16 %v304, %v304
      %v307 = vpack.c.bf16 %v305, %v305
      %vm308 = vcmask 257024
      %309 = vst.msk [vmem:[%s236] sm:$0xf] %vm308, %v306
      %310 = vst.msk [vmem:[%s236 + $0x4] sm:$0xf] %vm308, %v307
      %s311 = smul.u32 2, %s19
      %p312 = scmp.lt.s32.totalorder %s18, 3
      %s313 = scalar_select %p312, %s18, 3
      %p314 = scmp.lt.s32.totalorder %s311, 1
      %s315 = scalar_select %p314, %s311, 1
      %s316 = smul.addr %s313, 2
      %s317 = sadd.s32 %s315, %s316
      %s318 = smul.addr %s317, 4
      %s319 = scalar_lea.vmem %s3, %s318
      // Predicated region
      $region33: #{gridnet_block_forward.20} parent=31 // pred_check
        %p320 = pneg %p126
      $region34: #{gridnet_block_forward.20} parent=31 // pred_check_branch
        %322 = sbr.rel (%p320) target = $region36
      $region35: #{gridnet_block_forward.20} parent=31 // pred_region
        %s323 = smul.u32 2, %s19
      $region36: #{gridnet_block_forward.20} parent=31 // pred_fallthru
        _
    $region32: #{gridnet_block_forward.20} parent=5 // pred_fallthru
      _
    %p324 = scmp.le.s32.totalorder 2, %s9
    // Predicated region
    $region37: #{gridnet_block_forward.20} parent=5 // pred_check
      %p325 = pneg %p324
    $region38: #{gridnet_block_forward.20} parent=5 // pred_check_branch
      %327 = sbr.rel (%p325) target = $region40
    $region39: #{gridnet_block_forward.20} parent=5 // pred_region
      %s328 = ssub.s32 %s9, 2
      // Predicated region
      $region41: #{gridnet_block_forward.20} parent=39 // pred_check
        %p329 = pneg %p132
      $region42: #{gridnet_block_forward.20} parent=39 // pred_check_branch
        %331 = sbr.rel (%p329) target = $region44
      $region43: #{gridnet_block_forward.20} parent=39 // pred_region
        %s332 = smul.u32 2, %s21
        %p333 = scmp.lt.s32.totalorder %s20, 3
        %s334 = scalar_select %p333, %s20, 3
        %p335 = scmp.lt.s32.totalorder %s332, 1
        %s336 = scalar_select %p335, %s332, 1
        %s337 = smul.addr %s334, 2
        %s338 = sadd.s32 %s336, %s337
        %s339 = smul.addr %s338, 4
        %s340 = scalar_lea.vmem %s3, %s339
      $region44: #{gridnet_block_forward.20} parent=39 // pred_fallthru
        _
    $region40: #{gridnet_block_forward.20} parent=5 // pred_fallthru
      _
  $region6: #{gridnet_block_forward.20} parent=0 // loop_footer
    %s13 = sadd.s32 1, %s9
  $region7: #{gridnet_block_forward.20} parent=0 // loop_footer_branch
    %8 = sbr.rel target = $region3
  $region8: #{gridnet_block_forward.20} parent=0 // loop_exit
    _

// kernel: gridnet_block_forward.22
$region0: #{gridnet_block_forward.22}
  #allocation0 [shape = 'u32[]', space=smem, size = 0x4, offset = 0x4, fixed_abs, tag = 'smem constant byte address 0x4 - core index']
  #allocation1 [shape = 'u32[72,128]{1,0:T(1,128)}', space=vmem, size = 0x9000, scoped, tag = 'internal scratch']
  %s0 = inlined_call_operand.vmem [shape: bf16[4,16,16], index: 0, kind: input, shape index: {}]
  %s1 = inlined_call_operand.vmem [shape: f32[4,1,16], index: 1, kind: input, shape index: {}]
  %s2 = inlined_call_operand.vmem [shape: f32[4,1,16], index: 2, kind: input, shape index: {}]
  %s3 = inlined_call_operand.vmem [shape: bf16[4,16,16], index: 3, kind: output, shape index: {}]
  %s4 = sld [smem:[#allocation0]]
  $region45: #{gridnet_block_forward.22} parent=0
    _
  %s6 = ssub.s32 1, %s4
  %s7 = scalar_select 0, %s6, %s4
  loop: start=0, step=1, limit=6
  $region2: #{gridnet_block_forward.22} parent=0 // loop_pre_header
    _
  $region3: #{gridnet_block_forward.22} parent=0 // loop_header
    %s9 = sphi 0, %s13
    %p10 = scmp.ge.s32.totalorder %s9, 6
    %s16 = sphi 0, %s28
    %s17 = sphi 0, %s24
    %s18 = sphi 0, %s16
    %s19 = sphi 0, %s17
    %s20 = sphi 0, %s18
    %s21 = sphi 0, %s19
    %s33 = sphi 0, %s35
    %s36 = sphi 0, %s33
    %s37 = sphi 0, %s36
    %s53 = sphi 0, %s37
    %s59 = sphi 0, %s61
    %s62 = sphi 0, %s59
    %s63 = sphi 0, %s62
    %s79 = sphi 0, %s63
    %s85 = sphi 0, %s87
    %s88 = sphi 0, %s85
    %s89 = sphi 0, %s88
    %s105 = sphi 0, %s89
    %s113 = sphi 0, %s115
    %s116 = sphi 0, %s113
    %s117 = sphi 0, %s116
    %s133 = sphi 0, %s117
  $region4: #{gridnet_block_forward.22} parent=0 // loop_header_branch
    %12 = sbr.rel (%p10) target = $region8
  $region5: #{gridnet_block_forward.22} parent=0 // loop_body
    %s14 = ssub.s32 %s9, 1
    %s15 = ssub.s32 %s9, 2
    %s22 = sadd.s32 1, %s17
    %p23 = scmp.ge.s32.totalorder %s22, 1
    %s24 = scalar_select %p23, 0, %s22
    %s25 = sadd.s32 1, %s16
    %s26 = scalar_select %p23, %s25, %s16
    %p27 = scmp.ge.s32.totalorder %s26, 4
    %s28 = scalar_select %p27, 0, %s26
    %s29 = ssub.s32 %s16, %s28
    %s30 = ssub.s32 %s17, %s24
    %s31 = sor.u32 %s29, %s30
    %p32 = scmp.eq.s32.totalorder %s31, 0
    %s34 = sadd.s32 %s33, 1
    %s35 = scalar_select %p32, %s33, %s34
    %p38 = pneg %p32
    %p39 = scmp.eq.s32.totalorder %s9, 3
    %p40 = por %p38, %p39
    %p41 = scmp.ne.s32.totalorder %s33, %s36
    %p42 = scmp.eq.s32.totalorder %s9, 0
    %p43 = por %p41, %p42
    %p44 = scmp.ne.s32.totalorder %s33, %s36
    %p45 = scmp.eq.s32.totalorder %s14, 3
    %p46 = por %p44, %p45
    %p47 = scmp.ne.s32.totalorder %s36, %s37
    %p48 = scmp.eq.s32.totalorder %s14, 0
    %p49 = por %p47, %p48
    %p50 = scmp.ne.s32.totalorder %s36, %s37
    %p51 = scmp.eq.s32.totalorder %s15, 3
    %p52 = por %p50, %p51
    %p54 = scmp.ne.s32.totalorder %s37, %s53
    %p55 = scmp.eq.s32.totalorder %s15, 0
    %p56 = por %p54, %p55
    %s57 = ssub.s32 %s16, %s28
    %p58 = scmp.eq.s32.totalorder %s57, 0
    %s60 = sadd.s32 %s59, 1
    %s61 = scalar_select %p58, %s59, %s60
    %p64 = pneg %p58
    %p65 = scmp.eq.s32.totalorder %s9, 3
    %p66 = por %p64, %p65
    %p67 = scmp.ne.s32.totalorder %s59, %s62
    %p68 = scmp.eq.s32.totalorder %s9, 0
    %p69 = por %p67, %p68
    %p70 = scmp.ne.s32.totalorder %s59, %s62
    %p71 = scmp.eq.s32.totalorder %s14, 3
    %p72 = por %p70, %p71
    %p73 = scmp.ne.s32.totalorder %s62, %s63
    %p74 = scmp.eq.s32.totalorder %s14, 0
    %p75 = por %p73, %p74
    %p76 = scmp.ne.s32.totalorder %s62, %s63
    %p77 = scmp.eq.s32.totalorder %s15, 3
    %p78 = por %p76, %p77
    %p80 = scmp.ne.s32.totalorder %s63, %s79
    %p81 = scmp.eq.s32.totalorder %s15, 0
    %p82 = por %p80, %p81
    %s83 = ssub.s32 %s16, %s28
    %p84 = scmp.eq.s32.totalorder %s83, 0
    %s86 = sadd.s32 %s85, 1
    %s87 = scalar_select %p84, %s85, %s86
    %p90 = pneg %p84
    %p91 = scmp.eq.s32.totalorder %s9, 3
    %p92 = por %p90, %p91
    %p93 = scmp.ne.s32.totalorder %s85, %s88
    %p94 = scmp.eq.s32.totalorder %s9, 0
    %p95 = por %p93, %p94
    %p96 = scmp.ne.s32.totalorder %s85, %s88
    %p97 = scmp.eq.s32.totalorder %s14, 3
    %p98 = por %p96, %p97
    %p99 = scmp.ne.s32.totalorder %s88, %s89
    %p100 = scmp.eq.s32.totalorder %s14, 0
    %p101 = por %p99, %p100
    %p102 = scmp.ne.s32.totalorder %s88, %s89
    %p103 = scmp.eq.s32.totalorder %s15, 3
    %p104 = por %p102, %p103
    %p106 = scmp.ne.s32.totalorder %s89, %s105
    %p107 = scmp.eq.s32.totalorder %s15, 0
    %p108 = por %p106, %p107
    %s109 = ssub.s32 %s16, %s28
    %s110 = ssub.s32 %s17, %s24
    %s111 = sor.u32 %s109, %s110
    %p112 = scmp.eq.s32.totalorder %s111, 0
    %s114 = sadd.s32 %s113, 1
    %s115 = scalar_select %p112, %s113, %s114
    %p118 = pneg %p112
    %p119 = scmp.eq.s32.totalorder %s9, 3
    %p120 = por %p118, %p119
    %p121 = scmp.ne.s32.totalorder %s113, %s116
    %p122 = scmp.eq.s32.totalorder %s9, 0
    %p123 = por %p121, %p122
    %p124 = scmp.ne.s32.totalorder %s113, %s116
    %p125 = scmp.eq.s32.totalorder %s14, 3
    %p126 = por %p124, %p125
    %p127 = scmp.ne.s32.totalorder %s116, %s117
    %p128 = scmp.eq.s32.totalorder %s14, 0
    %p129 = por %p127, %p128
    %p130 = scmp.ne.s32.totalorder %s116, %s117
    %p131 = scmp.eq.s32.totalorder %s15, 3
    %p132 = por %p130, %p131
    %p134 = scmp.ne.s32.totalorder %s117, %s133
    %p135 = scmp.eq.s32.totalorder %s15, 0
    %p136 = por %p134, %p135
    %p137 = scmp.le.s32.totalorder 1, %s9
    %p138 = scmp.lt.s32.totalorder %s9, 5
    %p139 = pnand %p137, %p138
    %p140 = pneg %p139
    // Predicated region
    $region9: #{gridnet_block_forward.22} parent=5 // pred_check
      _
    $region10: #{gridnet_block_forward.22} parent=5 // pred_check_branch
      %142 = sbr.rel (%p139) target = $region12
    $region11: #{gridnet_block_forward.22} parent=5 // pred_region
      %s143 = ssub.s32 %s9, 1
    $region12: #{gridnet_block_forward.22} parent=5 // pred_fallthru
      _
    %p144 = scmp.lt.s32.totalorder %s9, 4
    // Predicated region
    $region13: #{gridnet_block_forward.22} parent=5 // pred_check
      %p145 = pneg %p144
    $region14: #{gridnet_block_forward.22} parent=5 // pred_check_branch
      %147 = sbr.rel (%p145) target = $region16
    $region15: #{gridnet_block_forward.22} parent=5 // pred_region
      // Predicated region
      $region17: #{gridnet_block_forward.22} parent=15 // pred_check
        %p148 = pneg %p43
      $region18: #{gridnet_block_forward.22} parent=15 // pred_check_branch
        %150 = sbr.rel (%p148) target = $region20
      $region19: #{gridnet_block_forward.22} parent=15 // pred_region
        %s151 = smul.u32 2, %s17
        %p152 = scmp.lt.s32.totalorder %s16, 3
        %s153 = scalar_select %p152, %s16, 3
        %p154 = scmp.lt.s32.totalorder %s151, 1
        %s155 = scalar_select %p154, %s151, 1
        %s156 = smul.addr %s153, 2
        %s157 = sadd.s32 %s155, %s156
        %s158 = smul.addr %s157, 4
        %s159 = scalar_lea.vmem %s0, %s158
        %s160 = smul.u32 2, %s17
      $region20: #{gridnet_block_forward.22} parent=15 // pred_fallthru
        _
      // Predicated region
      $region21: #{gridnet_block_forward.22} parent=15 // pred_check
        %p161 = pneg %p69
      $region22: #{gridnet_block_forward.22} parent=15 // pred_check_branch
        %163 = sbr.rel (%p161) target = $region24
      $region23: #{gridnet_block_forward.22} parent=15 // pred_region
        %p164 = scmp.lt.s32.totalorder %s16, 3
        %s165 = scalar_select %p164, %s16, 3
        %s166 = scalar_lea.vmem %s1, %s165
      $region24: #{gridnet_block_forward.22} parent=15 // pred_fallthru
        _
      // Predicated region
      $region25: #{gridnet_block_forward.22} parent=15 // pred_check
        %p167 = pneg %p95
      $region26: #{gridnet_block_forward.22} parent=15 // pred_check_branch
        %169 = sbr.rel (%p167) target = $region28
      $region27: #{gridnet_block_forward.22} parent=15 // pred_region
        %p170 = scmp.lt.s32.totalorder %s16, 3
        %s171 = scalar_select %p170, %s16, 3
        %s172 = scalar_lea.vmem %s2, %s171
      $region28: #{gridnet_block_forward.22} parent=15 // pred_fallthru
        _
    $region16: #{gridnet_block_forward.22} parent=5 // pred_fallthru
      _
    %p173 = scmp.le.s32.totalorder 1, %s9
    %p174 = scmp.lt.s32.totalorder %s9, 5
    %p175 = pnand %p173, %p174
    %p176 = pneg %p175
    // Predicated region
    $region29: #{gridnet_block_forward.22} parent=5 // pred_check
      _
    $region30: #{gridnet_block_forward.22} parent=5 // pred_check_branch
      %178 = sbr.rel (%p175) target = $region32
    $region31: #{gridnet_block_forward.22} parent=5 // pred_region
      %s179 = ssub.s32 %s9, 1
      %s180 = smul.u32 2, %s19
      %p181 = scmp.lt.s32.totalorder %s18, 3
      %s182 = scalar_select %p181, %s18, 3
      %p183 = scmp.lt.s32.totalorder %s180, 1
      %s184 = scalar_select %p183, %s180, 1
      %s185 = smul.addr %s182, 2
      %s186 = sadd.s32 %s184, %s185
      %s187 = smul.addr %s186, 4
      %s188 = scalar_lea.vmem %s0, %s187
      %p189 = pneg %p49
      %p190 = pneg %p46
      %p191 = scmp.lt.s32.totalorder %s18, 3
      %s192 = scalar_select %p191, %s18, 3
      %s193 = scalar_lea.vmem %s1, %s192
      %p194 = pneg %p75
      %p195 = pneg %p72
      %p196 = scmp.lt.s32.totalorder %s18, 3
      %s197 = scalar_select %p196, %s18, 3
      %s198 = scalar_lea.vmem %s2, %s197
      %p199 = pneg %p101
      %p200 = pneg %p98
      %p201 = pneg %p129
      %p202 = pneg %p126
      %s203 = smul.u32 2, %s19
      %p204 = scmp.lt.s32.totalorder %s18, 3
      %s205 = scalar_select %p204, %s18, 3
      %p206 = scmp.lt.s32.totalorder %s203, 1
      %s207 = scalar_select %p206, %s203, 1
      %s208 = smul.addr %s205, 2
      %s209 = sadd.s32 %s207, %s208
      %s210 = smul.addr %s209, 4
      %s211 = scalar_lea.vmem %s3, %s210
      %s212 = smul.u32 2, %s19
      %p213 = scmp.lt.s32.totalorder %s18, 3
      %s214 = scalar_select %p213, %s18, 3
      %p215 = scmp.lt.s32.totalorder %s212, 1
      %s216 = scalar_select %p215, %s212, 1
      %s217 = smul.addr %s214, 2
      %s218 = sadd.s32 %s216, %s217
      %s219 = smul.addr %s218, 4
      %s220 = scalar_lea.vmem %s0, %s219
      %s221 = smul.u32 2, %s19
      %p222 = scmp.lt.s32.totalorder %s18, 3
      %s223 = scalar_select %p222, %s18, 3
      %s224 = scalar_lea.vmem %s1, %s223
      %p225 = scmp.lt.s32.totalorder %s18, 3
      %s226 = scalar_select %p225, %s18, 3
      %s227 = scalar_lea.vmem %s2, %s226
      %s228 = smul.u32 2, %s19
      %p229 = scmp.lt.s32.totalorder %s18, 3
      %s230 = scalar_select %p229, %s18, 3
      %p231 = scmp.lt.s32.totalorder %s228, 1
      %s232 = scalar_select %p231, %s228, 1
      %s233 = smul.addr %s230, 2
      %s234 = sadd.s32 %s232, %s233
      %s235 = smul.addr %s234, 4
      %s236 = scalar_lea.vmem %s3, %s235
      %s237 = smul.u32 2, %s19
      %v238 = vld [vmem:[%s220] sm:$0xf]
      %v239 = vld [vmem:[%s220 + $0x4] sm:$0xf]
      %v240 = vunpack.c.l.bf16 %v238
      %v241 = vunpack.c.l.bf16 %v239
      %vm242 = vcmask 130048
      %v243 = vsel %vm242, %v240, 0.0
      %244 = vadd.xlane.f32.xlu0 %v243
      %v245 = vpop.xlane.xlu0 %244
      %v246 = vsel %vm242, %v241, 0.0
      %247 = vadd.xlane.f32.xlu0 %v246
      %v248 = vpop.xlane.xlu0 %247
      %v249 = vrcp.pop 16.0
      %v250 = vmul.f32 16.0, %v249
      %v251 = vsub.f32 1.0, %v250
      %v252 = vmul.f32 %v249, %v251
      %v253 = vadd.f32 %v249, %v252
      %vm254 = vweird.f32 %v249
      %v255 = vsel %vm254, %v249, %v253
      %v256 = vmul.f32 %v245, %v255
      %v257 = vmul.f32 %v248, %v255
      %v258 = vsub.f32 %v240, %v256
      %v259 = vsub.f32 %v241, %v257
      %v260 = vmul.f32 %v258, %v258
      %v261 = vmul.f32 %v259, %v259
      %v262 = vsel %vm242, %v260, 0.0
      %263 = vadd.xlane.f32.xlu0 %v262
      %v264 = vpop.xlane.xlu0 %263
      %v265 = vsel %vm242, %v261, 0.0
      %266 = vadd.xlane.f32.xlu0 %v265
      %v267 = vpop.xlane.xlu0 %266
      %v268 = vmul.f32 %v264, %v255
      %v269 = vmul.f32 %v267, %v255
      %v270 = vadd.f32 %v268, 1e-05
      %v271 = vadd.f32 %v269, 1e-05
      %v272 = vrsqrt.pop %v270
      %v273 = vmul.f32 %v272, %v270
      %v274 = vmul.f32 %v273, %v272
      %v275 = vmul.f32 0.5, %v274
      %v276 = vsub.f32 1.5, %v275
      %v277 = vmul.f32 %v272, %v276
      %vm278 = vweird.f32 %v270
      %vm279 = vweird.f32 %v272
      %vm280 = vmor %vm278, %vm279
      %v281 = vsel %vm280, %v272, %v277
      %v282 = vrsqrt.pop %v271
      %v283 = vmul.f32 %v282, %v271
      %v284 = vmul.f32 %v283, %v282
      %v285 = vmul.f32 0.5, %v284
      %v286 = vsub.f32 1.5, %v285
      %v287 = vmul.f32 %v282, %v286
      %vm288 = vweird.f32 %v271
      %vm289 = vweird.f32 %v282
      %vm290 = vmor %vm288, %vm289
      %v291 = vsel %vm290, %v282, %v287
      %v292 = vmul.f32 %v258, %v281
      %v293 = vmul.f32 %v259, %v291
      %v294 = vld [vmem:[%s224] sm:$0x1]
      %v296 = vperm.slane %v294, 0
      %v298 = vmul.f32 %v292, %v296
      %v299 = vmul.f32 %v293, %v296
      %v300 = vld [vmem:[%s227] sm:$0x1]
      %v302 = vperm.slane %v300, 0
      %v304 = vadd.f32 %v298, %v302
      %v305 = vadd.f32 %v299, %v302
      %v306 = vpack.c.bf16 %v304, %v304
      %v307 = vpack.c.bf16 %v305, %v305
      %vm308 = vcmask 125952
      %309 = vst.msk [vmem:[%s236] sm:$0xf] %vm308, %v306
      %310 = vst.msk [vmem:[%s236 + $0x4] sm:$0xf] %vm308, %v307
      %s311 = smul.u32 2, %s19
      %p312 = scmp.lt.s32.totalorder %s18, 3
      %s313 = scalar_select %p312, %s18, 3
      %p314 = scmp.lt.s32.totalorder %s311, 1
      %s315 = scalar_select %p314, %s311, 1
      %s316 = smul.addr %s313, 2
      %s317 = sadd.s32 %s315, %s316
      %s318 = smul.addr %s317, 4
      %s319 = scalar_lea.vmem %s3, %s318
      // Predicated region
      $region33: #{gridnet_block_forward.22} parent=31 // pred_check
        %p320 = pneg %p126
      $region34: #{gridnet_block_forward.22} parent=31 // pred_check_branch
        %322 = sbr.rel (%p320) target = $region36
      $region35: #{gridnet_block_forward.22} parent=31 // pred_region
        %s323 = smul.u32 2, %s19
      $region36: #{gridnet_block_forward.22} parent=31 // pred_fallthru
        _
    $region32: #{gridnet_block_forward.22} parent=5 // pred_fallthru
      _
    %p324 = scmp.le.s32.totalorder 2, %s9
    // Predicated region
    $region37: #{gridnet_block_forward.22} parent=5 // pred_check
      %p325 = pneg %p324
    $region38: #{gridnet_block_forward.22} parent=5 // pred_check_branch
      %327 = sbr.rel (%p325) target = $region40
    $region39: #{gridnet_block_forward.22} parent=5 // pred_region
      %s328 = ssub.s32 %s9, 2
      // Predicated region
      $region41: #{gridnet_block_forward.22} parent=39 // pred_check
        %p329 = pneg %p132
      $region42: #{gridnet_block_forward.22} parent=39 // pred_check_branch
        %331 = sbr.rel (%p329) target = $region44
      $region43: #{gridnet_block_forward.22} parent=39 // pred_region
        %s332 = smul.u32 2, %s21
        %p333 = scmp.lt.s32.totalorder %s20, 3
        %s334 = scalar_select %p333, %s20, 3
        %p335 = scmp.lt.s32.totalorder %s332, 1
        %s336 = scalar_select %p335, %s332, 1
        %s337 = smul.addr %s334, 2
        %s338 = sadd.s32 %s336, %s337
        %s339 = smul.addr %s338, 4
        %s340 = scalar_lea.vmem %s3, %s339
      $region44: #{gridnet_block_forward.22} parent=39 // pred_fallthru
        _
    $region40: #{gridnet_block_forward.22} parent=5 // pred_fallthru
      _
  $region6: #{gridnet_block_forward.22} parent=0 // loop_footer
    %s13 = sadd.s32 1, %s9
  $region7: #{gridnet_block_forward.22} parent=0 // loop_footer_branch
    %8 = sbr.rel target = $region3
  $region8: #{gridnet_block_forward.22} parent=0 // loop_exit
    _

// kernel: gridnet_block_forward.23
$region0: #{gridnet_block_forward.23}
  #allocation0 [shape = 'u32[]', space=smem, size = 0x4, offset = 0x4, fixed_abs, tag = 'smem constant byte address 0x4 - core index']
  #allocation1 [shape = 'u32[72,128]{1,0:T(1,128)}', space=vmem, size = 0x9000, scoped, tag = 'internal scratch']
  %s0 = inlined_call_operand.vmem [shape: bf16[8,8,128], index: 0, kind: input, shape index: {}]
  %s1 = inlined_call_operand.vmem [shape: bf16[8,8,128], index: 1, kind: input, shape index: {}]
  %s2 = inlined_call_operand.vmem [shape: bf16[8,8,128], index: 2, kind: input, shape index: {}]
  %s3 = inlined_call_operand.vmem [shape: bf16[8,8,128], index: 3, kind: output, shape index: {}]
  %s4 = sld [smem:[#allocation0]]
  $region45: #{gridnet_block_forward.23} parent=0
    _
  %s6 = ssub.s32 1, %s4
  %s7 = scalar_select 0, %s6, %s4
  loop: start=0, step=1, limit=4
  $region2: #{gridnet_block_forward.23} parent=0 // loop_pre_header
    _
  $region3: #{gridnet_block_forward.23} parent=0 // loop_header
    %s9 = sphi 0, %s13
    %p10 = scmp.ge.s32.totalorder %s9, 4
    %s19 = sphi 0, %s21
    %s22 = sphi 0, %s19
    %s23 = sphi 0, %s22
    %s39 = sphi 0, %s23
    %s45 = sphi 0, %s47
    %s48 = sphi 0, %s45
    %s49 = sphi 0, %s48
    %s65 = sphi 0, %s49
    %s71 = sphi 0, %s73
    %s74 = sphi 0, %s71
    %s75 = sphi 0, %s74
    %s91 = sphi 0, %s75
    %s97 = sphi 0, %s99
    %s100 = sphi 0, %s97
    %s101 = sphi 0, %s100
    %s117 = sphi 0, %s101
  $region4: #{gridnet_block_forward.23} parent=0 // loop_header_branch
    %12 = sbr.rel (%p10) target = $region8
  $region5: #{gridnet_block_forward.23} parent=0 // loop_body
    %s14 = ssub.s32 %s9, 1
    %s15 = ssub.s32 %s9, 2
    %s16 = sadd.s32 %s9, 1
    %s17 = ssub.s32 %s9, %s16
    %p18 = scmp.eq.s32.totalorder %s17, 0
    %s20 = sadd.s32 %s19, 1
    %s21 = scalar_select %p18, %s19, %s20
    %p24 = pneg %p18
    %p25 = scmp.eq.s32.totalorder %s9, 1
    %p26 = por %p24, %p25
    %p27 = scmp.ne.s32.totalorder %s19, %s22
    %p28 = scmp.eq.s32.totalorder %s9, 0
    %p29 = por %p27, %p28
    %p30 = scmp.ne.s32.totalorder %s19, %s22
    %p31 = scmp.eq.s32.totalorder %s14, 1
    %p32 = por %p30, %p31
    %p33 = scmp.ne.s32.totalorder %s22, %s23
    %p34 = scmp.eq.s32.totalorder %s14, 0
    %p35 = por %p33, %p34
    %p36 = scmp.ne.s32.totalorder %s22, %s23
    %p37 = scmp.eq.s32.totalorder %s15, 1
    %p38 = por %p36, %p37
    %p40 = scmp.ne.s32.totalorder %s23, %s39
    %p41 = scmp.eq.s32.totalorder %s15, 0
    %p42 = por %p40, %p41
    %s43 = ssub.s32 %s9, %s16
    %p44 = scmp.eq.s32.totalorder %s43, 0
    %s46 = sadd.s32 %s45, 1
    %s47 = scalar_select %p44, %s45, %s46
    %p50 = pneg %p44
    %p51 = scmp.eq.s32.totalorder %s9, 1
    %p52 = por %p50, %p51
    %p53 = scmp.ne.s32.totalorder %s45, %s48
    %p54 = scmp.eq.s32.totalorder %s9, 0
    %p55 = por %p53, %p54
    %p56 = scmp.ne.s32.totalorder %s45, %s48
    %p57 = scmp.eq.s32.totalorder %s14, 1
    %p58 = por %p56, %p57
    %p59 = scmp.ne.s32.totalorder %s48, %s49
    %p60 = scmp.eq.s32.totalorder %s14, 0
    %p61 = por %p59, %p60
    %p62 = scmp.ne.s32.totalorder %s48, %s49
    %p63 = scmp.eq.s32.totalorder %s15, 1
    %p64 = por %p62, %p63
    %p66 = scmp.ne.s32.totalorder %s49, %s65
    %p67 = scmp.eq.s32.totalorder %s15, 0
    %p68 = por %p66, %p67
    %s69 = ssub.s32 %s9, %s16
    %p70 = scmp.eq.s32.totalorder %s69, 0
    %s72 = sadd.s32 %s71, 1
    %s73 = scalar_select %p70, %s71, %s72
    %p76 = pneg %p70
    %p77 = scmp.eq.s32.totalorder %s9, 1
    %p78 = por %p76, %p77
    %p79 = scmp.ne.s32.totalorder %s71, %s74
    %p80 = scmp.eq.s32.totalorder %s9, 0
    %p81 = por %p79, %p80
    %p82 = scmp.ne.s32.totalorder %s71, %s74
    %p83 = scmp.eq.s32.totalorder %s14, 1
    %p84 = por %p82, %p83
    %p85 = scmp.ne.s32.totalorder %s74, %s75
    %p86 = scmp.eq.s32.totalorder %s14, 0
    %p87 = por %p85, %p86
    %p88 = scmp.ne.s32.totalorder %s74, %s75
    %p89 = scmp.eq.s32.totalorder %s15, 1
    %p90 = por %p88, %p89
    %p92 = scmp.ne.s32.totalorder %s75, %s91
    %p93 = scmp.eq.s32.totalorder %s15, 0
    %p94 = por %p92, %p93
    %s95 = ssub.s32 %s9, %s16
    %p96 = scmp.eq.s32.totalorder %s95, 0
    %s98 = sadd.s32 %s97, 1
    %s99 = scalar_select %p96, %s97, %s98
    %p102 = pneg %p96
    %p103 = scmp.eq.s32.totalorder %s9, 1
    %p104 = por %p102, %p103
    %p105 = scmp.ne.s32.totalorder %s97, %s100
    %p106 = scmp.eq.s32.totalorder %s9, 0
    %p107 = por %p105, %p106
    %p108 = scmp.ne.s32.totalorder %s97, %s100
    %p109 = scmp.eq.s32.totalorder %s14, 1
    %p110 = por %p108, %p109
    %p111 = scmp.ne.s32.totalorder %s100, %s101
    %p112 = scmp.eq.s32.totalorder %s14, 0
    %p113 = por %p111, %p112
    %p114 = scmp.ne.s32.totalorder %s100, %s101
    %p115 = scmp.eq.s32.totalorder %s15, 1
    %p116 = por %p114, %p115
    %p118 = scmp.ne.s32.totalorder %s101, %s117
    %p119 = scmp.eq.s32.totalorder %s15, 0
    %p120 = por %p118, %p119
    %p121 = scmp.le.s32.totalorder 1, %s9
    %p122 = scmp.lt.s32.totalorder %s9, 3
    %p123 = pnand %p121, %p122
    %p124 = pneg %p123
    // Predicated region
    $region9: #{gridnet_block_forward.23} parent=5 // pred_check
      _
    $region10: #{gridnet_block_forward.23} parent=5 // pred_check_branch
      %126 = sbr.rel (%p123) target = $region12
    $region11: #{gridnet_block_forward.23} parent=5 // pred_region
      %s127 = ssub.s32 %s9, 1
    $region12: #{gridnet_block_forward.23} parent=5 // pred_fallthru
      _
    %p128 = scmp.lt.s32.totalorder %s9, 2
    // Predicated region
    $region13: #{gridnet_block_forward.23} parent=5 // pred_check
      %p129 = pneg %p128
    $region14: #{gridnet_block_forward.23} parent=5 // pred_check_branch
      %131 = sbr.rel (%p129) target = $region16
    $region15: #{gridnet_block_forward.23} parent=5 // pred_region
      // Predicated region
      $region17: #{gridnet_block_forward.23} parent=15 // pred_check
        %p132 = pneg %p29
      $region18: #{gridnet_block_forward.23} parent=15 // pred_check_branch
        %134 = sbr.rel (%p132) target = $region20
      $region19: #{gridnet_block_forward.23} parent=15 // pred_region
        %s135 = smul.u32 4, %s9
        %p136 = scmp.lt.s32.totalorder %s135, 7
        %s137 = scalar_select %p136, %s135, 7
        %s138 = smul.addr %s137, 4
        %s139 = scalar_lea.vmem %s0, %s138
        %s140 = smul.u32 4, %s9
      $region20: #{gridnet_block_forward.23} parent=15 // pred_fallthru
        _
      // Predicated region
      $region21: #{gridnet_block_forward.23} parent=15 // pred_check
        %p141 = pneg %p55
      $region22: #{gridnet_block_forward.23} parent=15 // pred_check_branch
        %143 = sbr.rel (%p141) target = $region24
      $region23: #{gridnet_block_forward.23} parent=15 // pred_region
        %s144 = smul.u32 4, %s9
        %p145 = scmp.lt.s32.totalorder %s144, 7
        %s146 = scalar_select %p145, %s144, 7
        %s147 = smul.addr %s146, 4
        %s148 = scalar_lea.vmem %s1, %s147
        %s149 = smul.u32 4, %s9
      $region24: #{gridnet_block_forward.23} parent=15 // pred_fallthru
        _
      // Predicated region
      $region25: #{gridnet_block_forward.23} parent=15 // pred_check
        %p150 = pneg %p81
      $region26: #{gridnet_block_forward.23} parent=15 // pred_check_branch
        %152 = sbr.rel (%p150) target = $region28
      $region27: #{gridnet_block_forward.23} parent=15 // pred_region
        %s153 = smul.u32 4, %s9
        %p154 = scmp.lt.s32.totalorder %s153, 7
        %s155 = scalar_select %p154, %s153, 7
        %s156 = smul.addr %s155, 4
        %s157 = scalar_lea.vmem %s2, %s156
        %s158 = smul.u32 4, %s9
      $region28: #{gridnet_block_forward.23} parent=15 // pred_fallthru
        _
    $region16: #{gridnet_block_forward.23} parent=5 // pred_fallthru
      _
    %p159 = scmp.le.s32.totalorder 1, %s9
    %p160 = scmp.lt.s32.totalorder %s9, 3
    %p161 = pnand %p159, %p160
    %p162 = pneg %p161
    // Predicated region
    $region29: #{gridnet_block_forward.23} parent=5 // pred_check
      _
    $region30: #{gridnet_block_forward.23} parent=5 // pred_check_branch
      %164 = sbr.rel (%p161) target = $region32
    $region31: #{gridnet_block_forward.23} parent=5 // pred_region
      %s165 = ssub.s32 %s9, 1
      %s166 = smul.u32 4, %s14
      %p167 = scmp.lt.s32.totalorder %s166, 7
      %s168 = scalar_select %p167, %s166, 7
      %s169 = smul.addr %s168, 4
      %s170 = scalar_lea.vmem %s0, %s169
      %p171 = pneg %p35
      %p172 = pneg %p32
      %s173 = smul.u32 4, %s14
      %p174 = scmp.lt.s32.totalorder %s173, 7
      %s175 = scalar_select %p174, %s173, 7
      %s176 = smul.addr %s175, 4
      %s177 = scalar_lea.vmem %s1, %s176
      %p178 = pneg %p61
      %p179 = pneg %p58
      %s180 = smul.u32 4, %s14
      %p181 = scmp.lt.s32.totalorder %s180, 7
      %s182 = scalar_select %p181, %s180, 7
      %s183 = smul.addr %s182, 4
      %s184 = scalar_lea.vmem %s2, %s183
      %p185 = pneg %p87
      %p186 = pneg %p84
      %p187 = pneg %p113
      %p188 = pneg %p110
      %s189 = smul.u32 4, %s14
      %p190 = scmp.lt.s32.totalorder %s189, 7
      %s191 = scalar_select %p190, %s189, 7
      %s192 = smul.addr %s191, 4
      %s193 = scalar_lea.vmem %s3, %s192
      %s194 = smul.u32 4, %s14
      %p195 = scmp.lt.s32.totalorder %s194, 7
      %s196 = scalar_select %p195, %s194, 7
      %s197 = smul.addr %s196, 4
      %s198 = scalar_lea.vmem %s0, %s197
      %s199 = smul.u32 4, %s14
      %s200 = smul.u32 4, %s14
      %p201 = scmp.lt.s32.totalorder %s200, 7
      %s202 = scalar_select %p201, %s200, 7
      %s203 = smul.addr %s202, 4
      %s204 = scalar_lea.vmem %s1, %s203
      %s205 = smul.u32 4, %s14
      %s206 = smul.u32 4, %s14
      %p207 = scmp.lt.s32.totalorder %s206, 7
      %s208 = scalar_select %p207, %s206, 7
      %s209 = smul.addr %s208, 4
      %s210 = scalar_lea.vmem %s2, %s209
      %s211 = smul.u32 4, %s14
      %s212 = smul.u32 4, %s14
      %p213 = scmp.lt.s32.totalorder %s212, 7
      %s214 = scalar_select %p213, %s212, 7
      %s215 = smul.addr %s214, 4
      %s216 = scalar_lea.vmem %s3, %s215
      %s217 = smul.u32 4, %s14
      %v219 = vld [vmem:[%s198] sm:$0xf]
      %v220 = vld [vmem:[%s198 + $0x4] sm:$0xf]
      %v221 = vld [vmem:[%s198 + $0x8] sm:$0xf]
      %v222 = vld [vmem:[%s198 + $0xc] sm:$0xf]
      %v223 = vld [vmem:[%s204] sm:$0xf]
      %v224 = vld [vmem:[%s204 + $0x4] sm:$0xf]
      %v225 = vld [vmem:[%s204 + $0x8] sm:$0xf]
      %v226 = vld [vmem:[%s204 + $0xc] sm:$0xf]
      %v227 = vld [vmem:[%s210] sm:$0xf]
      %v228 = vld [vmem:[%s210 + $0x4] sm:$0xf]
      %v229 = vld [vmem:[%s210 + $0x8] sm:$0xf]
      %v230 = vld [vmem:[%s210 + $0xc] sm:$0xf]
      %231 = vmatpush.bf16.xpose.msra.mxu0 0
      %232 = vmatpush.bf16.xpose.msra.mxu0 0
      %233 = vmatpush.bf16.xpose.msra.mxu0 0
      %234 = vmatpush.bf16.xpose.msra.mxu0 0
      %235 = vmatpush.bf16.xpose.msra.mxu0 0
      %236 = vmatpush.bf16.xpose.msra.mxu0 0
      %237 = vmatpush.bf16.xpose.msra.mxu0 0
      %238 = vmatpush.bf16.xpose.msra.mxu0 %v223
      %239 = vmatmul.bf16.gmra.mxu0 %v219
      %v240 = vpop.f32.mrf.mxu0
      %v241 = vadd.f32 0.0, %v240
      %v242 = vpop.f32.mrf.mxu0
      %243 = vdwg.mxu0
      %244 = vmatpush.bf16.xpose.msra.mxu0 0
      %245 = vmatpush.bf16.xpose.msra.mxu0 0
      %246 = vmatpush.bf16.xpose.msra.mxu0 0
      %247 = vmatpush.bf16.xpose.msra.mxu0 0
      %248 = vmatpush.bf16.xpose.msra.mxu0 0
      %249 = vmatpush.bf16.xpose.msra.mxu0 0
      %250 = vmatpush.bf16.xpose.msra.mxu0 0
      %251 = vmatpush.bf16.xpose.msra.mxu0 %v224
      %252 = vmatmul.bf16.gmra.mxu0 %v220
      %v253 = vpop.f32.mrf.mxu0
      %v254 = vadd.f32 0.0, %v253
      %v255 = vpop.f32.mrf.mxu0
      %256 = vdwg.mxu0
      %257 = vmatpush.bf16.xpose.msra.mxu0 0
      %258 = vmatpush.bf16.xpose.msra.mxu0 0
      %259 = vmatpush.bf16.xpose.msra.mxu0 0
      %260 = vmatpush.bf16.xpose.msra.mxu0 0
      %261 = vmatpush.bf16.xpose.msra.mxu0 0
      %262 = vmatpush.bf16.xpose.msra.mxu0 0
      %263 = vmatpush.bf16.xpose.msra.mxu0 0
      %264 = vmatpush.bf16.xpose.msra.mxu0 %v225
      %265 = vmatmul.bf16.gmra.mxu0 %v221
      %v266 = vpop.f32.mrf.mxu0
      %v267 = vadd.f32 0.0, %v266
      %v268 = vpop.f32.mrf.mxu0
      %269 = vdwg.mxu0
      %270 = vmatpush.bf16.xpose.msra.mxu0 0
      %271 = vmatpush.bf16.xpose.msra.mxu0 0
      %272 = vmatpush.bf16.xpose.msra.mxu0 0
      %273 = vmatpush.bf16.xpose.msra.mxu0 0
      %274 = vmatpush.bf16.xpose.msra.mxu0 0
      %275 = vmatpush.bf16.xpose.msra.mxu0 0
      %276 = vmatpush.bf16.xpose.msra.mxu0 0
      %277 = vmatpush.bf16.xpose.msra.mxu0 %v226
      %278 = vmatmul.bf16.gmra.mxu0 %v222
      %v279 = vpop.f32.mrf.mxu0
      %v280 = vadd.f32 0.0, %v279
      %v281 = vpop.f32.mrf.mxu0
      %282 = vdwg.mxu0
      %v283 = vmul.f32 %v241, 0.17677669
      %v284 = vmul.f32 %v254, 0.17677669
      %v285 = vmul.f32 %v267, 0.17677669
      %v286 = vmul.f32 %v280, 0.17677669
      %vm287 = vcmask 64512
      %v288 = vsel %vm287, %v283, -inf
      %289 = vmax.xlane.f32.xlu0 %v288
      %v290 = vpop.xlane.xlu0 %289
      %v291 = vsel %vm287, %v284, -inf
      %292 = vmax.xlane.f32.xlu0 %v291
      %v293 = vpop.xlane.xlu0 %292
      %v294 = vsel %vm287, %v285, -inf
      %295 = vmax.xlane.f32.xlu0 %v294
      %v296 = vpop.xlane.xlu0 %295
      %v297 = vsel %vm287, %v286, -inf
      %298 = vmax.xlane.f32.xlu0 %v297
      %v299 = vpop.xlane.xlu0 %298
      %v300 = vsub.f32 %v283, %v290
      %v301 = vsub.f32 %v284, %v293
      %v302 = vsub.f32 %v285, %v296
      %v303 = vsub.f32 %v286, %v299
      %v304 = vmul.f32 %v300, 1.442695
      %v305 = vpow.pop %v304
      %v306 = vmul.f32 %v301, 1.442695
      %v307 = vpow.pop %v306
      %v308 = vmul.f32 %v302, 1.442695
      %v309 = vpow.pop %v308
      %v310 = vmul.f32 %v303, 1.442695
      %v311 = vpow.pop %v310
      %v312 = vsel %vm287, %v305, 0.0
      %313 = vadd.xlane.f32.xlu0 %v312
      %v314 = vpop.xlane.xlu0 %313
      %v315 = vsel %vm287, %v307, 0.0
      %316 = vadd.xlane.f32.xlu0 %v315
      %v317 = vpop.xlane.xlu0 %316
      %v318 = vsel %vm287, %v309, 0.0
      %319 = vadd.xlane.f32.xlu0 %v318
      %v320 = vpop.xlane.xlu0 %319
      %v321 = vsel %vm287, %v311, 0.0
      %322 = vadd.xlane.f32.xlu0 %v321
      %v323 = vpop.xlane.xlu0 %322
      %v324 = vrcp.pop %v314
      %v325 = vrcp.pop %v317
      %v326 = vrcp.pop %v320
      %v327 = vrcp.pop %v323
      %v328 = vmul.f32 %v305, %v324
      %v329 = vmul.f32 %v307, %v325
      %v330 = vmul.f32 %v309, %v326
      %v331 = vmul.f32 %v311, %v327
      %v332 = vpack.c.bf16 %v328, %v328
      %v333 = vpack.c.bf16 %v329, %v329
      %v334 = vpack.c.bf16 %v330, %v330
      %v335 = vpack.c.bf16 %v331, %v331
      %v337 = vsel %vm287, %v332, 0
      %vm339 = vcmask 1043456
      %v341 = vsel %vm339, %v227, 0
      %343 = vmatpush.bf16.msra.mxu0 0
      %344 = vmatpush.bf16.msra.mxu0 0
      %345 = vmatpush.bf16.msra.mxu0 0
      %346 = vmatpush.bf16.msra.mxu0 0
      %347 = vmatpush.bf16.msra.mxu0 0
      %348 = vmatpush.bf16.msra.mxu0 0
      %349 = vmatpush.bf16.msra.mxu0 0
      %350 = vmatpush.bf16.msra.mxu0 %v341
      %351 = vmatmul.bf16.gmra.mxu0 %v337
      %v352 = vpop.f32.mrf.mxu0
      %v353 = vadd.f32 0.0, %v352
      %v354 = vpop.f32.mrf.mxu0
      %355 = vdwg.mxu0
      %v357 = vsel %vm287, %v333, 0
      %v360 = vsel %vm339, %v228, 0
      %362 = vmatpush.bf16.msra.mxu0 0
      %363 = vmatpush.bf16.msra.mxu0 0
      %364 = vmatpush.bf16.msra.mxu0 0
      %365 = vmatpush.bf16.msra.mxu0 0
      %366 = vmatpush.bf16.msra.mxu0 0
      %367 = vmatpush.bf16.msra.mxu0 0
      %368 = vmatpush.bf16.msra.mxu0 0
      %369 = vmatpush.bf16.msra.mxu0 %v360
      %370 = vmatmul.bf16.gmra.mxu0 %v357
      %v371 = vpop.f32.mrf.mxu0
      %v372 = vadd.f32 0.0, %v371
      %v373 = vpop.f32.mrf.mxu0
      %374 = vdwg.mxu0
      %v376 = vsel %vm287, %v334, 0
      %v379 = vsel %vm339, %v229, 0
      %381 = vmatpush.bf16.msra.mxu0 0
      %382 = vmatpush.bf16.msra.mxu0 0
      %383 = vmatpush.bf16.msra.mxu0 0
      %384 = vmatpush.bf16.msra.mxu0 0
      %385 = vmatpush.bf16.msra.mxu0 0
      %386 = vmatpush.bf16.msra.mxu0 0
      %387 = vmatpush.bf16.msra.mxu0 0
      %388 = vmatpush.bf16.msra.mxu0 %v379
      %389 = vmatmul.bf16.gmra.mxu0 %v376
      %v390 = vpop.f32.mrf.mxu0
      %v391 = vadd.f32 0.0, %v390
      %v392 = vpop.f32.mrf.mxu0
      %393 = vdwg.mxu0
      %v395 = vsel %vm287, %v335, 0
      %v398 = vsel %vm339, %v230, 0
      %400 = vmatpush.bf16.msra.mxu0 0
      %401 = vmatpush.bf16.msra.mxu0 0
      %402 = vmatpush.bf16.msra.mxu0 0
      %403 = vmatpush.bf16.msra.mxu0 0
      %404 = vmatpush.bf16.msra.mxu0 0
      %405 = vmatpush.bf16.msra.mxu0 0
      %406 = vmatpush.bf16.msra.mxu0 0
      %407 = vmatpush.bf16.msra.mxu0 %v398
      %408 = vmatmul.bf16.gmra.mxu0 %v395
      %v409 = vpop.f32.mrf.mxu0
      %v410 = vadd.f32 0.0, %v409
      %v411 = vpop.f32.mrf.mxu0
      %412 = vdwg.mxu0
      %v413 = vpack.c.bf16 %v353, %v353
      %v414 = vpack.c.bf16 %v372, %v372
      %v415 = vpack.c.bf16 %v391, %v391
      %v416 = vpack.c.bf16 %v410, %v410
      %417 = vst [vmem:[%s216] sm:$0xf] %v413
      %418 = vst [vmem:[%s216 + $0x4] sm:$0xf] %v414
      %419 = vst [vmem:[%s216 + $0x8] sm:$0xf] %v415
      %420 = vst [vmem:[%s216 + $0xc] sm:$0xf] %v416
      %s421 = smul.u32 4, %s14
      %p422 = scmp.lt.s32.totalorder %s421, 7
      %s423 = scalar_select %p422, %s421, 7
      %s424 = smul.addr %s423, 4
      %s425 = scalar_lea.vmem %s3, %s424
      // Predicated region
      $region33: #{gridnet_block_forward.23} parent=31 // pred_check
        %p426 = pneg %p110
      $region34: #{gridnet_block_forward.23} parent=31 // pred_check_branch
        %428 = sbr.rel (%p426) target = $region36
      $region35: #{gridnet_block_forward.23} parent=31 // pred_region
        %s429 = smul.u32 4, %s14
      $region36: #{gridnet_block_forward.23} parent=31 // pred_fallthru
        _
    $region32: #{gridnet_block_forward.23} parent=5 // pred_fallthru
      _
    %p430 = scmp.le.s32.totalorder 2, %s9
    // Predicated region
    $region37: #{gridnet_block_forward.23} parent=5 // pred_check
      %p431 = pneg %p430
    $region38: #{gridnet_block_forward.23} parent=5 // pred_check_branch
      %433 = sbr.rel (%p431) target = $region40
    $region39: #{gridnet_block_forward.23} parent=5 // pred_region
      %s434 = ssub.s32 %s9, 2
      // Predicated region
      $region41: #{gridnet_block_forward.23} parent=39 // pred_check
        %p435 = pneg %p116
      $region42: #{gridnet_block_forward.23} parent=39 // pred_check_branch
        %437 = sbr.rel (%p435) target = $region44
      $region43: #{gridnet_block_forward.23} parent=39 // pred_region
        %s438 = smul.u32 4, %s15
        %p439 = scmp.lt.s32.totalorder %s438, 7
        %s440 = scalar_select %p439, %s438, 7
        %s441 = smul.addr %s440, 4
        %s442 = scalar_lea.vmem %s3, %s441
      $region44: #{gridnet_block_forward.23} parent=39 // pred_fallthru
        _
    $region40: #{gridnet_block_forward.23} parent=5 // pred_fallthru
      _
  $region6: #{gridnet_block_forward.23} parent=0 // loop_footer
    %s13 = sadd.s32 1, %s9
  $region7: #{gridnet_block_forward.23} parent=0 // loop_footer_branch
    %8 = sbr.rel target = $region3
  $region8: #{gridnet_block_forward.23} parent=0 // loop_exit
    _

// kernel: gridnet_block_forward.24
$region0: #{gridnet_block_forward.24}
  #allocation0 [shape = 'u32[]', space=smem, size = 0x4, offset = 0x4, fixed_abs, tag = 'smem constant byte address 0x4 - core index']
  #allocation1 [shape = 'u32[72,128]{1,0:T(1,128)}', space=vmem, size = 0x9000, scoped, tag = 'internal scratch']
  %s0 = inlined_call_operand.vmem [shape: bf16[128,8], index: 0, kind: input, shape index: {}]
  %s1 = inlined_call_operand.vmem [shape: bf16[8,128], index: 1, kind: input, shape index: {}]
  %s2 = inlined_call_operand.vmem [shape: f32[1,128], index: 2, kind: input, shape index: {}]
  %s3 = inlined_call_operand.vmem [shape: f32[1,128], index: 3, kind: input, shape index: {}]
  %s4 = inlined_call_operand.vmem [shape: f32[128,128], index: 4, kind: output, shape index: {}]
  %s5 = sld [smem:[#allocation0]]
  $region49: #{gridnet_block_forward.24} parent=0
    _
  %s7 = ssub.s32 1, %s5
  %s8 = scalar_select 0, %s7, %s5
  loop: start=0, step=1, limit=4
  $region2: #{gridnet_block_forward.24} parent=0 // loop_pre_header
    _
  $region3: #{gridnet_block_forward.24} parent=0 // loop_header
    %s10 = sphi 0, %s14
    %p11 = scmp.ge.s32.totalorder %s10, 4
    %s20 = sphi 0, %s22
    %s23 = sphi 0, %s20
    %s24 = sphi 0, %s23
    %s40 = sphi 0, %s24
    %s44 = sphi 0, %s44
    %s46 = sphi 0, %s44
    %s47 = sphi 0, %s46
    %s61 = sphi 0, %s47
    %s65 = sphi 0, %s65
    %s67 = sphi 0, %s65
    %s68 = sphi 0, %s67
    %s82 = sphi 0, %s68
    %s86 = sphi 0, %s86
    %s88 = sphi 0, %s86
    %s89 = sphi 0, %s88
    %s103 = sphi 0, %s89
    %s109 = sphi 0, %s111
    %s112 = sphi 0, %s109
    %s113 = sphi 0, %s112
    %s129 = sphi 0, %s113
  $region4: #{gridnet_block_forward.24} parent=0 // loop_header_branch
    %13 = sbr.rel (%p11) target = $region8
  $region5: #{gridnet_block_forward.24} parent=0 // loop_body
    %s15 = ssub.s32 %s10, 1
    %s16 = ssub.s32 %s10, 2
    %s17 = sadd.s32 %s10, 1
    %s18 = ssub.s32 %s10, %s17
    %p19 = scmp.eq.s32.totalorder %s18, 0
    %s21 = sadd.s32 %s20, 1
    %s22 = scalar_select %p19, %s20, %s21
    %p25 = pneg %p19
    %p26 = scmp.eq.s32.totalorder %s10, 1
    %p27 = por %p25, %p26
    %p28 = scmp.ne.s32.totalorder %s20, %s23
    %p29 = scmp.eq.s32.totalorder %s10, 0
    %p30 = por %p28, %p29
    %p31 = scmp.ne.s32.totalorder %s20, %s23
    %p32 = scmp.eq.s32.totalorder %s15, 1
    %p33 = por %p31, %p32
    %p34 = scmp.ne.s32.totalorder %s23, %s24
    %p35 = scmp.eq.s32.totalorder %s15, 0
    %p36 = por %p34, %p35
    %p37 = scmp.ne.s32.totalorder %s23, %s24
    %p38 = scmp.eq.s32.totalorder %s16, 1
    %p39 = por %p37, %p38
    %p41 = scmp.ne.s32.totalorder %s24, %s40
    %p42 = scmp.eq.s32.totalorder %s16, 0
    %p43 = por %p41, %p42
    %s45 = sadd.s32 %s44, 1
    %p48 = scmp.eq.s32.totalorder %s10, 1
    %p49 = scmp.ne.s32.totalorder %s44, %s46
    %p50 = scmp.eq.s32.totalorder %s10, 0
    %p51 = por %p49, %p50
    %p52 = scmp.ne.s32.totalorder %s44, %s46
    %p53 = scmp.eq.s32.totalorder %s15, 1
    %p54 = por %p52, %p53
    %p55 = scmp.ne.s32.totalorder %s46, %s47
    %p56 = scmp.eq.s32.totalorder %s15, 0
    %p57 = por %p55, %p56
    %p58 = scmp.ne.s32.totalorder %s46, %s47
    %p59 = scmp.eq.s32.totalorder %s16, 1
    %p60 = por %p58, %p59
    %p62 = scmp.ne.s32.totalorder %s47, %s61
    %p63 = scmp.eq.s32.totalorder %s16, 0
    %p64 = por %p62, %p63
    %s66 = sadd.s32 %s65, 1
    %p69 = scmp.eq.s32.totalorder %s10, 1
    %p70 = scmp.ne.s32.totalorder %s65, %s67
    %p71 = scmp.eq.s32.totalorder %s10, 0
    %p72 = por %p70, %p71
    %p73 = scmp.ne.s32.totalorder %s65, %s67
    %p74 = scmp.eq.s32.totalorder %s15, 1
    %p75 = por %p73, %p74
    %p76 = scmp.ne.s32.totalorder %s67, %s68
    %p77 = scmp.eq.s32.totalorder %s15, 0
    %p78 = por %p76, %p77
    %p79 = scmp.ne.s32.totalorder %s67, %s68
    %p80 = scmp.eq.s32.totalorder %s16, 1
    %p81 = por %p79, %p80
    %p83 = scmp.ne.s32.totalorder %s68, %s82
    %p84 = scmp.eq.s32.totalorder %s16, 0
    %p85 = por %p83, %p84
    %s87 = sadd.s32 %s86, 1
    %p90 = scmp.eq.s32.totalorder %s10, 1
    %p91 = scmp.ne.s32.totalorder %s86, %s88
    %p92 = scmp.eq.s32.totalorder %s10, 0
    %p93 = por %p91, %p92
    %p94 = scmp.ne.s32.totalorder %s86, %s88
    %p95 = scmp.eq.s32.totalorder %s15, 1
    %p96 = por %p94, %p95
    %p97 = scmp.ne.s32.totalorder %s88, %s89
    %p98 = scmp.eq.s32.totalorder %s15, 0
    %p99 = por %p97, %p98
    %p100 = scmp.ne.s32.totalorder %s88, %s89
    %p101 = scmp.eq.s32.totalorder %s16, 1
    %p102 = por %p100, %p101
    %p104 = scmp.ne.s32.totalorder %s89, %s103
    %p105 = scmp.eq.s32.totalorder %s16, 0
    %p106 = por %p104, %p105
    %s107 = ssub.s32 %s10, %s17
    %p108 = scmp.eq.s32.totalorder %s107, 0
    %s110 = sadd.s32 %s109, 1
    %s111 = scalar_select %p108, %s109, %s110
    %p114 = pneg %p108
    %p115 = scmp.eq.s32.totalorder %s10, 1
    %p116 = por %p114, %p115
    %p117 = scmp.ne.s32.totalorder %s109, %s112
    %p118 = scmp.eq.s32.totalorder %s10, 0
    %p119 = por %p117, %p118
    %p120 = scmp.ne.s32.totalorder %s109, %s112
    %p121 = scmp.eq.s32.totalorder %s15, 1
    %p122 = por %p120, %p121
    %p123 = scmp.ne.s32.totalorder %s112, %s113
    %p124 = scmp.eq.s32.totalorder %s15, 0
    %p125 = por %p123, %p124
    %p126 = scmp.ne.s32.totalorder %s112, %s113
    %p127 = scmp.eq.s32.totalorder %s16, 1
    %p128 = por %p126, %p127
    %p130 = scmp.ne.s32.totalorder %s113, %s129
    %p131 = scmp.eq.s32.totalorder %s16, 0
    %p132 = por %p130, %p131
    %p133 = scmp.le.s32.totalorder 1, %s10
    %p134 = scmp.lt.s32.totalorder %s10, 3
    %p135 = pnand %p133, %p134
    %p136 = pneg %p135
    // Predicated region
    $region9: #{gridnet_block_forward.24} parent=5 // pred_check
      _
    $region10: #{gridnet_block_forward.24} parent=5 // pred_check_branch
      %138 = sbr.rel (%p135) target = $region12
    $region11: #{gridnet_block_forward.24} parent=5 // pred_region
      %s139 = ssub.s32 %s10, 1
      // Predicated region
      $region13: #{gridnet_block_forward.24} parent=11 // pred_check
        %p140 = pneg %p57
      $region14: #{gridnet_block_forward.24} parent=11 // pred_check_branch
        %142 = sbr.rel (%p140) target = $region16
      $region15: #{gridnet_block_forward.24} parent=11 // pred_region
        _
      $region16: #{gridnet_block_forward.24} parent=11 // pred_fallthru
        _
      // Predicated region
      $region17: #{gridnet_block_forward.24} parent=11 // pred_check
        %p143 = pneg %p78
      $region18: #{gridnet_block_forward.24} parent=11 // pred_check_branch
        %145 = sbr.rel (%p143) target = $region20
      $region19: #{gridnet_block_forward.24} parent=11 // pred_region
        _
      $region20: #{gridnet_block_forward.24} parent=11 // pred_fallthru
        _
      // Predicated region
      $region21: #{gridnet_block_forward.24} parent=11 // pred_check
        %p146 = pneg %p99
      $region22: #{gridnet_block_forward.24} parent=11 // pred_check_branch
        %148 = sbr.rel (%p146) target = $region24
      $region23: #{gridnet_block_forward.24} parent=11 // pred_region
        _
      $region24: #{gridnet_block_forward.24} parent=11 // pred_fallthru
        _
    $region12: #{gridnet_block_forward.24} parent=5 // pred_fallthru
      _
    %p149 = scmp.lt.s32.totalorder %s10, 2
    // Predicated region
    $region25: #{gridnet_block_forward.24} parent=5 // pred_check
      %p150 = pneg %p149
    $region26: #{gridnet_block_forward.24} parent=5 // pred_check_branch
      %152 = sbr.rel (%p150) target = $region28
    $region27: #{gridnet_block_forward.24} parent=5 // pred_region
      // Predicated region
      $region29: #{gridnet_block_forward.24} parent=27 // pred_check
        %p153 = pneg %p30
      $region30: #{gridnet_block_forward.24} parent=27 // pred_check_branch
        %155 = sbr.rel (%p153) target = $region32
      $region31: #{gridnet_block_forward.24} parent=27 // pred_region
        %s156 = smul.u32 8, %s10
        %p157 = scmp.lt.s32.totalorder %s156, 15
        %s158 = scalar_select %p157, %s156, 15
        %s159 = smul.addr %s158, 4
        %s160 = scalar_lea.vmem %s0, %s159
        %s161 = smul.u32 8, %s10
      $region32: #{gridnet_block_forward.24} parent=27 // pred_fallthru
        _
    $region28: #{gridnet_block_forward.24} parent=5 // pred_fallthru
      _
    %p162 = scmp.le.s32.totalorder 1, %s10
    %p163 = scmp.lt.s32.totalorder %s10, 3
    %p164 = pnand %p162, %p163
    %p165 = pneg %p164
    // Predicated region
    $region33: #{gridnet_block_forward.24} parent=5 // pred_check
      _
    $region34: #{gridnet_block_forward.24} parent=5 // pred_check_branch
      %167 = sbr.rel (%p164) target = $region36
    $region35: #{gridnet_block_forward.24} parent=5 // pred_region
      %s168 = ssub.s32 %s10, 1
      %s169 = smul.u32 8, %s15
      %p170 = scmp.lt.s32.totalorder %s169, 15
      %s171 = scalar_select %p170, %s169, 15
      %s172 = smul.addr %s171, 4
      %s173 = scalar_lea.vmem %s0, %s172
      %p174 = pneg %p36
      %p175 = pneg %p33
      %p176 = pneg %p57
      %p177 = pneg %p54
      %p178 = pneg %p78
      %p179 = pneg %p75
      %p180 = pneg %p99
      %p181 = pneg %p96
      %p182 = pneg %p125
      %p183 = pneg %p122
      %s184 = smul.u32 8, %s15
      %p185 = scmp.lt.s32.totalorder %s184, 15
      %s186 = scalar_select %p185, %s184, 15
      %s187 = smul.addr %s186, 8
      %s188 = scalar_lea.vmem %s4, %s187
      %s189 = smul.u32 8, %s15
      %p190 = scmp.lt.s32.totalorder %s189, 15
      %s191 = scalar_select %p190, %s189, 15
      %s192 = smul.addr %s191, 4
      %s193 = scalar_lea.vmem %s0, %s192
      %s194 = smul.u32 8, %s15
      %s195 = smul.u32 8, %s15
      %p196 = scmp.lt.s32.totalorder %s195, 15
      %s197 = scalar_select %p196, %s195, 15
      %s198 = smul.addr %s197, 8
      %s199 = scalar_lea.vmem %s4, %s198
      %s200 = smul.u32 8, %s15
      %v202 = vld [vmem:[%s193] sm:$0xf]
      %v203 = vld [vmem:[%s193 + $0x4] sm:$0xf]
      %v204 = vld [vmem:[%s193 + $0x8] sm:$0xf]
      %v205 = vld [vmem:[%s193 + $0xc] sm:$0xf]
      %v206 = vld [vmem:[%s193 + $0x10] sm:$0xf]
      %v207 = vld [vmem:[%s193 + $0x14] sm:$0xf]
      %v208 = vld [vmem:[%s193 + $0x18] sm:$0xf]
      %v209 = vld [vmem:[%s193 + $0x1c] sm:$0xf]
      %v210 = vld [vmem:[%s1] sm:$0xf]
      %v211 = vld [vmem:[%s2] sm:$0x1]
      %v213 = vperm.slane %v211, 0
      %v223 = vunpack.c.l.b16 %v202
      %v224 = vunpack.c.l.b16 %v203
      %v225 = vunpack.c.l.b16 %v204
      %v226 = vunpack.c.l.b16 %v205
      %v227 = vunpack.c.l.b16 %v206
      %v228 = vunpack.c.l.b16 %v207
      %v229 = vunpack.c.l.b16 %v208
      %v230 = vunpack.c.l.b16 %v209
      %v231 = vpack.c.b16 %v224, %v223
      %v232 = vpack.c.b16 %v226, %v225
      %v233 = vpack.c.b16 %v228, %v227
      %v234 = vpack.c.b16 %v230, %v229
      %vm235 = vcmask 64512
      %v237 = vsel %vm235, %v231, 0
      %v240 = vsel %vm235, %v232, 0
      %v243 = vsel %vm235, %v233, 0
      %v246 = vsel %vm235, %v234, 0
      %vm248 = vcmask 1043456
      %v250 = vsel %vm248, %v210, 0
      %252 = vmatpush.bf16.msra.mxu0 0
      %253 = vmatpush.bf16.msra.mxu0 0
      %254 = vmatpush.bf16.msra.mxu0 0
      %255 = vmatpush.bf16.msra.mxu0 0
      %256 = vmatpush.bf16.msra.mxu0 0
      %257 = vmatpush.bf16.msra.mxu0 0
      %258 = vmatpush.bf16.msra.mxu0 0
      %259 = vmatpush.bf16.msra.mxu0 %v250
      %260 = vmatmul.bf16.gmra.mxu0 %v237
      %v261 = vpop.f32.mrf.mxu0
      %v262 = vadd.f32 %v213, %v261
      %v263 = vpop.f32.mrf.mxu0
      %v264 = vadd.f32 %v213, %v263
      %265 = vmatmul.bf16.gmra.mxu0 %v240
      %v266 = vpop.f32.mrf.mxu0
      %v267 = vadd.f32 %v213, %v266
      %v268 = vpop.f32.mrf.mxu0
      %v269 = vadd.f32 %v213, %v268
      %270 = vmatmul.bf16.gmra.mxu0 %v243
      %v271 = vpop.f32.mrf.mxu0
      %v272 = vadd.f32 %v213, %v271
      %v273 = vpop.f32.mrf.mxu0
      %v274 = vadd.f32 %v213, %v273
      %275 = vmatmul.bf16.gmra.mxu0 %v246
      %v276 = vpop.f32.mrf.mxu0
      %v277 = vadd.f32 %v213, %v276
      %v278 = vpop.f32.mrf.mxu0
      %v279 = vadd.f32 %v213, %v278
      %280 = vdwg.mxu0
      %vm281 = vcmp.ge.f32.partialorder %v262, 0.0
      %vm282 = vcmp.ge.f32.partialorder %v264, 0.0
      %vm283 = vcmp.ge.f32.partialorder %v267, 0.0
      %vm284 = vcmp.ge.f32.partialorder %v269, 0.0
      %vm285 = vcmp.ge.f32.partialorder %v272, 0.0
      %vm286 = vcmp.ge.f32.partialorder %v274, 0.0
      %vm287 = vcmp.ge.f32.partialorder %v277, 0.0
      %vm288 = vcmp.ge.f32.partialorder %v279, 0.0
      %v289 = vld [vmem:[%s3] sm:$0x1]
      %v291 = vperm.slane %v289, 0
      %v293 = vmul.f32 %v291, %v262
      %v294 = vmul.f32 %v291, %v264
      %v295 = vmul.f32 %v291, %v267
      %v296 = vmul.f32 %v291, %v269
      %v297 = vmul.f32 %v291, %v272
      %v298 = vmul.f32 %v291, %v274
      %v299 = vmul.f32 %v291, %v277
      %v300 = vmul.f32 %v291, %v279
      %v301 = vsel %vm281, %v262, %v293
      %v302 = vsel %vm282, %v264, %v294
      %v303 = vsel %vm283, %v267, %v295
      %v304 = vsel %vm284, %v269, %v296
      %v305 = vsel %vm285, %v272, %v297
      %v306 = vsel %vm286, %v274, %v298
      %v307 = vsel %vm287, %v277, %v299
      %v308 = vsel %vm288, %v279, %v300
      %309 = vst [vmem:[%s199] sm:$0xff] %v301
      %310 = vst [vmem:[%s199 + $0x8] sm:$0xff] %v302
      %311 = vst [vmem:[%s199 + $0x10] sm:$0xff] %v303
      %312 = vst [vmem:[%s199 + $0x18] sm:$0xff] %v304
      %313 = vst [vmem:[%s199 + $0x20] sm:$0xff] %v305
      %314 = vst [vmem:[%s199 + $0x28] sm:$0xff] %v306
      %315 = vst [vmem:[%s199 + $0x30] sm:$0xff] %v307
      %316 = vst [vmem:[%s199 + $0x38] sm:$0xff] %v308
      %s317 = smul.u32 8, %s15
      %p318 = scmp.lt.s32.totalorder %s317, 15
      %s319 = scalar_select %p318, %s317, 15
      %s320 = smul.addr %s319, 8
      %s321 = scalar_lea.vmem %s4, %s320
      // Predicated region
      $region37: #{gridnet_block_forward.24} parent=35 // pred_check
        %p322 = pneg %p122
      $region38: #{gridnet_block_forward.24} parent=35 // pred_check_branch
        %324 = sbr.rel (%p322) target = $region40
      $region39: #{gridnet_block_forward.24} parent=35 // pred_region
        %s325 = smul.u32 8, %s15
      $region40: #{gridnet_block_forward.24} parent=35 // pred_fallthru
        _
    $region36: #{gridnet_block_forward.24} parent=5 // pred_fallthru
      _
    %p326 = scmp.le.s32.totalorder 2, %s10
    // Predicated region
    $region41: #{gridnet_block_forward.24} parent=5 // pred_check
      %p327 = pneg %p326
    $region42: #{gridnet_block_forward.24} parent=5 // pred_check_branch
      %329 = sbr.rel (%p327) target = $region44
    $region43: #{gridnet_block_forward.24} parent=5 // pred_region
      %s330 = ssub.s32 %s10, 2
      // Predicated region
      $region45: #{gridnet_block_forward.24} parent=43 // pred_check
        %p331 = pneg %p128
      $region46: #{gridnet_block_forward.24} parent=43 // pred_check_branch
        %333 = sbr.rel (%p331) target = $region48
      $region47: #{gridnet_block_forward.24} parent=43 // pred_region
        %s334 = smul.u32 8, %s16
        %p335 = scmp.lt.s32.totalorder %s334, 15
        %s336 = scalar_select %p335, %s334, 15
        %s337 = smul.addr %s336, 8
        %s338 = scalar_lea.vmem %s4, %s337
      $region48: #{gridnet_block_forward.24} parent=43 // pred_fallthru
        _
    $region44: #{gridnet_block_forward.24} parent=5 // pred_fallthru
      _
  $region6: #{gridnet_block_forward.24} parent=0 // loop_footer
    %s14 = sadd.s32 1, %s10
  $region7: #{gridnet_block_forward.24} parent=0 // loop_footer_branch
    %9 = sbr.rel target = $region3
  $region8: #{gridnet_block_forward.24} parent=0 // loop_exit
    _

// kernel: gridnet_block_forward.25
$region0: #{gridnet_block_forward.25}
  #allocation0 [shape = 'u32[]', space=smem, size = 0x4, offset = 0x4, fixed_abs, tag = 'smem constant byte address 0x4 - core index']
  #allocation1 [shape = 'u32[72,128]{1,0:T(1,128)}', space=vmem, size = 0x9000, scoped, tag = 'internal scratch']
  %s0 = inlined_call_operand.vmem [shape: f32[1,16,64], index: 0, kind: input, shape index: {}]
  %s1 = inlined_call_operand.vmem [shape: f32[1,1,64], index: 1, kind: input, shape index: {}]
  %s2 = inlined_call_operand.vmem [shape: f32[1,1,64], index: 2, kind: input, shape index: {}]
  %s3 = inlined_call_operand.vmem [shape: f32[1,16,64], index: 3, kind: output, shape index: {}]
  %s4 = sld [smem:[#allocation0]]
  $region22: #{gridnet_block_forward.25} parent=0
    _
  %s6 = ssub.s32 1, %s4
  %s7 = scalar_select 0, %s6, %s4
  // Predicated region
  $region2: #{gridnet_block_forward.25} parent=0 // pred_check
    _
  $region3: #{gridnet_block_forward.25} parent=0 // pred_check_branch
    %9 = sbr.rel (0) target = $region5
  $region4: #{gridnet_block_forward.25} parent=0 // pred_region
    _
  $region5: #{gridnet_block_forward.25} parent=0 // pred_fallthru
    _
  // Predicated region
  $region6: #{gridnet_block_forward.25} parent=0 // pred_check
    _
  $region7: #{gridnet_block_forward.25} parent=0 // pred_check_branch
    %11 = sbr.rel (0) target = $region9
  $region8: #{gridnet_block_forward.25} parent=0 // pred_region
    _
  $region9: #{gridnet_block_forward.25} parent=0 // pred_fallthru
    _
  // Predicated region
  $region10: #{gridnet_block_forward.25} parent=0 // pred_check
    _
  $region11: #{gridnet_block_forward.25} parent=0 // pred_check_branch
    %13 = sbr.rel (0) target = $region13
  $region12: #{gridnet_block_forward.25} parent=0 // pred_region
    _
  $region13: #{gridnet_block_forward.25} parent=0 // pred_fallthru
    _
  %v14 = vld [vmem:[%s0] sm:$0xff]
  %v15 = vld [vmem:[%s0 + $0x8] sm:$0xff]
  %vm16 = vcmask 523264
  %v17 = vsel %vm16, %v14, 0.0
  %18 = vadd.xlane.f32.xlu0 %v17
  %v19 = vpop.xlane.xlu0 %18
  %v20 = vsel %vm16, %v15, 0.0
  %21 = vadd.xlane.f32.xlu0 %v20
  %v22 = vpop.xlane.xlu0 %21
  %v23 = vrcp.pop 64.0
  %v24 = vmul.f32 64.0, %v23
  %v25 = vsub.f32 1.0, %v24
  %v26 = vmul.f32 %v23, %v25
  %v27 = vadd.f32 %v23, %v26
  %vm28 = vweird.f32 %v23
  %v29 = vsel %vm28, %v23, %v27
  %v30 = vmul.f32 %v19, %v29
  %v31 = vmul.f32 %v22, %v29
  %v32 = vsub.f32 %v14, %v30
  %v33 = vsub.f32 %v15, %v31
  %v34 = vmul.f32 %v32, %v32
  %v35 = vmul.f32 %v33, %v33
  %v36 = vsel %vm16, %v34, 0.0
  %37 = vadd.xlane.f32.xlu0 %v36
  %v38 = vpop.xlane.xlu0 %37
  %v39 = vsel %vm16, %v35, 0.0
  %40 = vadd.xlane.f32.xlu0 %v39
  %v41 = vpop.xlane.xlu0 %40
  %v42 = vmul.f32 %v38, %v29
  %v43 = vmul.f32 %v41, %v29
  %v44 = vadd.f32 %v42, 1e-05
  %v45 = vadd.f32 %v43, 1e-05
  %v46 = vrsqrt.pop %v44
  %v47 = vmul.f32 %v46, %v44
  %v48 = vmul.f32 %v47, %v46
  %v49 = vmul.f32 0.5, %v48
  %v50 = vsub.f32 1.5, %v49
  %v51 = vmul.f32 %v46, %v50
  %vm52 = vweird.f32 %v44
  %vm53 = vweird.f32 %v46
  %vm54 = vmor %vm52, %vm53
  %v55 = vsel %vm54, %v46, %v51
  %v56 = vrsqrt.pop %v45
  %v57 = vmul.f32 %v56, %v45
  %v58 = vmul.f32 %v57, %v56
  %v59 = vmul.f32 0.5, %v58
  %v60 = vsub.f32 1.5, %v59
  %v61 = vmul.f32 %v56, %v60
  %vm62 = vweird.f32 %v45
  %vm63 = vweird.f32 %v56
  %vm64 = vmor %vm62, %vm63
  %v65 = vsel %vm64, %v56, %v61
  %v66 = vmul.f32 %v32, %v55
  %v67 = vmul.f32 %v33, %v65
  %v68 = vld [vmem:[%s1] sm:$0x1]
  %v70 = vperm.slane %v68, 0
  %v72 = vmul.f32 %v66, %v70
  %v73 = vmul.f32 %v67, %v70
  %v74 = vld [vmem:[%s2] sm:$0x1]
  %v76 = vperm.slane %v74, 0
  %v78 = vadd.f32 %v72, %v76
  %v79 = vadd.f32 %v73, %v76
  %80 = vst.msk [vmem:[%s3] sm:$0xff] %vm16, %v78
  %81 = vst.msk [vmem:[%s3 + $0x8] sm:$0xff] %vm16, %v79
  // Predicated region
  $region14: #{gridnet_block_forward.25} parent=0 // pred_check
    _
  $region15: #{gridnet_block_forward.25} parent=0 // pred_check_branch
    %83 = sbr.rel (0) target = $region17
  $region16: #{gridnet_block_forward.25} parent=0 // pred_region
    _
  $region17: #{gridnet_block_forward.25} parent=0 // pred_fallthru
    _
  // Predicated region
  $region18: #{gridnet_block_forward.25} parent=0 // pred_check
    _
  $region19: #{gridnet_block_forward.25} parent=0 // pred_check_branch
    %85 = sbr.rel (0) target = $region21
  $region20: #{gridnet_block_forward.25} parent=0 // pred_region
    _
  $region21: #{gridnet_block_forward.25} parent=0 // pred_fallthru
    _

</llo_original>
